<compile_context>
chip_gen: v7x
topology: tpu7x:2x2x1
jax: 0.10.0
libtpu: 0.0.40
codegen_flags: <defaults>
</compile_context>

<pallas_src>
import functools

import jax
import jax.numpy as jnp
from jax.experimental import pallas as pl
from jax.experimental.pallas import tpu as pltpu


def _round_up(x, m):
    return (x + m - 1) // m * m


def _cdiv(a, b):
    return (a + b - 1) // b


def _hw_budget():
    """(max batch-tile rows, vmem_limit_bytes) per TPU generation."""
    vmem_bytes = 64 * 1024 * 1024                       # conservative default
    try:
        vmem_bytes = int(pltpu.get_tpu_info().vmem_capacity_bytes)
    except Exception:
        pass
    if vmem_bytes >= 100 * 1024 * 1024:                 # v5e / v6e: 128 MiB VMEM
        return 2048, 96 * 1024 * 1024
    return 1024, 48 * 1024 * 1024                       # v7x: 64 MiB VMEM, 2 TCs


# ---------------------------------------------------------------------------
# Kernel
# ---------------------------------------------------------------------------
def _dcn_kernel(num_fields, num_cross, num_mlp, embed_out_dim,
                idx_ref, wg_ref, cw_ref, cb_ref, *rest):
    """DCN forward for one batch tile.

    idx_ref : (TILE_B, F) int32   global (offset) embedding ids, streamed.
    wg_ref  : (F, V, D)   bf16    per-field block-diag gather matrix, resident.
    cw_ref  : (num_cross, D) f32  cross-layer weight rows, resident.
    cb_ref  : (num_cross, D) f32  cross-layer biases, resident.
    rest    : [W'_k bf16, b'_k f32] * num_mlp  (eval-mode BN folded into W', b'),
              wf_ref (1, D + H_last + 1) f32  [wf_x | wf_h | bias], resident,
              out_ref (1, 1, TILE_B) f32      lane-dense output row.
    """
    mlp_refs = rest[:2 * num_mlp]
    wf_ref, out_ref = rest[2 * num_mlp:]

    D = embed_out_dim
    tile_b = idx_ref.shape[0]
    vocab = wg_ref.shape[1]

    idx = idx_ref[...]                                           # (TB, F) int32

    # ---- fused embedding gather: one-hot @ block-diag table (MXU) ----------
    # e[b, f*E:(f+1)*E] = embedding[idx[b, f]]   (f32 accumulation)
    e = jnp.zeros((tile_b, D), jnp.float32)
    for f in range(num_fields):
        onehot = (idx[:, f:f + 1] ==
                  jax.lax.broadcasted_iota(jnp.int32, (1, vocab), 1)
                  ).astype(jnp.bfloat16)                         # (TB, V)
        e = e + jnp.dot(onehot, wg_ref[f],
                        preferred_element_type=jnp.float32)      # (TB, D)

    # ---- cross network (f32 VPU multiply + lane reduce; MXU stays free) ----
    # x_{l+1} = x0 * (x_l . w_l) + b_l + x_l
    # NOTE: at D < 128 these ops use D/128 of the lanes; packing k=128//D rows
    #       per vreg row is a possible follow-up if this chain ever binds.
    x0 = e
    x = e
    for i in range(num_cross):
        xw = jnp.sum(x * cw_ref[i:i + 1, :], axis=-1, keepdims=True)   # (TB,1)
        x = x0 * xw + cb_ref[i:i + 1, :] + x                           # (TB,D)

    # ---- MLP: Linear (+ folded eval-mode BN) -> ReLU; dropout = identity ---
    h = e
    for k in range(num_mlp):
        w = mlp_refs[2 * k][...]                                 # (in, out) bf16
        b = mlp_refs[2 * k + 1][...]                             # (1, out)  f32
        h = jnp.dot(h.astype(jnp.bfloat16), w,
                    preferred_element_type=jnp.float32) + b
        h = jnp.maximum(h, 0.0)

    # ---- final Linear over concat([x, h]) as two split NT dots -------------
    # Producing the result directly as a (1, TILE_B) lane-dense row avoids a
    # 1-lane (TILE_B, 1) output block (masked stores) and any relayout.
    h_last = h.shape[1]
    wfx = wf_ref[:, :D]                                          # (1, D)
    wfh = wf_ref[:, D:D + h_last]                                # (1, H_last)
    bf = wf_ref[:, D + h_last:D + h_last + 1]                    # (1, 1)
    nt = (((1,), (1,)), ((), ()))                                # contract last dims
    p = (jax.lax.dot_general(wfx, x, nt, preferred_element_type=jnp.float32)
         + jax.lax.dot_general(wfh, h, nt, preferred_element_type=jnp.float32)
         + bf)                                                   # (1, TB)
    out_ref[...] = p.reshape(1, 1, tile_b)


# ---------------------------------------------------------------------------
# Host wrapper
# ---------------------------------------------------------------------------
def _dcn_forward_impl(x_idx, params, field_dims, embed_dim, num_cross, mlp_dims,
                      bn_eps, single_buffer_weights):
    B, Fn = x_idx.shape
    assert Fn == len(field_dims)
    E = embed_dim
    V = sum(field_dims)
    D = Fn * E
    num_mlp = len(mlp_dims)

    # --- per-generation tiling / VMEM budget; >=2 grid steps for v7x megacore
    tile_cap, vmem_limit = _hw_budget()
    tile_b = max(128, min(tile_cap, _round_up(_cdiv(B, 2), 128)))
    num_tiles = max(2, _cdiv(B, tile_b))
    b_pad = num_tiles * tile_b

    # --- host-side prep (glue) -----------------------------------------------
    offs, acc = [], 0
    for fd in field_dims:
        offs.append(acc)
        acc += fd
    offsets = jnp.asarray(offs, dtype=jnp.int32)
    gidx = x_idx.astype(jnp.int32) + offsets[None, :]            # (B, F) global ids
    if b_pad != B:
        gidx = jnp.pad(gidx, ((0, b_pad - B), (0, 0)))           # pad rows -> id 0 (valid)

    # Block-diagonal per-field gather matrix: W_gather[f, v, f*E + j] = emb[v, j]
    eye_f = jnp.eye(Fn, dtype=jnp.float32)
    w_gather = (eye_f[:, None, :, None] *
                params["embedding"][None, :, None, :]).reshape(Fn, V, D)
    w_gather = w_gather.astype(jnp.bfloat16)

    # Fold eval-mode BatchNorm into the Linear: W' = W*s, b' = (b-m)*s + beta
    mlp_folded = []
    for (W, b, gamma, beta, mean, var) in params["mlp"]:
        scale = gamma * jax.lax.rsqrt(var + bn_eps)
        mlp_folded.append(((W * scale).astype(jnp.bfloat16),
                           (b - mean) * scale + beta))

    # Merged final-linear operand: [wf_x | wf_h | bias]  -> (1, D + H_last + 1)
    wf_all = jnp.concatenate(
        [params["final_w"][:, 0][None, :], params["final_b"]], axis=1)

    def _resident(shape):
        zeros = (0,) * len(shape)
        if single_buffer_weights:
            return pl.BlockSpec(shape, lambda i, _z=zeros: _z,
                                pipeline_mode=pl.Buffered(1))
        return pl.BlockSpec(shape, lambda i, _z=zeros: _z)

    inputs = [gidx, w_gather, params["cross_w"], params["cross_b"]]
    in_specs = [
        pl.BlockSpec((tile_b, Fn), lambda i: (i, 0)),            # streamed idx tile
        _resident(w_gather.shape),
        _resident(params["cross_w"].shape),
        _resident(params["cross_b"].shape),
    ]
    for (Wq, bq) in mlp_folded:
        inputs.extend([Wq, bq])
        in_specs.extend([_resident(Wq.shape), _resident(bq.shape)])
    inputs.append(wf_all)
    in_specs.append(_resident(wf_all.shape))

    kernel = functools.partial(_dcn_kernel, Fn, num_cross, num_mlp, D)
    out = pl.pallas_call(
        kernel,
        out_shape=jax.ShapeDtypeStruct((num_tiles, 1, tile_b), jnp.float32),
        grid=(num_tiles,),
        in_specs=in_specs,
        out_specs=pl.BlockSpec((1, 1, tile_b), lambda i: (i, 0, 0)),
        compiler_params=pltpu.CompilerParams(
            dimension_semantics=("parallel",),                   # both TCs on v7x
            vmem_limit_bytes=vmem_limit,
        ),
    )(*inputs)
    return out.reshape(-1)[:B]                                   # (B,), squeeze(1)


def dcn_forward(x_idx, params, field_dims, embed_dim, num_cross, mlp_dims,
                bn_eps=1e-5):
    try:
        return _dcn_forward_impl(x_idx, params, field_dims, embed_dim, num_cross,
                                 mlp_dims, bn_eps, single_buffer_weights=True)
    except Exception:
        # pl.Buffered(1) single-buffering unavailable on this JAX/libtpu build;
        # rerun the identical kernel with default double-buffered weights.
        return _dcn_forward_impl(x_idx, params, field_dims, embed_dim, num_cross,
                                 mlp_dims, bn_eps, single_buffer_weights=False)


# ---------------------------------------------------------------------------
# Params + plain-JAX eval-mode reference (mirrors the PyTorch forward)
# ---------------------------------------------------------------------------
def init_params(key, field_dims, embed_dim, num_cross, mlp_dims):
    D = len(field_dims) * embed_dim
    k_emb, k_cw, k_cb, k_mlp, k_fw, k_fb = jax.random.split(key, 6)
    params = {
        "embedding": jax.random.normal(
            k_emb, (sum(field_dims), embed_dim), jnp.float32) * 0.1,
        "cross_w": jax.random.normal(k_cw, (num_cross, D), jnp.float32) * 0.1,
        "cross_b": jax.random.normal(k_cb, (num_cross, D), jnp.float32) * 0.05,
    }
    mlp = []
    in_dim = D
    for out_dim in mlp_dims:
        k_mlp, kw, kb, kg, kbe, km, kv = jax.random.split(k_mlp, 7)
        W = jax.random.normal(kw, (in_dim, out_dim), jnp.float32) / jnp.sqrt(in_dim)
        b = jax.random.normal(kb, (1, out_dim), jnp.float32) * 0.05
        gamma = 1.0 + 0.1 * jax.random.normal(kg, (1, out_dim), jnp.float32)
        beta = 0.1 * jax.random.normal(kbe, (1, out_dim), jnp.float32)
        mean = 0.05 * jax.random.normal(km, (1, out_dim), jnp.float32)
        var = jax.random.uniform(kv, (1, out_dim), jnp.float32, 0.5, 1.5)
        mlp.append((W, b, gamma, beta, mean, var))
        in_dim = out_dim
    params["mlp"] = mlp
    final_in = mlp_dims[-1] + D
    params["final_w"] = jax.random.normal(
        k_fw, (final_in, 1), jnp.float32) / jnp.sqrt(final_in)
    params["final_b"] = jax.random.normal(k_fb, (1, 1), jnp.float32) * 0.05
    return params


def _embed_lookup_ref(x_idx, params, field_dims, embed_dim):
    B, Fn = x_idx.shape
    offs, acc = [], 0
    for fd in field_dims:
        offs.append(acc)
        acc += fd
    offsets = jnp.asarray(offs, dtype=jnp.int32)
    embed_x = params["embedding"][x_idx + offsets[None, :]]      # (B, F, E)
    return embed_x.reshape(B, Fn * embed_dim).astype(jnp.float32)


def _dcn_reference(x_idx, params, field_dims, embed_dim, num_cross, mlp_dims,
                   bn_eps=1e-5):
    e = _embed_lookup_ref(x_idx, params, field_dims, embed_dim)
    x0, x = e, e
    for i in range(num_cross):
        xw = jnp.sum(x * params["cross_w"][i:i + 1, :], axis=-1, keepdims=True)
        x = x0 * xw + params["cross_b"][i:i + 1, :] + x
    h = e
    for (W, b, gamma, beta, mean, var) in params["mlp"]:
        h = h @ W + b
        h = (h - mean) * jax.lax.rsqrt(var + bn_eps) * gamma + beta
        h = jnp.maximum(h, 0.0)
    xs = jnp.concatenate([x, h], axis=1)
    return (xs @ params["final_w"] + params["final_b"])[:, 0]


if __name__ == "__main__":
    # Small, deterministic configuration.
    field_dims = [5, 7, 3, 6]     # 4 fields, vocab = 21
    embed_dim = 8                 # embed_output_dim = 32
    num_cross = 3
    mlp_dims = (32, 16)
    batch = 8

    key = jax.random.PRNGKey(0)
    k_params, k_idx = jax.random.split(key)

    params = init_params(k_params, field_dims, embed_dim, num_cross, mlp_dims)
    x_idx = jax.random.randint(
        k_idx, (batch, len(field_dims)), 0, jnp.asarray(field_dims), dtype=jnp.int32)

    out = dcn_forward(x_idx, params, field_dims, embed_dim, num_cross, mlp_dims)
    out = jax.block_until_ready(out)
    assert out.shape == (batch,), out.shape

    ref = jax.block_until_ready(
        _dcn_reference(x_idx, params, field_dims, embed_dim, num_cross, mlp_dims))
    # bf16 MXU weights vs. the f32 reference -> relaxed tolerance.
    assert jnp.allclose(out, ref, rtol=2e-2, atol=2e-2), (out, ref)

    print("KERNEL_OK")
</pallas_src>

<mosaic_0001>
module attributes {stable_mosaic.version = 11 : i64} {
  func.func @_dcn_kernel(%arg0: i32, %arg1: memref<128x4xi32, #tpu.memory_space<vmem>>, %arg2: memref<4x21x32xbf16, #tpu.memory_space<vmem>>, %arg3: memref<3x32xf32, #tpu.memory_space<vmem>>, %arg4: memref<3x32xf32, #tpu.memory_space<vmem>>, %arg5: memref<32x32xbf16, #tpu.memory_space<vmem>>, %arg6: memref<1x32xf32, #tpu.memory_space<vmem>>, %arg7: memref<32x16xbf16, #tpu.memory_space<vmem>>, %arg8: memref<1x16xf32, #tpu.memory_space<vmem>>, %arg9: memref<1x49xf32, #tpu.memory_space<vmem>>, %arg10: memref<1x1x128xf32, #tpu.memory_space<vmem>>) attributes {dimension_semantics = [#tpu.dimension_semantics<parallel>], iteration_bounds = array<i64: 2>, scalar_prefetch = 0 : i64, scratch_operands = 0 : i64, tpu.core_type = #tpu.core_type<tc>, window_params = [{transform_indices = @transform_0, window_bounds = array<i64: 128, 4>}, {pipeline_mode = #tpu.pipeline_mode<synchronous>, transform_indices = @transform_1, window_bounds = array<i64: 4, 21, 32>}, {pipeline_mode = #tpu.pipeline_mode<synchronous>, transform_indices = @transform_2, window_bounds = array<i64: 3, 32>}, {pipeline_mode = #tpu.pipeline_mode<synchronous>, transform_indices = @transform_3, window_bounds = array<i64: 3, 32>}, {pipeline_mode = #tpu.pipeline_mode<synchronous>, transform_indices = @transform_4, window_bounds = array<i64: 32, 32>}, {pipeline_mode = #tpu.pipeline_mode<synchronous>, transform_indices = @transform_5, window_bounds = array<i64: 1, 32>}, {pipeline_mode = #tpu.pipeline_mode<synchronous>, transform_indices = @transform_6, window_bounds = array<i64: 32, 16>}, {pipeline_mode = #tpu.pipeline_mode<synchronous>, transform_indices = @transform_7, window_bounds = array<i64: 1, 16>}, {pipeline_mode = #tpu.pipeline_mode<synchronous>, transform_indices = @transform_8, window_bounds = array<i64: 1, 49>}, {transform_indices = @transform_9, window_bounds = array<i64: 1, 1, 128>}]} {
    %c0 = arith.constant 0 : index
    %c0_0 = arith.constant 0 : index
    %0 = vector.load %arg1[%c0, %c0_0] : memref<128x4xi32, #tpu.memory_space<vmem>>, vector<128x4xi32>
    %cst = arith.constant 0.000000e+00 : f32
    %1 = vector.broadcast %cst : f32 to vector<128x32xf32>
    %2 = vector.extract_strided_slice %0 {offsets = [0, 0], sizes = [128, 1], strides = [1, 1]} : vector<128x4xi32> to vector<128x1xi32>
    %3 = tpu.iota {dimensions = array<i32: 1>} : vector<1x21xi32>
    %4 = vector.broadcast %2 : vector<128x1xi32> to vector<128x21xi32>
    %5 = vector.broadcast %3 : vector<1x21xi32> to vector<128x21xi32>
    %6 = arith.cmpi eq, %4, %5 : vector<128x21xi32>
    %7 = arith.extui %6 : vector<128x21xi1> to vector<128x21xi32>
    %8 = arith.sitofp %7 : vector<128x21xi32> to vector<128x21xf32>
    %9 = arith.truncf %8 : vector<128x21xf32> to vector<128x21xbf16>
    %c0_1 = arith.constant 0 : index
    %c0_2 = arith.constant 0 : index
    %c0_3 = arith.constant 0 : index
    %10 = vector.load %arg2[%c0_1, %c0_2, %c0_3] : memref<4x21x32xbf16, #tpu.memory_space<vmem>>, vector<1x21x32xbf16>
    %11 = vector.shape_cast %10 : vector<1x21x32xbf16> to vector<21x32xbf16>
    %cst_4 = arith.constant dense<0.000000e+00> : vector<128x32xf32>
    %12 = tpu.matmul %9, %11, %cst_4 {dimension_numbers = #tpu.dot_dimension_numbers<[1], [0], [0], [1], [0, 0, 1, 1], [], []>} : vector<128x21xbf16>, vector<21x32xbf16>, vector<128x32xf32> -> vector<128x32xf32>
    %13 = arith.addf %1, %12 : vector<128x32xf32>
    %14 = vector.extract_strided_slice %0 {offsets = [0, 1], sizes = [128, 1], strides = [1, 1]} : vector<128x4xi32> to vector<128x1xi32>
    %15 = tpu.iota {dimensions = array<i32: 1>} : vector<1x21xi32>
    %16 = vector.broadcast %14 : vector<128x1xi32> to vector<128x21xi32>
    %17 = vector.broadcast %15 : vector<1x21xi32> to vector<128x21xi32>
    %18 = arith.cmpi eq, %16, %17 : vector<128x21xi32>
    %19 = arith.extui %18 : vector<128x21xi1> to vector<128x21xi32>
    %20 = arith.sitofp %19 : vector<128x21xi32> to vector<128x21xf32>
    %21 = arith.truncf %20 : vector<128x21xf32> to vector<128x21xbf16>
    %c1 = arith.constant 1 : index
    %c0_5 = arith.constant 0 : index
    %c0_6 = arith.constant 0 : index
    %22 = vector.load %arg2[%c1, %c0_5, %c0_6] : memref<4x21x32xbf16, #tpu.memory_space<vmem>>, vector<1x21x32xbf16>
    %23 = vector.shape_cast %22 : vector<1x21x32xbf16> to vector<21x32xbf16>
    %cst_7 = arith.constant dense<0.000000e+00> : vector<128x32xf32>
    %24 = tpu.matmul %21, %23, %cst_7 {dimension_numbers = #tpu.dot_dimension_numbers<[1], [0], [0], [1], [0, 0, 1, 1], [], []>} : vector<128x21xbf16>, vector<21x32xbf16>, vector<128x32xf32> -> vector<128x32xf32>
    %25 = arith.addf %13, %24 : vector<128x32xf32>
    %26 = vector.extract_strided_slice %0 {offsets = [0, 2], sizes = [128, 1], strides = [1, 1]} : vector<128x4xi32> to vector<128x1xi32>
    %27 = tpu.iota {dimensions = array<i32: 1>} : vector<1x21xi32>
    %28 = vector.broadcast %26 : vector<128x1xi32> to vector<128x21xi32>
    %29 = vector.broadcast %27 : vector<1x21xi32> to vector<128x21xi32>
    %30 = arith.cmpi eq, %28, %29 : vector<128x21xi32>
    %31 = arith.extui %30 : vector<128x21xi1> to vector<128x21xi32>
    %32 = arith.sitofp %31 : vector<128x21xi32> to vector<128x21xf32>
    %33 = arith.truncf %32 : vector<128x21xf32> to vector<128x21xbf16>
    %c2 = arith.constant 2 : index
    %c0_8 = arith.constant 0 : index
    %c0_9 = arith.constant 0 : index
    %34 = vector.load %arg2[%c2, %c0_8, %c0_9] : memref<4x21x32xbf16, #tpu.memory_space<vmem>>, vector<1x21x32xbf16>
    %35 = vector.shape_cast %34 : vector<1x21x32xbf16> to vector<21x32xbf16>
    %cst_10 = arith.constant dense<0.000000e+00> : vector<128x32xf32>
    %36 = tpu.matmul %33, %35, %cst_10 {dimension_numbers = #tpu.dot_dimension_numbers<[1], [0], [0], [1], [0, 0, 1, 1], [], []>} : vector<128x21xbf16>, vector<21x32xbf16>, vector<128x32xf32> -> vector<128x32xf32>
    %37 = arith.addf %25, %36 : vector<128x32xf32>
    %38 = vector.extract_strided_slice %0 {offsets = [0, 3], sizes = [128, 1], strides = [1, 1]} : vector<128x4xi32> to vector<128x1xi32>
    %39 = tpu.iota {dimensions = array<i32: 1>} : vector<1x21xi32>
    %40 = vector.broadcast %38 : vector<128x1xi32> to vector<128x21xi32>
    %41 = vector.broadcast %39 : vector<1x21xi32> to vector<128x21xi32>
    %42 = arith.cmpi eq, %40, %41 : vector<128x21xi32>
    %43 = arith.extui %42 : vector<128x21xi1> to vector<128x21xi32>
    %44 = arith.sitofp %43 : vector<128x21xi32> to vector<128x21xf32>
    %45 = arith.truncf %44 : vector<128x21xf32> to vector<128x21xbf16>
    %c3 = arith.constant 3 : index
    %c0_11 = arith.constant 0 : index
    %c0_12 = arith.constant 0 : index
    %46 = vector.load %arg2[%c3, %c0_11, %c0_12] : memref<4x21x32xbf16, #tpu.memory_space<vmem>>, vector<1x21x32xbf16>
    %47 = vector.shape_cast %46 : vector<1x21x32xbf16> to vector<21x32xbf16>
    %cst_13 = arith.constant dense<0.000000e+00> : vector<128x32xf32>
    %48 = tpu.matmul %45, %47, %cst_13 {dimension_numbers = #tpu.dot_dimension_numbers<[1], [0], [0], [1], [0, 0, 1, 1], [], []>} : vector<128x21xbf16>, vector<21x32xbf16>, vector<128x32xf32> -> vector<128x32xf32>
    %49 = arith.addf %37, %48 : vector<128x32xf32>
    %c0_14 = arith.constant 0 : index
    %c0_15 = arith.constant 0 : index
    %50 = vector.load %arg3[%c0_14, %c0_15] : memref<3x32xf32, #tpu.memory_space<vmem>>, vector<1x32xf32>
    %51 = vector.broadcast %50 : vector<1x32xf32> to vector<128x32xf32>
    %52 = arith.mulf %49, %51 : vector<128x32xf32>
    %cst_16 = arith.constant dense<0.000000e+00> : vector<128xf32>
    %53 = vector.multi_reduction <add>, %52, %cst_16 [1] : vector<128x32xf32> to vector<128xf32>
    %54 = vector.shape_cast %53 : vector<128xf32> to vector<128x1xf32>
    %55 = vector.broadcast %54 : vector<128x1xf32> to vector<128x32xf32>
    %56 = arith.mulf %49, %55 : vector<128x32xf32>
    %c0_17 = arith.constant 0 : index
    %c0_18 = arith.constant 0 : index
    %57 = vector.load %arg4[%c0_17, %c0_18] : memref<3x32xf32, #tpu.memory_space<vmem>>, vector<1x32xf32>
    %58 = vector.broadcast %57 : vector<1x32xf32> to vector<128x32xf32>
    %59 = arith.addf %56, %58 : vector<128x32xf32>
    %60 = arith.addf %59, %49 : vector<128x32xf32>
    %c1_19 = arith.constant 1 : index
    %c0_20 = arith.constant 0 : index
    %61 = vector.load %arg3[%c1_19, %c0_20] : memref<3x32xf32, #tpu.memory_space<vmem>>, vector<1x32xf32>
    %62 = vector.broadcast %61 : vector<1x32xf32> to vector<128x32xf32>
    %63 = arith.mulf %60, %62 : vector<128x32xf32>
    %cst_21 = arith.constant dense<0.000000e+00> : vector<128xf32>
    %64 = vector.multi_reduction <add>, %63, %cst_21 [1] : vector<128x32xf32> to vector<128xf32>
    %65 = vector.shape_cast %64 : vector<128xf32> to vector<128x1xf32>
    %66 = vector.broadcast %65 : vector<128x1xf32> to vector<128x32xf32>
    %67 = arith.mulf %49, %66 : vector<128x32xf32>
    %c1_22 = arith.constant 1 : index
    %c0_23 = arith.constant 0 : index
    %68 = vector.load %arg4[%c1_22, %c0_23] : memref<3x32xf32, #tpu.memory_space<vmem>>, vector<1x32xf32>
    %69 = vector.broadcast %68 : vector<1x32xf32> to vector<128x32xf32>
    %70 = arith.addf %67, %69 : vector<128x32xf32>
    %71 = arith.addf %70, %60 : vector<128x32xf32>
    %c2_24 = arith.constant 2 : index
    %c0_25 = arith.constant 0 : index
    %72 = vector.load %arg3[%c2_24, %c0_25] : memref<3x32xf32, #tpu.memory_space<vmem>>, vector<1x32xf32>
    %73 = vector.broadcast %72 : vector<1x32xf32> to vector<128x32xf32>
    %74 = arith.mulf %71, %73 : vector<128x32xf32>
    %cst_26 = arith.constant dense<0.000000e+00> : vector<128xf32>
    %75 = vector.multi_reduction <add>, %74, %cst_26 [1] : vector<128x32xf32> to vector<128xf32>
    %76 = vector.shape_cast %75 : vector<128xf32> to vector<128x1xf32>
    %77 = vector.broadcast %76 : vector<128x1xf32> to vector<128x32xf32>
    %78 = arith.mulf %49, %77 : vector<128x32xf32>
    %c2_27 = arith.constant 2 : index
    %c0_28 = arith.constant 0 : index
    %79 = vector.load %arg4[%c2_27, %c0_28] : memref<3x32xf32, #tpu.memory_space<vmem>>, vector<1x32xf32>
    %80 = vector.broadcast %79 : vector<1x32xf32> to vector<128x32xf32>
    %81 = arith.addf %78, %80 : vector<128x32xf32>
    %82 = arith.addf %81, %71 : vector<128x32xf32>
    %c0_29 = arith.constant 0 : index
    %c0_30 = arith.constant 0 : index
    %83 = vector.load %arg5[%c0_29, %c0_30] : memref<32x32xbf16, #tpu.memory_space<vmem>>, vector<32x32xbf16>
    %c0_31 = arith.constant 0 : index
    %c0_32 = arith.constant 0 : index
    %84 = vector.load %arg6[%c0_31, %c0_32] : memref<1x32xf32, #tpu.memory_space<vmem>>, vector<1x32xf32>
    %85 = arith.truncf %49 : vector<128x32xf32> to vector<128x32xbf16>
    %cst_33 = arith.constant dense<0.000000e+00> : vector<128x32xf32>
    %86 = tpu.matmul %85, %83, %cst_33 {dimension_numbers = #tpu.dot_dimension_numbers<[1], [0], [0], [1], [0, 0, 1, 1], [], []>} : vector<128x32xbf16>, vector<32x32xbf16>, vector<128x32xf32> -> vector<128x32xf32>
    %87 = vector.broadcast %84 : vector<1x32xf32> to vector<128x32xf32>
    %88 = arith.addf %86, %87 : vector<128x32xf32>
    %cst_34 = arith.constant 0.000000e+00 : f32
    %89 = vector.broadcast %cst_34 : f32 to vector<128x32xf32>
    %90 = arith.maximumf %88, %89 : vector<128x32xf32>
    %c0_35 = arith.constant 0 : index
    %c0_36 = arith.constant 0 : index
    %91 = vector.load %arg7[%c0_35, %c0_36] : memref<32x16xbf16, #tpu.memory_space<vmem>>, vector<32x16xbf16>
    %c0_37 = arith.constant 0 : index
    %c0_38 = arith.constant 0 : index
    %92 = vector.load %arg8[%c0_37, %c0_38] : memref<1x16xf32, #tpu.memory_space<vmem>>, vector<1x16xf32>
    %93 = arith.truncf %90 : vector<128x32xf32> to vector<128x32xbf16>
    %cst_39 = arith.constant dense<0.000000e+00> : vector<128x16xf32>
    %94 = tpu.matmul %93, %91, %cst_39 {dimension_numbers = #tpu.dot_dimension_numbers<[1], [0], [0], [1], [0, 0, 1, 1], [], []>} : vector<128x32xbf16>, vector<32x16xbf16>, vector<128x16xf32> -> vector<128x16xf32>
    %95 = vector.broadcast %92 : vector<1x16xf32> to vector<128x16xf32>
    %96 = arith.addf %94, %95 : vector<128x16xf32>
    %cst_40 = arith.constant 0.000000e+00 : f32
    %97 = vector.broadcast %cst_40 : f32 to vector<128x16xf32>
    %98 = arith.maximumf %96, %97 : vector<128x16xf32>
    %c0_41 = arith.constant 0 : index
    %c0_42 = arith.constant 0 : index
    %99 = vector.load %arg9[%c0_41, %c0_42] : memref<1x49xf32, #tpu.memory_space<vmem>>, vector<1x32xf32>
    %c0_43 = arith.constant 0 : index
    %c32 = arith.constant 32 : index
    %100 = vector.load %arg9[%c0_43, %c32] : memref<1x49xf32, #tpu.memory_space<vmem>>, vector<1x16xf32>
    %c0_44 = arith.constant 0 : index
    %c48 = arith.constant 48 : index
    %101 = vector.load %arg9[%c0_44, %c48] : memref<1x49xf32, #tpu.memory_space<vmem>>, vector<1x1xf32>
    %cst_45 = arith.constant dense<0.000000e+00> : vector<1x128xf32>
    %102 = tpu.matmul %99, %82, %cst_45 {dimension_numbers = #tpu.dot_dimension_numbers<[1], [1], [0], [0], [0, 0, 1, 0], [], []>} : vector<1x32xf32>, vector<128x32xf32>, vector<1x128xf32> -> vector<1x128xf32>
    %cst_46 = arith.constant dense<0.000000e+00> : vector<1x128xf32>
    %103 = tpu.matmul %100, %98, %cst_46 {dimension_numbers = #tpu.dot_dimension_numbers<[1], [1], [0], [0], [0, 0, 1, 0], [], []>} : vector<1x16xf32>, vector<128x16xf32>, vector<1x128xf32> -> vector<1x128xf32>
    %104 = arith.addf %102, %103 : vector<1x128xf32>
    %105 = vector.broadcast %101 : vector<1x1xf32> to vector<1x128xf32>
    %106 = arith.addf %104, %105 : vector<1x128xf32>
    %107 = vector.shape_cast %106 : vector<1x128xf32> to vector<1x1x128xf32>
    %c0_47 = arith.constant 0 : index
    %c0_48 = arith.constant 0 : index
    %c0_49 = arith.constant 0 : index
    %108 = vector.load %arg10[%c0_47, %c0_48, %c0_49] : memref<1x1x128xf32, #tpu.memory_space<vmem>>, vector<1x1x128xf32>
    tpu.vector_store %arg10[%c0_47, %c0_48, %c0_49], %107 {strides = array<i32>} : memref<1x1x128xf32, #tpu.memory_space<vmem>>, vector<1x1x128xf32>,
    return
  }
  func.func @transform_0(%arg0: i32) -> (i32, i32) {
    %c0_i32 = arith.constant 0 : i32
    %c0_i32_0 = arith.constant 0 : i32
    return %arg0, %c0_i32 : i32, i32
  }
  func.func @transform_1(%arg0: i32) -> (i32, i32, i32) {
    %c0_i32 = arith.constant 0 : i32
    %c0_i32_0 = arith.constant 0 : i32
    %c0_i32_1 = arith.constant 0 : i32
    %c0_i32_2 = arith.constant 0 : i32
    return %c0_i32, %c0_i32_0, %c0_i32_1 : i32, i32, i32
  }
  func.func @transform_2(%arg0: i32) -> (i32, i32) {
    %c0_i32 = arith.constant 0 : i32
    %c0_i32_0 = arith.constant 0 : i32
    %c0_i32_1 = arith.constant 0 : i32
    return %c0_i32, %c0_i32_0 : i32, i32
  }
  func.func @transform_3(%arg0: i32) -> (i32, i32) {
    %c0_i32 = arith.constant 0 : i32
    %c0_i32_0 = arith.constant 0 : i32
    %c0_i32_1 = arith.constant 0 : i32
    return %c0_i32, %c0_i32_0 : i32, i32
  }
  func.func @transform_4(%arg0: i32) -> (i32, i32) {
    %c0_i32 = arith.constant 0 : i32
    %c0_i32_0 = arith.constant 0 : i32
    %c0_i32_1 = arith.constant 0 : i32
    return %c0_i32, %c0_i32_0 : i32, i32
  }
  func.func @transform_5(%arg0: i32) -> (i32, i32) {
    %c0_i32 = arith.constant 0 : i32
    %c0_i32_0 = arith.constant 0 : i32
    %c0_i32_1 = arith.constant 0 : i32
    return %c0_i32, %c0_i32_0 : i32, i32
  }
  func.func @transform_6(%arg0: i32) -> (i32, i32) {
    %c0_i32 = arith.constant 0 : i32
    %c0_i32_0 = arith.constant 0 : i32
    %c0_i32_1 = arith.constant 0 : i32
    return %c0_i32, %c0_i32_0 : i32, i32
  }
  func.func @transform_7(%arg0: i32) -> (i32, i32) {
    %c0_i32 = arith.constant 0 : i32
    %c0_i32_0 = arith.constant 0 : i32
    %c0_i32_1 = arith.constant 0 : i32
    return %c0_i32, %c0_i32_0 : i32, i32
  }
  func.func @transform_8(%arg0: i32) -> (i32, i32) {
    %c0_i32 = arith.constant 0 : i32
    %c0_i32_0 = arith.constant 0 : i32
    %c0_i32_1 = arith.constant 0 : i32
    return %c0_i32, %c0_i32_0 : i32, i32
  }
  func.func @transform_9(%arg0: i32) -> (i32, i32, i32) {
    %c0_i32 = arith.constant 0 : i32
    %c0_i32_0 = arith.constant 0 : i32
    %c0_i32_1 = arith.constant 0 : i32
    return %arg0, %c0_i32, %c0_i32_0 : i32, i32, i32
  }
}

module attributes {stable_mosaic.version = 11 : i64} {
  func.func @_dcn_kernel(%arg0: i32, %arg1: memref<128x4xi32, #tpu.memory_space<vmem>>, %arg2: memref<4x21x32xbf16, #tpu.memory_space<vmem>>, %arg3: memref<3x32xf32, #tpu.memory_space<vmem>>, %arg4: memref<3x32xf32, #tpu.memory_space<vmem>>, %arg5: memref<32x32xbf16, #tpu.memory_space<vmem>>, %arg6: memref<1x32xf32, #tpu.memory_space<vmem>>, %arg7: memref<32x16xbf16, #tpu.memory_space<vmem>>, %arg8: memref<1x16xf32, #tpu.memory_space<vmem>>, %arg9: memref<1x49xf32, #tpu.memory_space<vmem>>, %arg10: memref<1x1x128xf32, #tpu.memory_space<vmem>>) attributes {dimension_semantics = [#tpu.dimension_semantics<parallel>], iteration_bounds = array<i64: 2>, scalar_prefetch = 0 : i64, scratch_operands = 0 : i64, tpu.core_type = #tpu.core_type<tc>, window_params = [{transform_indices = @transform_0, window_bounds = array<i64: 128, 4>}, {pipeline_mode = #tpu.pipeline_mode<synchronous>, transform_indices = @transform_1, window_bounds = array<i64: 4, 21, 32>}, {pipeline_mode = #tpu.pipeline_mode<synchronous>, transform_indices = @transform_2, window_bounds = array<i64: 3, 32>}, {pipeline_mode = #tpu.pipeline_mode<synchronous>, transform_indices = @transform_3, window_bounds = array<i64: 3, 32>}, {pipeline_mode = #tpu.pipeline_mode<synchronous>, transform_indices = @transform_4, window_bounds = array<i64: 32, 32>}, {pipeline_mode = #tpu.pipeline_mode<synchronous>, transform_indices = @transform_5, window_bounds = array<i64: 1, 32>}, {pipeline_mode = #tpu.pipeline_mode<synchronous>, transform_indices = @transform_6, window_bounds = array<i64: 32, 16>}, {pipeline_mode = #tpu.pipeline_mode<synchronous>, transform_indices = @transform_7, window_bounds = array<i64: 1, 16>}, {pipeline_mode = #tpu.pipeline_mode<synchronous>, transform_indices = @transform_8, window_bounds = array<i64: 1, 49>}, {transform_indices = @transform_9, window_bounds = array<i64: 1, 1, 128>}]} {
    %c0 = arith.constant 0 : index
    %c0_0 = arith.constant 0 : index
    %0 = vector.load %arg1[%c0, %c0_0] : memref<128x4xi32, #tpu.memory_space<vmem>>, vector<128x4xi32>
    %cst = arith.constant 0.000000e+00 : f32
    %1 = vector.broadcast %cst : f32 to vector<128x32xf32>
    %2 = vector.extract_strided_slice %0 {offsets = [0, 0], sizes = [128, 1], strides = [1, 1]} : vector<128x4xi32> to vector<128x1xi32>
    %3 = tpu.iota {dimensions = array<i32: 1>} : vector<1x21xi32>
    %4 = vector.broadcast %2 : vector<128x1xi32> to vector<128x21xi32>
    %5 = vector.broadcast %3 : vector<1x21xi32> to vector<128x21xi32>
    %6 = arith.cmpi eq, %4, %5 : vector<128x21xi32>
    %7 = arith.extui %6 : vector<128x21xi1> to vector<128x21xi32>
    %8 = arith.sitofp %7 : vector<128x21xi32> to vector<128x21xf32>
    %9 = arith.truncf %8 : vector<128x21xf32> to vector<128x21xbf16>
    %c0_1 = arith.constant 0 : index
    %c0_2 = arith.constant 0 : index
    %c0_3 = arith.constant 0 : index
    %10 = vector.load %arg2[%c0_1, %c0_2, %c0_3] : memref<4x21x32xbf16, #tpu.memory_space<vmem>>, vector<1x21x32xbf16>
    %11 = vector.shape_cast %10 : vector<1x21x32xbf16> to vector<21x32xbf16>
    %cst_4 = arith.constant dense<0.000000e+00> : vector<128x32xf32>
    %12 = tpu.matmul %9, %11, %cst_4 {dimension_numbers = #tpu.dot_dimension_numbers<[1], [0], [0], [1], [0, 0, 1, 1], [], []>} : vector<128x21xbf16>, vector<21x32xbf16>, vector<128x32xf32> -> vector<128x32xf32>
    %13 = arith.addf %1, %12 : vector<128x32xf32>
    %14 = vector.extract_strided_slice %0 {offsets = [0, 1], sizes = [128, 1], strides = [1, 1]} : vector<128x4xi32> to vector<128x1xi32>
    %15 = tpu.iota {dimensions = array<i32: 1>} : vector<1x21xi32>
    %16 = vector.broadcast %14 : vector<128x1xi32> to vector<128x21xi32>
    %17 = vector.broadcast %15 : vector<1x21xi32> to vector<128x21xi32>
    %18 = arith.cmpi eq, %16, %17 : vector<128x21xi32>
    %19 = arith.extui %18 : vector<128x21xi1> to vector<128x21xi32>
    %20 = arith.sitofp %19 : vector<128x21xi32> to vector<128x21xf32>
    %21 = arith.truncf %20 : vector<128x21xf32> to vector<128x21xbf16>
    %c1 = arith.constant 1 : index
    %c0_5 = arith.constant 0 : index
    %c0_6 = arith.constant 0 : index
    %22 = vector.load %arg2[%c1, %c0_5, %c0_6] : memref<4x21x32xbf16, #tpu.memory_space<vmem>>, vector<1x21x32xbf16>
    %23 = vector.shape_cast %22 : vector<1x21x32xbf16> to vector<21x32xbf16>
    %cst_7 = arith.constant dense<0.000000e+00> : vector<128x32xf32>
    %24 = tpu.matmul %21, %23, %cst_7 {dimension_numbers = #tpu.dot_dimension_numbers<[1], [0], [0], [1], [0, 0, 1, 1], [], []>} : vector<128x21xbf16>, vector<21x32xbf16>, vector<128x32xf32> -> vector<128x32xf32>
    %25 = arith.addf %13, %24 : vector<128x32xf32>
    %26 = vector.extract_strided_slice %0 {offsets = [0, 2], sizes = [128, 1], strides = [1, 1]} : vector<128x4xi32> to vector<128x1xi32>
    %27 = tpu.iota {dimensions = array<i32: 1>} : vector<1x21xi32>
    %28 = vector.broadcast %26 : vector<128x1xi32> to vector<128x21xi32>
    %29 = vector.broadcast %27 : vector<1x21xi32> to vector<128x21xi32>
    %30 = arith.cmpi eq, %28, %29 : vector<128x21xi32>
    %31 = arith.extui %30 : vector<128x21xi1> to vector<128x21xi32>
    %32 = arith.sitofp %31 : vector<128x21xi32> to vector<128x21xf32>
    %33 = arith.truncf %32 : vector<128x21xf32> to vector<128x21xbf16>
    %c2 = arith.constant 2 : index
    %c0_8 = arith.constant 0 : index
    %c0_9 = arith.constant 0 : index
    %34 = vector.load %arg2[%c2, %c0_8, %c0_9] : memref<4x21x32xbf16, #tpu.memory_space<vmem>>, vector<1x21x32xbf16>
    %35 = vector.shape_cast %34 : vector<1x21x32xbf16> to vector<21x32xbf16>
    %cst_10 = arith.constant dense<0.000000e+00> : vector<128x32xf32>
    %36 = tpu.matmul %33, %35, %cst_10 {dimension_numbers = #tpu.dot_dimension_numbers<[1], [0], [0], [1], [0, 0, 1, 1], [], []>} : vector<128x21xbf16>, vector<21x32xbf16>, vector<128x32xf32> -> vector<128x32xf32>
    %37 = arith.addf %25, %36 : vector<128x32xf32>
    %38 = vector.extract_strided_slice %0 {offsets = [0, 3], sizes = [128, 1], strides = [1, 1]} : vector<128x4xi32> to vector<128x1xi32>
    %39 = tpu.iota {dimensions = array<i32: 1>} : vector<1x21xi32>
    %40 = vector.broadcast %38 : vector<128x1xi32> to vector<128x21xi32>
    %41 = vector.broadcast %39 : vector<1x21xi32> to vector<128x21xi32>
    %42 = arith.cmpi eq, %40, %41 : vector<128x21xi32>
    %43 = arith.extui %42 : vector<128x21xi1> to vector<128x21xi32>
    %44 = arith.sitofp %43 : vector<128x21xi32> to vector<128x21xf32>
    %45 = arith.truncf %44 : vector<128x21xf32> to vector<128x21xbf16>
    %c3 = arith.constant 3 : index
    %c0_11 = arith.constant 0 : index
    %c0_12 = arith.constant 0 : index
    %46 = vector.load %arg2[%c3, %c0_11, %c0_12] : memref<4x21x32xbf16, #tpu.memory_space<vmem>>, vector<1x21x32xbf16>
    %47 = vector.shape_cast %46 : vector<1x21x32xbf16> to vector<21x32xbf16>
    %cst_13 = arith.constant dense<0.000000e+00> : vector<128x32xf32>
    %48 = tpu.matmul %45, %47, %cst_13 {dimension_numbers = #tpu.dot_dimension_numbers<[1], [0], [0], [1], [0, 0, 1, 1], [], []>} : vector<128x21xbf16>, vector<21x32xbf16>, vector<128x32xf32> -> vector<128x32xf32>
    %49 = arith.addf %37, %48 : vector<128x32xf32>
    %c0_14 = arith.constant 0 : index
    %c0_15 = arith.constant 0 : index
    %50 = vector.load %arg3[%c0_14, %c0_15] : memref<3x32xf32, #tpu.memory_space<vmem>>, vector<1x32xf32>
    %51 = vector.broadcast %50 : vector<1x32xf32> to vector<128x32xf32>
    %52 = arith.mulf %49, %51 : vector<128x32xf32>
    %cst_16 = arith.constant dense<0.000000e+00> : vector<128xf32>
    %53 = vector.multi_reduction <add>, %52, %cst_16 [1] : vector<128x32xf32> to vector<128xf32>
    %54 = vector.shape_cast %53 : vector<128xf32> to vector<128x1xf32>
    %55 = vector.broadcast %54 : vector<128x1xf32> to vector<128x32xf32>
    %56 = arith.mulf %49, %55 : vector<128x32xf32>
    %c0_17 = arith.constant 0 : index
    %c0_18 = arith.constant 0 : index
    %57 = vector.load %arg4[%c0_17, %c0_18] : memref<3x32xf32, #tpu.memory_space<vmem>>, vector<1x32xf32>
    %58 = vector.broadcast %57 : vector<1x32xf32> to vector<128x32xf32>
    %59 = arith.addf %56, %58 : vector<128x32xf32>
    %60 = arith.addf %59, %49 : vector<128x32xf32>
    %c1_19 = arith.constant 1 : index
    %c0_20 = arith.constant 0 : index
    %61 = vector.load %arg3[%c1_19, %c0_20] : memref<3x32xf32, #tpu.memory_space<vmem>>, vector<1x32xf32>
    %62 = vector.broadcast %61 : vector<1x32xf32> to vector<128x32xf32>
    %63 = arith.mulf %60, %62 : vector<128x32xf32>
    %cst_21 = arith.constant dense<0.000000e+00> : vector<128xf32>
    %64 = vector.multi_reduction <add>, %63, %cst_21 [1] : vector<128x32xf32> to vector<128xf32>
    %65 = vector.shape_cast %64 : vector<128xf32> to vector<128x1xf32>
    %66 = vector.broadcast %65 : vector<128x1xf32> to vector<128x32xf32>
    %67 = arith.mulf %49, %66 : vector<128x32xf32>
    %c1_22 = arith.constant 1 : index
    %c0_23 = arith.constant 0 : index
    %68 = vector.load %arg4[%c1_22, %c0_23] : memref<3x32xf32, #tpu.memory_space<vmem>>, vector<1x32xf32>
    %69 = vector.broadcast %68 : vector<1x32xf32> to vector<128x32xf32>
    %70 = arith.addf %67, %69 : vector<128x32xf32>
    %71 = arith.addf %70, %60 : vector<128x32xf32>
    %c2_24 = arith.constant 2 : index
    %c0_25 = arith.constant 0 : index
    %72 = vector.load %arg3[%c2_24, %c0_25] : memref<3x32xf32, #tpu.memory_space<vmem>>, vector<1x32xf32>
    %73 = vector.broadcast %72 : vector<1x32xf32> to vector<128x32xf32>
    %74 = arith.mulf %71, %73 : vector<128x32xf32>
    %cst_26 = arith.constant dense<0.000000e+00> : vector<128xf32>
    %75 = vector.multi_reduction <add>, %74, %cst_26 [1] : vector<128x32xf32> to vector<128xf32>
    %76 = vector.shape_cast %75 : vector<128xf32> to vector<128x1xf32>
    %77 = vector.broadcast %76 : vector<128x1xf32> to vector<128x32xf32>
    %78 = arith.mulf %49, %77 : vector<128x32xf32>
    %c2_27 = arith.constant 2 : index
    %c0_28 = arith.constant 0 : index
    %79 = vector.load %arg4[%c2_27, %c0_28] : memref<3x32xf32, #tpu.memory_space<vmem>>, vector<1x32xf32>
    %80 = vector.broadcast %79 : vector<1x32xf32> to vector<128x32xf32>
    %81 = arith.addf %78, %80 : vector<128x32xf32>
    %82 = arith.addf %81, %71 : vector<128x32xf32>
    %c0_29 = arith.constant 0 : index
    %c0_30 = arith.constant 0 : index
    %83 = vector.load %arg5[%c0_29, %c0_30] : memref<32x32xbf16, #tpu.memory_space<vmem>>, vector<32x32xbf16>
    %c0_31 = arith.constant 0 : index
    %c0_32 = arith.constant 0 : index
    %84 = vector.load %arg6[%c0_31, %c0_32] : memref<1x32xf32, #tpu.memory_space<vmem>>, vector<1x32xf32>
    %85 = arith.truncf %49 : vector<128x32xf32> to vector<128x32xbf16>
    %cst_33 = arith.constant dense<0.000000e+00> : vector<128x32xf32>
    %86 = tpu.matmul %85, %83, %cst_33 {dimension_numbers = #tpu.dot_dimension_numbers<[1], [0], [0], [1], [0, 0, 1, 1], [], []>} : vector<128x32xbf16>, vector<32x32xbf16>, vector<128x32xf32> -> vector<128x32xf32>
    %87 = vector.broadcast %84 : vector<1x32xf32> to vector<128x32xf32>
    %88 = arith.addf %86, %87 : vector<128x32xf32>
    %cst_34 = arith.constant 0.000000e+00 : f32
    %89 = vector.broadcast %cst_34 : f32 to vector<128x32xf32>
    %90 = arith.maximumf %88, %89 : vector<128x32xf32>
    %c0_35 = arith.constant 0 : index
    %c0_36 = arith.constant 0 : index
    %91 = vector.load %arg7[%c0_35, %c0_36] : memref<32x16xbf16, #tpu.memory_space<vmem>>, vector<32x16xbf16>
    %c0_37 = arith.constant 0 : index
    %c0_38 = arith.constant 0 : index
    %92 = vector.load %arg8[%c0_37, %c0_38] : memref<1x16xf32, #tpu.memory_space<vmem>>, vector<1x16xf32>
    %93 = arith.truncf %90 : vector<128x32xf32> to vector<128x32xbf16>
    %cst_39 = arith.constant dense<0.000000e+00> : vector<128x16xf32>
    %94 = tpu.matmul %93, %91, %cst_39 {dimension_numbers = #tpu.dot_dimension_numbers<[1], [0], [0], [1], [0, 0, 1, 1], [], []>} : vector<128x32xbf16>, vector<32x16xbf16>, vector<128x16xf32> -> vector<128x16xf32>
    %95 = vector.broadcast %92 : vector<1x16xf32> to vector<128x16xf32>
    %96 = arith.addf %94, %95 : vector<128x16xf32>
    %cst_40 = arith.constant 0.000000e+00 : f32
    %97 = vector.broadcast %cst_40 : f32 to vector<128x16xf32>
    %98 = arith.maximumf %96, %97 : vector<128x16xf32>
    %c0_41 = arith.constant 0 : index
    %c0_42 = arith.constant 0 : index
    %99 = vector.load %arg9[%c0_41, %c0_42] : memref<1x49xf32, #tpu.memory_space<vmem>>, vector<1x32xf32>
    %c0_43 = arith.constant 0 : index
    %c32 = arith.constant 32 : index
    %100 = vector.load %arg9[%c0_43, %c32] : memref<1x49xf32, #tpu.memory_space<vmem>>, vector<1x16xf32>
    %c0_44 = arith.constant 0 : index
    %c48 = arith.constant 48 : index
    %101 = vector.load %arg9[%c0_44, %c48] : memref<1x49xf32, #tpu.memory_space<vmem>>, vector<1x1xf32>
    %cst_45 = arith.constant dense<0.000000e+00> : vector<1x128xf32>
    %102 = tpu.matmul %99, %82, %cst_45 {dimension_numbers = #tpu.dot_dimension_numbers<[1], [1], [0], [0], [0, 0, 1, 0], [], []>} : vector<1x32xf32>, vector<128x32xf32>, vector<1x128xf32> -> vector<1x128xf32>
    %cst_46 = arith.constant dense<0.000000e+00> : vector<1x128xf32>
    %103 = tpu.matmul %100, %98, %cst_46 {dimension_numbers = #tpu.dot_dimension_numbers<[1], [1], [0], [0], [0, 0, 1, 0], [], []>} : vector<1x16xf32>, vector<128x16xf32>, vector<1x128xf32> -> vector<1x128xf32>
    %104 = arith.addf %102, %103 : vector<1x128xf32>
    %105 = vector.broadcast %101 : vector<1x1xf32> to vector<1x128xf32>
    %106 = arith.addf %104, %105 : vector<1x128xf32>
    %107 = vector.shape_cast %106 : vector<1x128xf32> to vector<1x1x128xf32>
    %c0_47 = arith.constant 0 : index
    %c0_48 = arith.constant 0 : index
    %c0_49 = arith.constant 0 : index
    %108 = vector.load %arg10[%c0_47, %c0_48, %c0_49] : memref<1x1x128xf32, #tpu.memory_space<vmem>>, vector<1x1x128xf32>
    tpu.vector_store %arg10[%c0_47, %c0_48, %c0_49], %107 {strides = array<i32>} : memref<1x1x128xf32, #tpu.memory_space<vmem>>, vector<1x1x128xf32>,
    return
  }
  func.func @transform_0(%arg0: i32) -> (i32, i32) {
    %c0_i32 = arith.constant 0 : i32
    %c0_i32_0 = arith.constant 0 : i32
    return %arg0, %c0_i32 : i32, i32
  }
  func.func @transform_1(%arg0: i32) -> (i32, i32, i32) {
    %c0_i32 = arith.constant 0 : i32
    %c0_i32_0 = arith.constant 0 : i32
    %c0_i32_1 = arith.constant 0 : i32
    %c0_i32_2 = arith.constant 0 : i32
    return %c0_i32, %c0_i32_0, %c0_i32_1 : i32, i32, i32
  }
  func.func @transform_2(%arg0: i32) -> (i32, i32) {
    %c0_i32 = arith.constant 0 : i32
    %c0_i32_0 = arith.constant 0 : i32
    %c0_i32_1 = arith.constant 0 : i32
    return %c0_i32, %c0_i32_0 : i32, i32
  }
  func.func @transform_3(%arg0: i32) -> (i32, i32) {
    %c0_i32 = arith.constant 0 : i32
    %c0_i32_0 = arith.constant 0 : i32
    %c0_i32_1 = arith.constant 0 : i32
    return %c0_i32, %c0_i32_0 : i32, i32
  }
  func.func @transform_4(%arg0: i32) -> (i32, i32) {
    %c0_i32 = arith.constant 0 : i32
    %c0_i32_0 = arith.constant 0 : i32
    %c0_i32_1 = arith.constant 0 : i32
    return %c0_i32, %c0_i32_0 : i32, i32
  }
  func.func @transform_5(%arg0: i32) -> (i32, i32) {
    %c0_i32 = arith.constant 0 : i32
    %c0_i32_0 = arith.constant 0 : i32
    %c0_i32_1 = arith.constant 0 : i32
    return %c0_i32, %c0_i32_0 : i32, i32
  }
  func.func @transform_6(%arg0: i32) -> (i32, i32) {
    %c0_i32 = arith.constant 0 : i32
    %c0_i32_0 = arith.constant 0 : i32
    %c0_i32_1 = arith.constant 0 : i32
    return %c0_i32, %c0_i32_0 : i32, i32
  }
  func.func @transform_7(%arg0: i32) -> (i32, i32) {
    %c0_i32 = arith.constant 0 : i32
    %c0_i32_0 = arith.constant 0 : i32
    %c0_i32_1 = arith.constant 0 : i32
    return %c0_i32, %c0_i32_0 : i32, i32
  }
  func.func @transform_8(%arg0: i32) -> (i32, i32) {
    %c0_i32 = arith.constant 0 : i32
    %c0_i32_0 = arith.constant 0 : i32
    %c0_i32_1 = arith.constant 0 : i32
    return %c0_i32, %c0_i32_0 : i32, i32
  }
  func.func @transform_9(%arg0: i32) -> (i32, i32, i32) {
    %c0_i32 = arith.constant 0 : i32
    %c0_i32_0 = arith.constant 0 : i32
    %c0_i32_1 = arith.constant 0 : i32
    return %arg0, %c0_i32, %c0_i32_0 : i32, i32, i32
  }
}

</mosaic_0001>

<llo_original>
// kernel: tpu_custom_call.1
$region0: #{tpu_custom_call.1}
  #allocation0 [shape = 'u32[]', space=smem, size = 0x4, offset = 0x4, fixed_abs, tag = 'smem constant byte address 0x4 - core index']
  #allocation1 [shape = 'u32[144,128]{1,0:T(1,128)}', space=vmem, size = 0x12000, scoped, tag = 'internal scratch']
  %s0 = inlined_call_operand.vmem [shape: s32[256,4], index: 0, kind: input, shape index: {}]
  %s1 = inlined_call_operand.vmem [shape: bf16[4,21,32], index: 1, kind: input, shape index: {}]
  %s2 = inlined_call_operand.vmem [shape: f32[3,32], index: 2, kind: input, shape index: {}]
  %s3 = inlined_call_operand.vmem [shape: f32[3,32], index: 3, kind: input, shape index: {}]
  %s4 = inlined_call_operand.vmem [shape: bf16[32,32], index: 4, kind: input, shape index: {}]
  %s5 = inlined_call_operand.vmem [shape: f32[1,32], index: 5, kind: input, shape index: {}]
  %s6 = inlined_call_operand.vmem [shape: bf16[32,16], index: 6, kind: input, shape index: {}]
  %s7 = inlined_call_operand.vmem [shape: f32[1,16], index: 7, kind: input, shape index: {}]
  %s8 = inlined_call_operand.vmem [shape: f32[1,49], index: 8, kind: input, shape index: {}]
  %s9 = inlined_call_operand.hbm [shape: f32[2,1,128], index: 9, kind: output, shape index: {}]
  %s10 = sld [smem:[#allocation0]]
  $region69: #{tpu_custom_call.1} parent=0
    _
  %s12 = ssub.s32 1, %s10
  %s13 = scalar_select 0, %s12, %s10
  $region1: #{tpu_custom_call.1} parent=0
    #allocation2 [shape = 'u8[1024]{0}', space=vmem, size = 0x400, scoped, tag = 'output window, operand 0']
    #allocation3 [shape = 's32[2]{0}', space=sflag, size = 0x8, scoped, tag = 'scoped memory for tpu_custom_call.1']
    %14 = vsyncpa [#allocation3], 0
    %s15 = scalar_lea.sflag [#allocation3], 1
    %16 = vsyncpa %s15, 0
    loop: start=0, step=1, limit=4
    $region2: #{tpu_custom_call.1} parent=1 // loop_pre_header
      _
    $region3: #{tpu_custom_call.1} parent=1 // loop_header
      %s18 = sphi 0, %s22
      %p19 = scmp.ge.s32.totalorder %s18, 4
      %s28 = sphi 0, %s30
      %s31 = sphi 0, %s28
      %s32 = sphi 0, %s31
      %s48 = sphi 0, %s32
      %s52 = sphi 0, %s52
      %s54 = sphi 0, %s52
      %s55 = sphi 0, %s54
      %s69 = sphi 0, %s55
      %s73 = sphi 0, %s73
      %s75 = sphi 0, %s73
      %s76 = sphi 0, %s75
      %s90 = sphi 0, %s76
      %s94 = sphi 0, %s94
      %s96 = sphi 0, %s94
      %s97 = sphi 0, %s96
      %s111 = sphi 0, %s97
      %s115 = sphi 0, %s115
      %s117 = sphi 0, %s115
      %s118 = sphi 0, %s117
      %s132 = sphi 0, %s118
      %s136 = sphi 0, %s136
      %s138 = sphi 0, %s136
      %s139 = sphi 0, %s138
      %s153 = sphi 0, %s139
      %s157 = sphi 0, %s157
      %s159 = sphi 0, %s157
      %s160 = sphi 0, %s159
      %s174 = sphi 0, %s160
      %s178 = sphi 0, %s178
      %s180 = sphi 0, %s178
      %s181 = sphi 0, %s180
      %s195 = sphi 0, %s181
      %s199 = sphi 0, %s199
      %s201 = sphi 0, %s199
      %s202 = sphi 0, %s201
      %s216 = sphi 0, %s202
      %s222 = sphi 0, %s224
      %s225 = sphi 0, %s222
      %s226 = sphi 0, %s225
      %s242 = sphi 0, %s226
    $region4: #{tpu_custom_call.1} parent=1 // loop_header_branch
      %21 = sbr.rel (%p19) target = $region8
    $region5: #{tpu_custom_call.1} parent=1 // loop_body
      %s23 = ssub.s32 %s18, 1
      %s24 = ssub.s32 %s18, 2
      %s25 = sadd.s32 %s18, 1
      %s26 = ssub.s32 %s18, %s25
      %p27 = scmp.eq.s32.totalorder %s26, 0
      %s29 = sadd.s32 %s28, 1
      %s30 = scalar_select %p27, %s28, %s29
      %p33 = pneg %p27
      %p34 = scmp.eq.s32.totalorder %s18, 1
      %p35 = por %p33, %p34
      %p36 = scmp.ne.s32.totalorder %s28, %s31
      %p37 = scmp.eq.s32.totalorder %s18, 0
      %p38 = por %p36, %p37
      %p39 = scmp.ne.s32.totalorder %s28, %s31
      %p40 = scmp.eq.s32.totalorder %s23, 1
      %p41 = por %p39, %p40
      %p42 = scmp.ne.s32.totalorder %s31, %s32
      %p43 = scmp.eq.s32.totalorder %s23, 0
      %p44 = por %p42, %p43
      %p45 = scmp.ne.s32.totalorder %s31, %s32
      %p46 = scmp.eq.s32.totalorder %s24, 1
      %p47 = por %p45, %p46
      %p49 = scmp.ne.s32.totalorder %s32, %s48
      %p50 = scmp.eq.s32.totalorder %s24, 0
      %p51 = por %p49, %p50
      %s53 = sadd.s32 %s52, 1
      %p56 = scmp.eq.s32.totalorder %s18, 1
      %p57 = scmp.ne.s32.totalorder %s52, %s54
      %p58 = scmp.eq.s32.totalorder %s18, 0
      %p59 = por %p57, %p58
      %p60 = scmp.ne.s32.totalorder %s52, %s54
      %p61 = scmp.eq.s32.totalorder %s23, 1
      %p62 = por %p60, %p61
      %p63 = scmp.ne.s32.totalorder %s54, %s55
      %p64 = scmp.eq.s32.totalorder %s23, 0
      %p65 = por %p63, %p64
      %p66 = scmp.ne.s32.totalorder %s54, %s55
      %p67 = scmp.eq.s32.totalorder %s24, 1
      %p68 = por %p66, %p67
      %p70 = scmp.ne.s32.totalorder %s55, %s69
      %p71 = scmp.eq.s32.totalorder %s24, 0
      %p72 = por %p70, %p71
      %s74 = sadd.s32 %s73, 1
      %p77 = scmp.eq.s32.totalorder %s18, 1
      %p78 = scmp.ne.s32.totalorder %s73, %s75
      %p79 = scmp.eq.s32.totalorder %s18, 0
      %p80 = por %p78, %p79
      %p81 = scmp.ne.s32.totalorder %s73, %s75
      %p82 = scmp.eq.s32.totalorder %s23, 1
      %p83 = por %p81, %p82
      %p84 = scmp.ne.s32.totalorder %s75, %s76
      %p85 = scmp.eq.s32.totalorder %s23, 0
      %p86 = por %p84, %p85
      %p87 = scmp.ne.s32.totalorder %s75, %s76
      %p88 = scmp.eq.s32.totalorder %s24, 1
      %p89 = por %p87, %p88
      %p91 = scmp.ne.s32.totalorder %s76, %s90
      %p92 = scmp.eq.s32.totalorder %s24, 0
      %p93 = por %p91, %p92
      %s95 = sadd.s32 %s94, 1
      %p98 = scmp.eq.s32.totalorder %s18, 1
      %p99 = scmp.ne.s32.totalorder %s94, %s96
      %p100 = scmp.eq.s32.totalorder %s18, 0
      %p101 = por %p99, %p100
      %p102 = scmp.ne.s32.totalorder %s94, %s96
      %p103 = scmp.eq.s32.totalorder %s23, 1
      %p104 = por %p102, %p103
      %p105 = scmp.ne.s32.totalorder %s96, %s97
      %p106 = scmp.eq.s32.totalorder %s23, 0
      %p107 = por %p105, %p106
      %p108 = scmp.ne.s32.totalorder %s96, %s97
      %p109 = scmp.eq.s32.totalorder %s24, 1
      %p110 = por %p108, %p109
      %p112 = scmp.ne.s32.totalorder %s97, %s111
      %p113 = scmp.eq.s32.totalorder %s24, 0
      %p114 = por %p112, %p113
      %s116 = sadd.s32 %s115, 1
      %p119 = scmp.eq.s32.totalorder %s18, 1
      %p120 = scmp.ne.s32.totalorder %s115, %s117
      %p121 = scmp.eq.s32.totalorder %s18, 0
      %p122 = por %p120, %p121
      %p123 = scmp.ne.s32.totalorder %s115, %s117
      %p124 = scmp.eq.s32.totalorder %s23, 1
      %p125 = por %p123, %p124
      %p126 = scmp.ne.s32.totalorder %s117, %s118
      %p127 = scmp.eq.s32.totalorder %s23, 0
      %p128 = por %p126, %p127
      %p129 = scmp.ne.s32.totalorder %s117, %s118
      %p130 = scmp.eq.s32.totalorder %s24, 1
      %p131 = por %p129, %p130
      %p133 = scmp.ne.s32.totalorder %s118, %s132
      %p134 = scmp.eq.s32.totalorder %s24, 0
      %p135 = por %p133, %p134
      %s137 = sadd.s32 %s136, 1
      %p140 = scmp.eq.s32.totalorder %s18, 1
      %p141 = scmp.ne.s32.totalorder %s136, %s138
      %p142 = scmp.eq.s32.totalorder %s18, 0
      %p143 = por %p141, %p142
      %p144 = scmp.ne.s32.totalorder %s136, %s138
      %p145 = scmp.eq.s32.totalorder %s23, 1
      %p146 = por %p144, %p145
      %p147 = scmp.ne.s32.totalorder %s138, %s139
      %p148 = scmp.eq.s32.totalorder %s23, 0
      %p149 = por %p147, %p148
      %p150 = scmp.ne.s32.totalorder %s138, %s139
      %p151 = scmp.eq.s32.totalorder %s24, 1
      %p152 = por %p150, %p151
      %p154 = scmp.ne.s32.totalorder %s139, %s153
      %p155 = scmp.eq.s32.totalorder %s24, 0
      %p156 = por %p154, %p155
      %s158 = sadd.s32 %s157, 1
      %p161 = scmp.eq.s32.totalorder %s18, 1
      %p162 = scmp.ne.s32.totalorder %s157, %s159
      %p163 = scmp.eq.s32.totalorder %s18, 0
      %p164 = por %p162, %p163
      %p165 = scmp.ne.s32.totalorder %s157, %s159
      %p166 = scmp.eq.s32.totalorder %s23, 1
      %p167 = por %p165, %p166
      %p168 = scmp.ne.s32.totalorder %s159, %s160
      %p169 = scmp.eq.s32.totalorder %s23, 0
      %p170 = por %p168, %p169
      %p171 = scmp.ne.s32.totalorder %s159, %s160
      %p172 = scmp.eq.s32.totalorder %s24, 1
      %p173 = por %p171, %p172
      %p175 = scmp.ne.s32.totalorder %s160, %s174
      %p176 = scmp.eq.s32.totalorder %s24, 0
      %p177 = por %p175, %p176
      %s179 = sadd.s32 %s178, 1
      %p182 = scmp.eq.s32.totalorder %s18, 1
      %p183 = scmp.ne.s32.totalorder %s178, %s180
      %p184 = scmp.eq.s32.totalorder %s18, 0
      %p185 = por %p183, %p184
      %p186 = scmp.ne.s32.totalorder %s178, %s180
      %p187 = scmp.eq.s32.totalorder %s23, 1
      %p188 = por %p186, %p187
      %p189 = scmp.ne.s32.totalorder %s180, %s181
      %p190 = scmp.eq.s32.totalorder %s23, 0
      %p191 = por %p189, %p190
      %p192 = scmp.ne.s32.totalorder %s180, %s181
      %p193 = scmp.eq.s32.totalorder %s24, 1
      %p194 = por %p192, %p193
      %p196 = scmp.ne.s32.totalorder %s181, %s195
      %p197 = scmp.eq.s32.totalorder %s24, 0
      %p198 = por %p196, %p197
      %s200 = sadd.s32 %s199, 1
      %p203 = scmp.eq.s32.totalorder %s18, 1
      %p204 = scmp.ne.s32.totalorder %s199, %s201
      %p205 = scmp.eq.s32.totalorder %s18, 0
      %p206 = por %p204, %p205
      %p207 = scmp.ne.s32.totalorder %s199, %s201
      %p208 = scmp.eq.s32.totalorder %s23, 1
      %p209 = por %p207, %p208
      %p210 = scmp.ne.s32.totalorder %s201, %s202
      %p211 = scmp.eq.s32.totalorder %s23, 0
      %p212 = por %p210, %p211
      %p213 = scmp.ne.s32.totalorder %s201, %s202
      %p214 = scmp.eq.s32.totalorder %s24, 1
      %p215 = por %p213, %p214
      %p217 = scmp.ne.s32.totalorder %s202, %s216
      %p218 = scmp.eq.s32.totalorder %s24, 0
      %p219 = por %p217, %p218
      %s220 = ssub.s32 %s18, %s25
      %p221 = scmp.eq.s32.totalorder %s220, 0
      %s223 = sadd.s32 %s222, 1
      %s224 = scalar_select %p221, %s222, %s223
      %p227 = pneg %p221
      %p228 = scmp.eq.s32.totalorder %s18, 1
      %p229 = por %p227, %p228
      %p230 = scmp.ne.s32.totalorder %s222, %s225
      %p231 = scmp.eq.s32.totalorder %s18, 0
      %p232 = por %p230, %p231
      %p233 = scmp.ne.s32.totalorder %s222, %s225
      %p234 = scmp.eq.s32.totalorder %s23, 1
      %p235 = por %p233, %p234
      %p236 = scmp.ne.s32.totalorder %s225, %s226
      %p237 = scmp.eq.s32.totalorder %s23, 0
      %p238 = por %p236, %p237
      %p239 = scmp.ne.s32.totalorder %s225, %s226
      %p240 = scmp.eq.s32.totalorder %s24, 1
      %p241 = por %p239, %p240
      %p243 = scmp.ne.s32.totalorder %s226, %s242
      %p244 = scmp.eq.s32.totalorder %s24, 0
      %p245 = por %p243, %p244
      %p246 = scmp.le.s32.totalorder 1, %s18
      %p247 = scmp.lt.s32.totalorder %s18, 3
      %p248 = pnand %p246, %p247
      %p249 = pneg %p248
      // Predicated region
      $region9: #{tpu_custom_call.1} parent=5 // pred_check
        _
      $region10: #{tpu_custom_call.1} parent=5 // pred_check_branch
        %251 = sbr.rel (%p248) target = $region12
      $region11: #{tpu_custom_call.1} parent=5 // pred_region
        %s252 = ssub.s32 %s18, 1
        // Predicated region
        $region13: #{tpu_custom_call.1} parent=11 // pred_check
          %p253 = pneg %p65
        $region14: #{tpu_custom_call.1} parent=11 // pred_check_branch
          %255 = sbr.rel (%p253) target = $region16
        $region15: #{tpu_custom_call.1} parent=11 // pred_region
          _
        $region16: #{tpu_custom_call.1} parent=11 // pred_fallthru
          _
        // Predicated region
        $region17: #{tpu_custom_call.1} parent=11 // pred_check
          %p256 = pneg %p86
        $region18: #{tpu_custom_call.1} parent=11 // pred_check_branch
          %258 = sbr.rel (%p256) target = $region20
        $region19: #{tpu_custom_call.1} parent=11 // pred_region
          _
        $region20: #{tpu_custom_call.1} parent=11 // pred_fallthru
          _
        // Predicated region
        $region21: #{tpu_custom_call.1} parent=11 // pred_check
          %p259 = pneg %p107
        $region22: #{tpu_custom_call.1} parent=11 // pred_check_branch
          %261 = sbr.rel (%p259) target = $region24
        $region23: #{tpu_custom_call.1} parent=11 // pred_region
          _
        $region24: #{tpu_custom_call.1} parent=11 // pred_fallthru
          _
        // Predicated region
        $region25: #{tpu_custom_call.1} parent=11 // pred_check
          %p262 = pneg %p128
        $region26: #{tpu_custom_call.1} parent=11 // pred_check_branch
          %264 = sbr.rel (%p262) target = $region28
        $region27: #{tpu_custom_call.1} parent=11 // pred_region
          _
        $region28: #{tpu_custom_call.1} parent=11 // pred_fallthru
          _
        // Predicated region
        $region29: #{tpu_custom_call.1} parent=11 // pred_check
          %p265 = pneg %p149
        $region30: #{tpu_custom_call.1} parent=11 // pred_check_branch
          %267 = sbr.rel (%p265) target = $region32
        $region31: #{tpu_custom_call.1} parent=11 // pred_region
          _
        $region32: #{tpu_custom_call.1} parent=11 // pred_fallthru
          _
        // Predicated region
        $region33: #{tpu_custom_call.1} parent=11 // pred_check
          %p268 = pneg %p170
        $region34: #{tpu_custom_call.1} parent=11 // pred_check_branch
          %270 = sbr.rel (%p268) target = $region36
        $region35: #{tpu_custom_call.1} parent=11 // pred_region
          _
        $region36: #{tpu_custom_call.1} parent=11 // pred_fallthru
          _
        // Predicated region
        $region37: #{tpu_custom_call.1} parent=11 // pred_check
          %p271 = pneg %p191
        $region38: #{tpu_custom_call.1} parent=11 // pred_check_branch
          %273 = sbr.rel (%p271) target = $region40
        $region39: #{tpu_custom_call.1} parent=11 // pred_region
          _
        $region40: #{tpu_custom_call.1} parent=11 // pred_fallthru
          _
        // Predicated region
        $region41: #{tpu_custom_call.1} parent=11 // pred_check
          %p274 = pneg %p212
        $region42: #{tpu_custom_call.1} parent=11 // pred_check_branch
          %276 = sbr.rel (%p274) target = $region44
        $region43: #{tpu_custom_call.1} parent=11 // pred_region
          _
        $region44: #{tpu_custom_call.1} parent=11 // pred_fallthru
          _
      $region12: #{tpu_custom_call.1} parent=5 // pred_fallthru
        _
      %p277 = scmp.lt.s32.totalorder %s18, 2
      // Predicated region
      $region45: #{tpu_custom_call.1} parent=5 // pred_check
        %p278 = pneg %p277
      $region46: #{tpu_custom_call.1} parent=5 // pred_check_branch
        %280 = sbr.rel (%p278) target = $region48
      $region47: #{tpu_custom_call.1} parent=5 // pred_region
        // Predicated region
        $region49: #{tpu_custom_call.1} parent=47 // pred_check
          %p281 = pneg %p38
        $region50: #{tpu_custom_call.1} parent=47 // pred_check_branch
          %283 = sbr.rel (%p281) target = $region52
        $region51: #{tpu_custom_call.1} parent=47 // pred_region
          %s284 = smul.u32 16, %s18
          %p285 = scmp.lt.s32.totalorder %s284, 31
          %s286 = scalar_select %p285, %s284, 31
          %s287 = smul.addr %s286, 8
          %s288 = scalar_lea.vmem %s0, %s287
          %s289 = smul.u32 16, %s18
        $region52: #{tpu_custom_call.1} parent=47 // pred_fallthru
          _
      $region48: #{tpu_custom_call.1} parent=5 // pred_fallthru
        _
      %p290 = scmp.le.s32.totalorder 1, %s18
      %p291 = scmp.lt.s32.totalorder %s18, 3
      %p292 = pnand %p290, %p291
      %p293 = pneg %p292
      // Predicated region
      $region53: #{tpu_custom_call.1} parent=5 // pred_check
        _
      $region54: #{tpu_custom_call.1} parent=5 // pred_check_branch
        %295 = sbr.rel (%p292) target = $region56
      $region55: #{tpu_custom_call.1} parent=5 // pred_region
        %s296 = ssub.s32 %s18, 1
        %s297 = smul.u32 16, %s23
        %p298 = scmp.lt.s32.totalorder %s297, 31
        %s299 = scalar_select %p298, %s297, 31
        %s300 = smul.addr %s299, 8
        %s301 = scalar_lea.vmem %s0, %s300
        %p302 = pneg %p44
        %p303 = pneg %p41
        %p304 = pneg %p65
        %p305 = pneg %p62
        %p306 = pneg %p86
        %p307 = pneg %p83
        %p308 = pneg %p107
        %p309 = pneg %p104
        %p310 = pneg %p128
        %p311 = pneg %p125
        %p312 = pneg %p149
        %p313 = pneg %p146
        %p314 = pneg %p170
        %p315 = pneg %p167
        %p316 = pneg %p191
        %p317 = pneg %p188
        %p318 = pneg %p212
        %p319 = pneg %p209
        %p320 = pneg %p238
        %p321 = pneg %p235
        %s322 = sand.u32 %s225, 1
        %s323 = scalar_lea.sflag [#allocation3], %s322
        %s324 = sand.u32 %s225, 1
        %s325 = scalar_lea.vmem [#allocation2], %s324
        %s326 = smul.u32 16, %s23
        %p327 = scmp.lt.s32.totalorder %s326, 31
        %s328 = scalar_select %p327, %s326, 31
        %s329 = smul.addr %s328, 8
        %s330 = scalar_lea.vmem %s0, %s329
        %s331 = smul.u32 16, %s23
        %v333 = vld [vmem:[%s330] sm:$0xff]
        %v334 = vld [vmem:[%s330 + $0x8] sm:$0xff]
        %v335 = vld [vmem:[%s330 + $0x10] sm:$0xff]
        %v336 = vld [vmem:[%s330 + $0x18] sm:$0xff]
        %v337 = vld [vmem:[%s330 + $0x20] sm:$0xff]
        %v338 = vld [vmem:[%s330 + $0x28] sm:$0xff]
        %v339 = vld [vmem:[%s330 + $0x30] sm:$0xff]
        %v340 = vld [vmem:[%s330 + $0x38] sm:$0xff]
        %v341 = vld [vmem:[%s330 + $0x40] sm:$0xff]
        %v342 = vld [vmem:[%s330 + $0x48] sm:$0xff]
        %v343 = vld [vmem:[%s330 + $0x50] sm:$0xff]
        %v344 = vld [vmem:[%s330 + $0x58] sm:$0xff]
        %v345 = vld [vmem:[%s330 + $0x60] sm:$0xff]
        %v346 = vld [vmem:[%s330 + $0x68] sm:$0xff]
        %v347 = vld [vmem:[%s330 + $0x70] sm:$0xff]
        %v348 = vld [vmem:[%s330 + $0x78] sm:$0xff]
        %v349 = vlaneseq
        %v350 = vand.u32 %v349, 127
        %351 = vset.pattern.permute.xlu0 0
        %352 = vperm.xlu0 %351, %v333
        %v353 = vpop.permute.xlu0 %352
        %354 = vset.pattern.permute.xlu0 0
        %355 = vperm.xlu0 %354, %v334
        %v356 = vpop.permute.xlu0 %355
        %357 = vset.pattern.permute.xlu0 0
        %358 = vperm.xlu0 %357, %v335
        %v359 = vpop.permute.xlu0 %358
        %360 = vset.pattern.permute.xlu0 0
        %361 = vperm.xlu0 %360, %v336
        %v362 = vpop.permute.xlu0 %361
        %363 = vset.pattern.permute.xlu0 0
        %364 = vperm.xlu0 %363, %v337
        %v365 = vpop.permute.xlu0 %364
        %366 = vset.pattern.permute.xlu0 0
        %367 = vperm.xlu0 %366, %v338
        %v368 = vpop.permute.xlu0 %367
        %369 = vset.pattern.permute.xlu0 0
        %370 = vperm.xlu0 %369, %v339
        %v371 = vpop.permute.xlu0 %370
        %372 = vset.pattern.permute.xlu0 0
        %373 = vperm.xlu0 %372, %v340
        %v374 = vpop.permute.xlu0 %373
        %375 = vset.pattern.permute.xlu0 0
        %376 = vperm.xlu0 %375, %v341
        %v377 = vpop.permute.xlu0 %376
        %378 = vset.pattern.permute.xlu0 0
        %379 = vperm.xlu0 %378, %v342
        %v380 = vpop.permute.xlu0 %379
        %381 = vset.pattern.permute.xlu0 0
        %382 = vperm.xlu0 %381, %v343
        %v383 = vpop.permute.xlu0 %382
        %384 = vset.pattern.permute.xlu0 0
        %385 = vperm.xlu0 %384, %v344
        %v386 = vpop.permute.xlu0 %385
        %387 = vset.pattern.permute.xlu0 0
        %388 = vperm.xlu0 %387, %v345
        %v389 = vpop.permute.xlu0 %388
        %390 = vset.pattern.permute.xlu0 0
        %391 = vperm.xlu0 %390, %v346
        %v392 = vpop.permute.xlu0 %391
        %393 = vset.pattern.permute.xlu0 0
        %394 = vperm.xlu0 %393, %v347
        %v395 = vpop.permute.xlu0 %394
        %396 = vset.pattern.permute.xlu0 0
        %397 = vperm.xlu0 %396, %v348
        %v398 = vpop.permute.xlu0 %397
        %vm399 = vcmp.eq.s32.totalorder %v353, %v350
        %vm400 = vcmp.eq.s32.totalorder %v356, %v350
        %vm401 = vcmp.eq.s32.totalorder %v359, %v350
        %vm402 = vcmp.eq.s32.totalorder %v362, %v350
        %vm403 = vcmp.eq.s32.totalorder %v365, %v350
        %vm404 = vcmp.eq.s32.totalorder %v368, %v350
        %vm405 = vcmp.eq.s32.totalorder %v371, %v350
        %vm406 = vcmp.eq.s32.totalorder %v374, %v350
        %vm407 = vcmp.eq.s32.totalorder %v377, %v350
        %vm408 = vcmp.eq.s32.totalorder %v380, %v350
        %vm409 = vcmp.eq.s32.totalorder %v383, %v350
        %vm410 = vcmp.eq.s32.totalorder %v386, %v350
        %vm411 = vcmp.eq.s32.totalorder %v389, %v350
        %vm412 = vcmp.eq.s32.totalorder %v392, %v350
        %vm413 = vcmp.eq.s32.totalorder %v395, %v350
        %vm414 = vcmp.eq.s32.totalorder %v398, %v350
        %v415 = vsel %vm399, 1, 0
        %v416 = vsel %vm400, 1, 0
        %v417 = vsel %vm401, 1, 0
        %v418 = vsel %vm402, 1, 0
        %v419 = vsel %vm403, 1, 0
        %v420 = vsel %vm404, 1, 0
        %v421 = vsel %vm405, 1, 0
        %v422 = vsel %vm406, 1, 0
        %v423 = vsel %vm407, 1, 0
        %v424 = vsel %vm408, 1, 0
        %v425 = vsel %vm409, 1, 0
        %v426 = vsel %vm410, 1, 0
        %v427 = vsel %vm411, 1, 0
        %v428 = vsel %vm412, 1, 0
        %v429 = vsel %vm413, 1, 0
        %v430 = vsel %vm414, 1, 0
        %v431 = vcvt.s32.f32 %v415
        %v432 = vcvt.s32.f32 %v416
        %v433 = vcvt.s32.f32 %v417
        %v434 = vcvt.s32.f32 %v418
        %v435 = vcvt.s32.f32 %v419
        %v436 = vcvt.s32.f32 %v420
        %v437 = vcvt.s32.f32 %v421
        %v438 = vcvt.s32.f32 %v422
        %v439 = vcvt.s32.f32 %v423
        %v440 = vcvt.s32.f32 %v424
        %v441 = vcvt.s32.f32 %v425
        %v442 = vcvt.s32.f32 %v426
        %v443 = vcvt.s32.f32 %v427
        %v444 = vcvt.s32.f32 %v428
        %v445 = vcvt.s32.f32 %v429
        %v446 = vcvt.s32.f32 %v430
        %v447 = vpack.c.bf16 %v432, %v431
        %v448 = vpack.c.bf16 %v434, %v433
        %v449 = vpack.c.bf16 %v436, %v435
        %v450 = vpack.c.bf16 %v438, %v437
        %v451 = vpack.c.bf16 %v440, %v439
        %v452 = vpack.c.bf16 %v442, %v441
        %v453 = vpack.c.bf16 %v444, %v443
        %v454 = vpack.c.bf16 %v446, %v445
        %v455 = vld [vmem:[%s1] sm:$0xf]
        %v456 = vld [vmem:[%s1 + $0x4] sm:$0xf]
        %v457 = vld [vmem:[%s1 + $0x8] sm:$0x7]
        %458 = vset.pattern.permute.xlu0 1
        %459 = vperm.xlu0 %458, %v333
        %v460 = vpop.permute.xlu0 %459
        %461 = vset.pattern.permute.xlu0 1
        %462 = vperm.xlu0 %461, %v334
        %v463 = vpop.permute.xlu0 %462
        %464 = vset.pattern.permute.xlu0 1
        %465 = vperm.xlu0 %464, %v335
        %v466 = vpop.permute.xlu0 %465
        %467 = vset.pattern.permute.xlu0 1
        %468 = vperm.xlu0 %467, %v336
        %v469 = vpop.permute.xlu0 %468
        %470 = vset.pattern.permute.xlu0 1
        %471 = vperm.xlu0 %470, %v337
        %v472 = vpop.permute.xlu0 %471
        %473 = vset.pattern.permute.xlu0 1
        %474 = vperm.xlu0 %473, %v338
        %v475 = vpop.permute.xlu0 %474
        %476 = vset.pattern.permute.xlu0 1
        %477 = vperm.xlu0 %476, %v339
        %v478 = vpop.permute.xlu0 %477
        %479 = vset.pattern.permute.xlu0 1
        %480 = vperm.xlu0 %479, %v340
        %v481 = vpop.permute.xlu0 %480
        %482 = vset.pattern.permute.xlu0 1
        %483 = vperm.xlu0 %482, %v341
        %v484 = vpop.permute.xlu0 %483
        %485 = vset.pattern.permute.xlu0 1
        %486 = vperm.xlu0 %485, %v342
        %v487 = vpop.permute.xlu0 %486
        %488 = vset.pattern.permute.xlu0 1
        %489 = vperm.xlu0 %488, %v343
        %v490 = vpop.permute.xlu0 %489
        %491 = vset.pattern.permute.xlu0 1
        %492 = vperm.xlu0 %491, %v344
        %v493 = vpop.permute.xlu0 %492
        %494 = vset.pattern.permute.xlu0 1
        %495 = vperm.xlu0 %494, %v345
        %v496 = vpop.permute.xlu0 %495
        %497 = vset.pattern.permute.xlu0 1
        %498 = vperm.xlu0 %497, %v346
        %v499 = vpop.permute.xlu0 %498
        %500 = vset.pattern.permute.xlu0 1
        %501 = vperm.xlu0 %500, %v347
        %v502 = vpop.permute.xlu0 %501
        %503 = vset.pattern.permute.xlu0 1
        %504 = vperm.xlu0 %503, %v348
        %v505 = vpop.permute.xlu0 %504
        %vm506 = vcmp.eq.s32.totalorder %v460, %v350
        %vm507 = vcmp.eq.s32.totalorder %v463, %v350
        %vm508 = vcmp.eq.s32.totalorder %v466, %v350
        %vm509 = vcmp.eq.s32.totalorder %v469, %v350
        %vm510 = vcmp.eq.s32.totalorder %v472, %v350
        %vm511 = vcmp.eq.s32.totalorder %v475, %v350
        %vm512 = vcmp.eq.s32.totalorder %v478, %v350
        %vm513 = vcmp.eq.s32.totalorder %v481, %v350
        %vm514 = vcmp.eq.s32.totalorder %v484, %v350
        %vm515 = vcmp.eq.s32.totalorder %v487, %v350
        %vm516 = vcmp.eq.s32.totalorder %v490, %v350
        %vm517 = vcmp.eq.s32.totalorder %v493, %v350
        %vm518 = vcmp.eq.s32.totalorder %v496, %v350
        %vm519 = vcmp.eq.s32.totalorder %v499, %v350
        %vm520 = vcmp.eq.s32.totalorder %v502, %v350
        %vm521 = vcmp.eq.s32.totalorder %v505, %v350
        %v522 = vsel %vm506, 1, 0
        %v523 = vsel %vm507, 1, 0
        %v524 = vsel %vm508, 1, 0
        %v525 = vsel %vm509, 1, 0
        %v526 = vsel %vm510, 1, 0
        %v527 = vsel %vm511, 1, 0
        %v528 = vsel %vm512, 1, 0
        %v529 = vsel %vm513, 1, 0
        %v530 = vsel %vm514, 1, 0
        %v531 = vsel %vm515, 1, 0
        %v532 = vsel %vm516, 1, 0
        %v533 = vsel %vm517, 1, 0
        %v534 = vsel %vm518, 1, 0
        %v535 = vsel %vm519, 1, 0
        %v536 = vsel %vm520, 1, 0
        %v537 = vsel %vm521, 1, 0
        %v538 = vcvt.s32.f32 %v522
        %v539 = vcvt.s32.f32 %v523
        %v540 = vcvt.s32.f32 %v524
        %v541 = vcvt.s32.f32 %v525
        %v542 = vcvt.s32.f32 %v526
        %v543 = vcvt.s32.f32 %v527
        %v544 = vcvt.s32.f32 %v528
        %v545 = vcvt.s32.f32 %v529
        %v546 = vcvt.s32.f32 %v530
        %v547 = vcvt.s32.f32 %v531
        %v548 = vcvt.s32.f32 %v532
        %v549 = vcvt.s32.f32 %v533
        %v550 = vcvt.s32.f32 %v534
        %v551 = vcvt.s32.f32 %v535
        %v552 = vcvt.s32.f32 %v536
        %v553 = vcvt.s32.f32 %v537
        %v554 = vpack.c.bf16 %v539, %v538
        %v555 = vpack.c.bf16 %v541, %v540
        %v556 = vpack.c.bf16 %v543, %v542
        %v557 = vpack.c.bf16 %v545, %v544
        %v558 = vpack.c.bf16 %v547, %v546
        %v559 = vpack.c.bf16 %v549, %v548
        %v560 = vpack.c.bf16 %v551, %v550
        %v561 = vpack.c.bf16 %v553, %v552
        %s562 = scalar_lea.vmem %s1, 12
        %v563 = vld [vmem:[%s562] sm:$0xf]
        %v564 = vld [vmem:[%s562 + $0x4] sm:$0xf]
        %v565 = vld [vmem:[%s562 + $0x8] sm:$0x7]
        %v569 = vunpack.c.l.b16 %v563
        %v570 = vunpack.c.l.b16 %v564
        %v571 = vunpack.c.l.b16 %v565
        %v572 = vpack.c.b16 %v570, %v569
        %v573 = vpack.c.b16 %v571, %v571
        %vm575 = vcmask 171008
        %v577 = vsel %vm575, %v554, 0
        %v580 = vsel %vm575, %v555, 0
        %v583 = vsel %vm575, %v556, 0
        %v586 = vsel %vm575, %v557, 0
        %v589 = vsel %vm575, %v558, 0
        %v592 = vsel %vm575, %v559, 0
        %v595 = vsel %vm575, %v560, 0
        %v598 = vsel %vm575, %v561, 0
        %vm600 = vcmask 1041408
        %vm601 = vcmask 1042432
        %v602 = vsel %vm600, 4294967295, 65535
        %v603 = vsel %vm601, %v602, 0
        %v605 = vand.u32 %v573, %v603
        %607 = vmatprep.subr.bf16.mxu0 0
        %608 = vmatpush1.bf16.msra.mxu0 %v572
        %609 = vmatprep.subr.bf16.mxu0 0
        %610 = vmatpush1.bf16.msra.mxu0 %v605
        %611 = vmatprep.subr.bf16.mxu0 0
        %612 = vmatpush1.bf16.msra.mxu0 0
        %613 = vmatprep.subr.bf16.mxu0 0
        %614 = vmatpush1.bf16.msra.mxu0 0
        %615 = vmatprep.subr.bf16.mxu0 0
        %616 = vmatpush1.bf16.msra.mxu0 0
        %617 = vmatprep.subr.bf16.mxu0 0
        %618 = vmatpush1.bf16.msra.mxu0 0
        %619 = vmatprep.subr.bf16.mxu0 0
        %620 = vmatpush1.bf16.msra.mxu0 0
        %621 = vmatprep.subr.bf16.mxu0 0
        %622 = vmatpush1.bf16.msra.mxu0 0
        %623 = vmatprep.subr.bf16.mxu0 0
        %624 = vmatpush1.bf16.msra.mxu0 0
        %625 = vmatprep.subr.bf16.mxu0 0
        %626 = vmatpush1.bf16.msra.mxu0 0
        %627 = vmatprep.subr.bf16.mxu0 0
        %628 = vmatpush1.bf16.msra.mxu0 0
        %629 = vmatprep.subr.bf16.mxu0 0
        %630 = vmatpush1.bf16.msra.mxu0 0
        %631 = vmatprep.subr.bf16.mxu0 0
        %632 = vmatpush1.bf16.msra.mxu0 0
        %633 = vmatprep.subr.bf16.mxu0 0
        %634 = vmatpush1.bf16.msra.mxu0 0
        %635 = vmatprep.subr.bf16.mxu0 0
        %636 = vmatpush1.bf16.msra.mxu0 0
        %637 = vmatprep.subr.bf16.mxu0 0
        %638 = vmatpush1.bf16.msra.mxu0 0
        %639 = vmatprep.mubr.bf16.mxu0 0
        %640 = vmatmul.mubr.bf16.gmra.mrb[0].mxu0 %v577
        %v641 = vpop.f32.mrb[0].mxu0
        %v642 = vadd.f32 0.0, %v641
        %v643 = vpop.f32.mrb[0].mxu0
        %v644 = vpop.f32.mrb[0].mxu0
        %v645 = vadd.f32 0.0, %v644
        %v646 = vpop.f32.mrb[0].mxu0
        %647 = vmatprep.mubr.bf16.mxu0 0
        %648 = vmatmul.mubr.bf16.gmra.mrb[0].mxu0 %v580
        %v649 = vpop.f32.mrb[0].mxu0
        %v650 = vadd.f32 0.0, %v649
        %v651 = vpop.f32.mrb[0].mxu0
        %v652 = vpop.f32.mrb[0].mxu0
        %v653 = vadd.f32 0.0, %v652
        %v654 = vpop.f32.mrb[0].mxu0
        %655 = vmatprep.mubr.bf16.mxu0 0
        %656 = vmatmul.mubr.bf16.gmra.mrb[0].mxu0 %v583
        %v657 = vpop.f32.mrb[0].mxu0
        %v658 = vadd.f32 0.0, %v657
        %v659 = vpop.f32.mrb[0].mxu0
        %v660 = vpop.f32.mrb[0].mxu0
        %v661 = vadd.f32 0.0, %v660
        %v662 = vpop.f32.mrb[0].mxu0
        %663 = vmatprep.mubr.bf16.mxu0 0
        %664 = vmatmul.mubr.bf16.gmra.mrb[0].mxu0 %v586
        %v665 = vpop.f32.mrb[0].mxu0
        %v666 = vadd.f32 0.0, %v665
        %v667 = vpop.f32.mrb[0].mxu0
        %v668 = vpop.f32.mrb[0].mxu0
        %v669 = vadd.f32 0.0, %v668
        %v670 = vpop.f32.mrb[0].mxu0
        %671 = vmatprep.mubr.bf16.mxu0 0
        %672 = vmatmul.mubr.bf16.gmra.mrb[0].mxu0 %v589
        %v673 = vpop.f32.mrb[0].mxu0
        %v674 = vadd.f32 0.0, %v673
        %v675 = vpop.f32.mrb[0].mxu0
        %v676 = vpop.f32.mrb[0].mxu0
        %v677 = vadd.f32 0.0, %v676
        %v678 = vpop.f32.mrb[0].mxu0
        %679 = vmatprep.mubr.bf16.mxu0 0
        %680 = vmatmul.mubr.bf16.gmra.mrb[0].mxu0 %v592
        %v681 = vpop.f32.mrb[0].mxu0
        %v682 = vadd.f32 0.0, %v681
        %v683 = vpop.f32.mrb[0].mxu0
        %v684 = vpop.f32.mrb[0].mxu0
        %v685 = vadd.f32 0.0, %v684
        %v686 = vpop.f32.mrb[0].mxu0
        %687 = vmatprep.mubr.bf16.mxu0 0
        %688 = vmatmul.mubr.bf16.gmra.mrb[0].mxu0 %v595
        %v689 = vpop.f32.mrb[0].mxu0
        %v690 = vadd.f32 0.0, %v689
        %v691 = vpop.f32.mrb[0].mxu0
        %v692 = vpop.f32.mrb[0].mxu0
        %v693 = vadd.f32 0.0, %v692
        %v694 = vpop.f32.mrb[0].mxu0
        %695 = vmatprep.mubr.bf16.mxu0 0
        %696 = vmatmul.mubr.bf16.gmra.mrb[0].mxu0 %v598
        %v697 = vpop.f32.mrb[0].mxu0
        %v698 = vadd.f32 0.0, %v697
        %v699 = vpop.f32.mrb[0].mxu0
        %v700 = vpop.f32.mrb[0].mxu0
        %v701 = vadd.f32 0.0, %v700
        %v702 = vpop.f32.mrb[0].mxu0
        %703 = vdwg.mxu0
        %v707 = vunpack.c.l.b16 %v455
        %v708 = vunpack.c.l.b16 %v456
        %v709 = vunpack.c.l.b16 %v457
        %v710 = vpack.c.b16 %v708, %v707
        %v711 = vpack.c.b16 %v709, %v709
        %v714 = vsel %vm575, %v447, 0
        %v717 = vsel %vm575, %v448, 0
        %v720 = vsel %vm575, %v449, 0
        %v723 = vsel %vm575, %v450, 0
        %v726 = vsel %vm575, %v451, 0
        %v729 = vsel %vm575, %v452, 0
        %v732 = vsel %vm575, %v453, 0
        %v735 = vsel %vm575, %v454, 0
        %v738 = vand.u32 %v711, %v603
        %740 = vmatprep.subr.bf16.mxu0 0
        %741 = vmatpush1.bf16.msra.mxu0 %v710
        %742 = vmatprep.subr.bf16.mxu0 0
        %743 = vmatpush1.bf16.msra.mxu0 %v738
        %744 = vmatprep.subr.bf16.mxu0 0
        %745 = vmatpush1.bf16.msra.mxu0 0
        %746 = vmatprep.subr.bf16.mxu0 0
        %747 = vmatpush1.bf16.msra.mxu0 0
        %748 = vmatprep.subr.bf16.mxu0 0
        %749 = vmatpush1.bf16.msra.mxu0 0
        %750 = vmatprep.subr.bf16.mxu0 0
        %751 = vmatpush1.bf16.msra.mxu0 0
        %752 = vmatprep.subr.bf16.mxu0 0
        %753 = vmatpush1.bf16.msra.mxu0 0
        %754 = vmatprep.subr.bf16.mxu0 0
        %755 = vmatpush1.bf16.msra.mxu0 0
        %756 = vmatprep.subr.bf16.mxu0 0
        %757 = vmatpush1.bf16.msra.mxu0 0
        %758 = vmatprep.subr.bf16.mxu0 0
        %759 = vmatpush1.bf16.msra.mxu0 0
        %760 = vmatprep.subr.bf16.mxu0 0
        %761 = vmatpush1.bf16.msra.mxu0 0
        %762 = vmatprep.subr.bf16.mxu0 0
        %763 = vmatpush1.bf16.msra.mxu0 0
        %764 = vmatprep.subr.bf16.mxu0 0
        %765 = vmatpush1.bf16.msra.mxu0 0
        %766 = vmatprep.subr.bf16.mxu0 0
        %767 = vmatpush1.bf16.msra.mxu0 0
        %768 = vmatprep.subr.bf16.mxu0 0
        %769 = vmatpush1.bf16.msra.mxu0 0
        %770 = vmatprep.subr.bf16.mxu0 0
        %771 = vmatpush1.bf16.msra.mxu0 0
        %772 = vmatprep.mubr.bf16.mxu0 0
        %773 = vmatmul.mubr.bf16.gmra.mrb[0].mxu0 %v714
        %v774 = vpop.f32.mrb[0].mxu0
        %v775 = vadd.f32 %v642, %v774
        %v776 = vpop.f32.mrb[0].mxu0
        %v777 = vpop.f32.mrb[0].mxu0
        %v778 = vadd.f32 %v645, %v777
        %v779 = vpop.f32.mrb[0].mxu0
        %780 = vmatprep.mubr.bf16.mxu0 0
        %781 = vmatmul.mubr.bf16.gmra.mrb[0].mxu0 %v717
        %v782 = vpop.f32.mrb[0].mxu0
        %v783 = vadd.f32 %v650, %v782
        %v784 = vpop.f32.mrb[0].mxu0
        %v785 = vpop.f32.mrb[0].mxu0
        %v786 = vadd.f32 %v653, %v785
        %v787 = vpop.f32.mrb[0].mxu0
        %788 = vmatprep.mubr.bf16.mxu0 0
        %789 = vmatmul.mubr.bf16.gmra.mrb[0].mxu0 %v720
        %v790 = vpop.f32.mrb[0].mxu0
        %v791 = vadd.f32 %v658, %v790
        %v792 = vpop.f32.mrb[0].mxu0
        %v793 = vpop.f32.mrb[0].mxu0
        %v794 = vadd.f32 %v661, %v793
        %v795 = vpop.f32.mrb[0].mxu0
        %796 = vmatprep.mubr.bf16.mxu0 0
        %797 = vmatmul.mubr.bf16.gmra.mrb[0].mxu0 %v723
        %v798 = vpop.f32.mrb[0].mxu0
        %v799 = vadd.f32 %v666, %v798
        %v800 = vpop.f32.mrb[0].mxu0
        %v801 = vpop.f32.mrb[0].mxu0
        %v802 = vadd.f32 %v669, %v801
        %v803 = vpop.f32.mrb[0].mxu0
        %804 = vmatprep.mubr.bf16.mxu0 0
        %805 = vmatmul.mubr.bf16.gmra.mrb[0].mxu0 %v726
        %v806 = vpop.f32.mrb[0].mxu0
        %v807 = vadd.f32 %v674, %v806
        %v808 = vpop.f32.mrb[0].mxu0
        %v809 = vpop.f32.mrb[0].mxu0
        %v810 = vadd.f32 %v677, %v809
        %v811 = vpop.f32.mrb[0].mxu0
        %812 = vmatprep.mubr.bf16.mxu0 0
        %813 = vmatmul.mubr.bf16.gmra.mrb[0].mxu0 %v729
        %v814 = vpop.f32.mrb[0].mxu0
        %v815 = vadd.f32 %v682, %v814
        %v816 = vpop.f32.mrb[0].mxu0
        %v817 = vpop.f32.mrb[0].mxu0
        %v818 = vadd.f32 %v685, %v817
        %v819 = vpop.f32.mrb[0].mxu0
        %820 = vmatprep.mubr.bf16.mxu0 0
        %821 = vmatmul.mubr.bf16.gmra.mrb[0].mxu0 %v732
        %v822 = vpop.f32.mrb[0].mxu0
        %v823 = vadd.f32 %v690, %v822
        %v824 = vpop.f32.mrb[0].mxu0
        %v825 = vpop.f32.mrb[0].mxu0
        %v826 = vadd.f32 %v693, %v825
        %v827 = vpop.f32.mrb[0].mxu0
        %828 = vmatprep.mubr.bf16.mxu0 0
        %829 = vmatmul.mubr.bf16.gmra.mrb[0].mxu0 %v735
        %v830 = vpop.f32.mrb[0].mxu0
        %v831 = vadd.f32 %v698, %v830
        %v832 = vpop.f32.mrb[0].mxu0
        %v833 = vpop.f32.mrb[0].mxu0
        %v834 = vadd.f32 %v701, %v833
        %v835 = vpop.f32.mrb[0].mxu0
        %836 = vdwg.mxu0
        %837 = vset.pattern.permute.xlu0 2
        %838 = vperm.xlu0 %837, %v333
        %v839 = vpop.permute.xlu0 %838
        %840 = vset.pattern.permute.xlu0 2
        %841 = vperm.xlu0 %840, %v334
        %v842 = vpop.permute.xlu0 %841
        %843 = vset.pattern.permute.xlu0 2
        %844 = vperm.xlu0 %843, %v335
        %v845 = vpop.permute.xlu0 %844
        %846 = vset.pattern.permute.xlu0 2
        %847 = vperm.xlu0 %846, %v336
        %v848 = vpop.permute.xlu0 %847
        %849 = vset.pattern.permute.xlu0 2
        %850 = vperm.xlu0 %849, %v337
        %v851 = vpop.permute.xlu0 %850
        %852 = vset.pattern.permute.xlu0 2
        %853 = vperm.xlu0 %852, %v338
        %v854 = vpop.permute.xlu0 %853
        %855 = vset.pattern.permute.xlu0 2
        %856 = vperm.xlu0 %855, %v339
        %v857 = vpop.permute.xlu0 %856
        %858 = vset.pattern.permute.xlu0 2
        %859 = vperm.xlu0 %858, %v340
        %v860 = vpop.permute.xlu0 %859
        %861 = vset.pattern.permute.xlu0 2
        %862 = vperm.xlu0 %861, %v341
        %v863 = vpop.permute.xlu0 %862
        %864 = vset.pattern.permute.xlu0 2
        %865 = vperm.xlu0 %864, %v342
        %v866 = vpop.permute.xlu0 %865
        %867 = vset.pattern.permute.xlu0 2
        %868 = vperm.xlu0 %867, %v343
        %v869 = vpop.permute.xlu0 %868
        %870 = vset.pattern.permute.xlu0 2
        %871 = vperm.xlu0 %870, %v344
        %v872 = vpop.permute.xlu0 %871
        %873 = vset.pattern.permute.xlu0 2
        %874 = vperm.xlu0 %873, %v345
        %v875 = vpop.permute.xlu0 %874
        %876 = vset.pattern.permute.xlu0 2
        %877 = vperm.xlu0 %876, %v346
        %v878 = vpop.permute.xlu0 %877
        %879 = vset.pattern.permute.xlu0 2
        %880 = vperm.xlu0 %879, %v347
        %v881 = vpop.permute.xlu0 %880
        %882 = vset.pattern.permute.xlu0 2
        %883 = vperm.xlu0 %882, %v348
        %v884 = vpop.permute.xlu0 %883
        %vm885 = vcmp.eq.s32.totalorder %v839, %v350
        %vm886 = vcmp.eq.s32.totalorder %v842, %v350
        %vm887 = vcmp.eq.s32.totalorder %v845, %v350
        %vm888 = vcmp.eq.s32.totalorder %v848, %v350
        %vm889 = vcmp.eq.s32.totalorder %v851, %v350
        %vm890 = vcmp.eq.s32.totalorder %v854, %v350
        %vm891 = vcmp.eq.s32.totalorder %v857, %v350
        %vm892 = vcmp.eq.s32.totalorder %v860, %v350
        %vm893 = vcmp.eq.s32.totalorder %v863, %v350
        %vm894 = vcmp.eq.s32.totalorder %v866, %v350
        %vm895 = vcmp.eq.s32.totalorder %v869, %v350
        %vm896 = vcmp.eq.s32.totalorder %v872, %v350
        %vm897 = vcmp.eq.s32.totalorder %v875, %v350
        %vm898 = vcmp.eq.s32.totalorder %v878, %v350
        %vm899 = vcmp.eq.s32.totalorder %v881, %v350
        %vm900 = vcmp.eq.s32.totalorder %v884, %v350
        %v901 = vsel %vm885, 1, 0
        %v902 = vsel %vm886, 1, 0
        %v903 = vsel %vm887, 1, 0
        %v904 = vsel %vm888, 1, 0
        %v905 = vsel %vm889, 1, 0
        %v906 = vsel %vm890, 1, 0
        %v907 = vsel %vm891, 1, 0
        %v908 = vsel %vm892, 1, 0
        %v909 = vsel %vm893, 1, 0
        %v910 = vsel %vm894, 1, 0
        %v911 = vsel %vm895, 1, 0
        %v912 = vsel %vm896, 1, 0
        %v913 = vsel %vm897, 1, 0
        %v914 = vsel %vm898, 1, 0
        %v915 = vsel %vm899, 1, 0
        %v916 = vsel %vm900, 1, 0
        %v917 = vcvt.s32.f32 %v901
        %v918 = vcvt.s32.f32 %v902
        %v919 = vcvt.s32.f32 %v903
        %v920 = vcvt.s32.f32 %v904
        %v921 = vcvt.s32.f32 %v905
        %v922 = vcvt.s32.f32 %v906
        %v923 = vcvt.s32.f32 %v907
        %v924 = vcvt.s32.f32 %v908
        %v925 = vcvt.s32.f32 %v909
        %v926 = vcvt.s32.f32 %v910
        %v927 = vcvt.s32.f32 %v911
        %v928 = vcvt.s32.f32 %v912
        %v929 = vcvt.s32.f32 %v913
        %v930 = vcvt.s32.f32 %v914
        %v931 = vcvt.s32.f32 %v915
        %v932 = vcvt.s32.f32 %v916
        %v933 = vpack.c.bf16 %v918, %v917
        %v934 = vpack.c.bf16 %v920, %v919
        %v935 = vpack.c.bf16 %v922, %v921
        %v936 = vpack.c.bf16 %v924, %v923
        %v937 = vpack.c.bf16 %v926, %v925
        %v938 = vpack.c.bf16 %v928, %v927
        %v939 = vpack.c.bf16 %v930, %v929
        %v940 = vpack.c.bf16 %v932, %v931
        %s941 = scalar_lea.vmem %s1, 24
        %v942 = vld [vmem:[%s941] sm:$0xf]
        %v943 = vld [vmem:[%s941 + $0x4] sm:$0xf]
        %v944 = vld [vmem:[%s941 + $0x8] sm:$0x7]
        %v948 = vunpack.c.l.b16 %v942
        %v949 = vunpack.c.l.b16 %v943
        %v950 = vunpack.c.l.b16 %v944
        %v951 = vpack.c.b16 %v949, %v948
        %v952 = vpack.c.b16 %v950, %v950
        %v955 = vsel %vm575, %v933, 0
        %v958 = vsel %vm575, %v934, 0
        %v961 = vsel %vm575, %v935, 0
        %v964 = vsel %vm575, %v936, 0
        %v967 = vsel %vm575, %v937, 0
        %v970 = vsel %vm575, %v938, 0
        %v973 = vsel %vm575, %v939, 0
        %v976 = vsel %vm575, %v940, 0
        %v979 = vand.u32 %v952, %v603
        %981 = vmatprep.subr.bf16.mxu0 0
        %982 = vmatpush1.bf16.msra.mxu0 %v951
        %983 = vmatprep.subr.bf16.mxu0 0
        %984 = vmatpush1.bf16.msra.mxu0 %v979
        %985 = vmatprep.subr.bf16.mxu0 0
        %986 = vmatpush1.bf16.msra.mxu0 0
        %987 = vmatprep.subr.bf16.mxu0 0
        %988 = vmatpush1.bf16.msra.mxu0 0
        %989 = vmatprep.subr.bf16.mxu0 0
        %990 = vmatpush1.bf16.msra.mxu0 0
        %991 = vmatprep.subr.bf16.mxu0 0
        %992 = vmatpush1.bf16.msra.mxu0 0
        %993 = vmatprep.subr.bf16.mxu0 0
        %994 = vmatpush1.bf16.msra.mxu0 0
        %995 = vmatprep.subr.bf16.mxu0 0
        %996 = vmatpush1.bf16.msra.mxu0 0
        %997 = vmatprep.subr.bf16.mxu0 0
        %998 = vmatpush1.bf16.msra.mxu0 0
        %999 = vmatprep.subr.bf16.mxu0 0
        %1000 = vmatpush1.bf16.msra.mxu0 0
        %1001 = vmatprep.subr.bf16.mxu0 0
        %1002 = vmatpush1.bf16.msra.mxu0 0
        %1003 = vmatprep.subr.bf16.mxu0 0
        %1004 = vmatpush1.bf16.msra.mxu0 0
        %1005 = vmatprep.subr.bf16.mxu0 0
        %1006 = vmatpush1.bf16.msra.mxu0 0
        %1007 = vmatprep.subr.bf16.mxu0 0
        %1008 = vmatpush1.bf16.msra.mxu0 0
        %1009 = vmatprep.subr.bf16.mxu0 0
        %1010 = vmatpush1.bf16.msra.mxu0 0
        %1011 = vmatprep.subr.bf16.mxu0 0
        %1012 = vmatpush1.bf16.msra.mxu0 0
        %1013 = vmatprep.mubr.bf16.mxu0 0
        %1014 = vmatmul.mubr.bf16.gmra.mrb[0].mxu0 %v955
        %v1015 = vpop.f32.mrb[0].mxu0
        %v1016 = vadd.f32 0.0, %v1015
        %v1017 = vpop.f32.mrb[0].mxu0
        %v1018 = vpop.f32.mrb[0].mxu0
        %v1019 = vadd.f32 0.0, %v1018
        %v1020 = vpop.f32.mrb[0].mxu0
        %1021 = vmatprep.mubr.bf16.mxu0 0
        %1022 = vmatmul.mubr.bf16.gmra.mrb[0].mxu0 %v958
        %v1023 = vpop.f32.mrb[0].mxu0
        %v1024 = vadd.f32 0.0, %v1023
        %v1025 = vpop.f32.mrb[0].mxu0
        %v1026 = vpop.f32.mrb[0].mxu0
        %v1027 = vadd.f32 0.0, %v1026
        %v1028 = vpop.f32.mrb[0].mxu0
        %1029 = vmatprep.mubr.bf16.mxu0 0
        %1030 = vmatmul.mubr.bf16.gmra.mrb[0].mxu0 %v961
        %v1031 = vpop.f32.mrb[0].mxu0
        %v1032 = vadd.f32 0.0, %v1031
        %v1033 = vpop.f32.mrb[0].mxu0
        %v1034 = vpop.f32.mrb[0].mxu0
        %v1035 = vadd.f32 0.0, %v1034
        %v1036 = vpop.f32.mrb[0].mxu0
        %1037 = vmatprep.mubr.bf16.mxu0 0
        %1038 = vmatmul.mubr.bf16.gmra.mrb[0].mxu0 %v964
        %v1039 = vpop.f32.mrb[0].mxu0
        %v1040 = vadd.f32 0.0, %v1039
        %v1041 = vpop.f32.mrb[0].mxu0
        %v1042 = vpop.f32.mrb[0].mxu0
        %v1043 = vadd.f32 0.0, %v1042
        %v1044 = vpop.f32.mrb[0].mxu0
        %1045 = vmatprep.mubr.bf16.mxu0 0
        %1046 = vmatmul.mubr.bf16.gmra.mrb[0].mxu0 %v967
        %v1047 = vpop.f32.mrb[0].mxu0
        %v1048 = vadd.f32 0.0, %v1047
        %v1049 = vpop.f32.mrb[0].mxu0
        %v1050 = vpop.f32.mrb[0].mxu0
        %v1051 = vadd.f32 0.0, %v1050
        %v1052 = vpop.f32.mrb[0].mxu0
        %1053 = vmatprep.mubr.bf16.mxu0 0
        %1054 = vmatmul.mubr.bf16.gmra.mrb[0].mxu0 %v970
        %v1055 = vpop.f32.mrb[0].mxu0
        %v1056 = vadd.f32 0.0, %v1055
        %v1057 = vpop.f32.mrb[0].mxu0
        %v1058 = vpop.f32.mrb[0].mxu0
        %v1059 = vadd.f32 0.0, %v1058
        %v1060 = vpop.f32.mrb[0].mxu0
        %1061 = vmatprep.mubr.bf16.mxu0 0
        %1062 = vmatmul.mubr.bf16.gmra.mrb[0].mxu0 %v973
        %v1063 = vpop.f32.mrb[0].mxu0
        %v1064 = vadd.f32 0.0, %v1063
        %v1065 = vpop.f32.mrb[0].mxu0
        %v1066 = vpop.f32.mrb[0].mxu0
        %v1067 = vadd.f32 0.0, %v1066
        %v1068 = vpop.f32.mrb[0].mxu0
        %1069 = vmatprep.mubr.bf16.mxu0 0
        %1070 = vmatmul.mubr.bf16.gmra.mrb[0].mxu0 %v976
        %v1071 = vpop.f32.mrb[0].mxu0
        %v1072 = vadd.f32 0.0, %v1071
        %v1073 = vpop.f32.mrb[0].mxu0
        %v1074 = vpop.f32.mrb[0].mxu0
        %v1075 = vadd.f32 0.0, %v1074
        %v1076 = vpop.f32.mrb[0].mxu0
        %1077 = vdwg.mxu0
        %v1078 = vadd.f32 %v775, %v1016
        %v1079 = vadd.f32 %v778, %v1019
        %v1080 = vadd.f32 %v783, %v1024
        %v1081 = vadd.f32 %v786, %v1027
        %v1082 = vadd.f32 %v791, %v1032
        %v1083 = vadd.f32 %v794, %v1035
        %v1084 = vadd.f32 %v799, %v1040
        %v1085 = vadd.f32 %v802, %v1043
        %v1086 = vadd.f32 %v807, %v1048
        %v1087 = vadd.f32 %v810, %v1051
        %v1088 = vadd.f32 %v815, %v1056
        %v1089 = vadd.f32 %v818, %v1059
        %v1090 = vadd.f32 %v823, %v1064
        %v1091 = vadd.f32 %v826, %v1067
        %v1092 = vadd.f32 %v831, %v1072
        %v1093 = vadd.f32 %v834, %v1075
        %1094 = vset.pattern.permute.xlu0 3
        %1095 = vperm.xlu0 %1094, %v333
        %v1096 = vpop.permute.xlu0 %1095
        %1097 = vset.pattern.permute.xlu0 3
        %1098 = vperm.xlu0 %1097, %v334
        %v1099 = vpop.permute.xlu0 %1098
        %1100 = vset.pattern.permute.xlu0 3
        %1101 = vperm.xlu0 %1100, %v335
        %v1102 = vpop.permute.xlu0 %1101
        %1103 = vset.pattern.permute.xlu0 3
        %1104 = vperm.xlu0 %1103, %v336
        %v1105 = vpop.permute.xlu0 %1104
        %1106 = vset.pattern.permute.xlu0 3
        %1107 = vperm.xlu0 %1106, %v337
        %v1108 = vpop.permute.xlu0 %1107
        %1109 = vset.pattern.permute.xlu0 3
        %1110 = vperm.xlu0 %1109, %v338
        %v1111 = vpop.permute.xlu0 %1110
        %1112 = vset.pattern.permute.xlu0 3
        %1113 = vperm.xlu0 %1112, %v339
        %v1114 = vpop.permute.xlu0 %1113
        %1115 = vset.pattern.permute.xlu0 3
        %1116 = vperm.xlu0 %1115, %v340
        %v1117 = vpop.permute.xlu0 %1116
        %1118 = vset.pattern.permute.xlu0 3
        %1119 = vperm.xlu0 %1118, %v341
        %v1120 = vpop.permute.xlu0 %1119
        %1121 = vset.pattern.permute.xlu0 3
        %1122 = vperm.xlu0 %1121, %v342
        %v1123 = vpop.permute.xlu0 %1122
        %1124 = vset.pattern.permute.xlu0 3
        %1125 = vperm.xlu0 %1124, %v343
        %v1126 = vpop.permute.xlu0 %1125
        %1127 = vset.pattern.permute.xlu0 3
        %1128 = vperm.xlu0 %1127, %v344
        %v1129 = vpop.permute.xlu0 %1128
        %1130 = vset.pattern.permute.xlu0 3
        %1131 = vperm.xlu0 %1130, %v345
        %v1132 = vpop.permute.xlu0 %1131
        %1133 = vset.pattern.permute.xlu0 3
        %1134 = vperm.xlu0 %1133, %v346
        %v1135 = vpop.permute.xlu0 %1134
        %1136 = vset.pattern.permute.xlu0 3
        %1137 = vperm.xlu0 %1136, %v347
        %v1138 = vpop.permute.xlu0 %1137
        %1139 = vset.pattern.permute.xlu0 3
        %1140 = vperm.xlu0 %1139, %v348
        %v1141 = vpop.permute.xlu0 %1140
        %vm1142 = vcmp.eq.s32.totalorder %v1096, %v350
        %vm1143 = vcmp.eq.s32.totalorder %v1099, %v350
        %vm1144 = vcmp.eq.s32.totalorder %v1102, %v350
        %vm1145 = vcmp.eq.s32.totalorder %v1105, %v350
        %vm1146 = vcmp.eq.s32.totalorder %v1108, %v350
        %vm1147 = vcmp.eq.s32.totalorder %v1111, %v350
        %vm1148 = vcmp.eq.s32.totalorder %v1114, %v350
        %vm1149 = vcmp.eq.s32.totalorder %v1117, %v350
        %vm1150 = vcmp.eq.s32.totalorder %v1120, %v350
        %vm1151 = vcmp.eq.s32.totalorder %v1123, %v350
        %vm1152 = vcmp.eq.s32.totalorder %v1126, %v350
        %vm1153 = vcmp.eq.s32.totalorder %v1129, %v350
        %vm1154 = vcmp.eq.s32.totalorder %v1132, %v350
        %vm1155 = vcmp.eq.s32.totalorder %v1135, %v350
        %vm1156 = vcmp.eq.s32.totalorder %v1138, %v350
        %vm1157 = vcmp.eq.s32.totalorder %v1141, %v350
        %v1158 = vsel %vm1142, 1, 0
        %v1159 = vsel %vm1143, 1, 0
        %v1160 = vsel %vm1144, 1, 0
        %v1161 = vsel %vm1145, 1, 0
        %v1162 = vsel %vm1146, 1, 0
        %v1163 = vsel %vm1147, 1, 0
        %v1164 = vsel %vm1148, 1, 0
        %v1165 = vsel %vm1149, 1, 0
        %v1166 = vsel %vm1150, 1, 0
        %v1167 = vsel %vm1151, 1, 0
        %v1168 = vsel %vm1152, 1, 0
        %v1169 = vsel %vm1153, 1, 0
        %v1170 = vsel %vm1154, 1, 0
        %v1171 = vsel %vm1155, 1, 0
        %v1172 = vsel %vm1156, 1, 0
        %v1173 = vsel %vm1157, 1, 0
        %v1174 = vcvt.s32.f32 %v1158
        %v1175 = vcvt.s32.f32 %v1159
        %v1176 = vcvt.s32.f32 %v1160
        %v1177 = vcvt.s32.f32 %v1161
        %v1178 = vcvt.s32.f32 %v1162
        %v1179 = vcvt.s32.f32 %v1163
        %v1180 = vcvt.s32.f32 %v1164
        %v1181 = vcvt.s32.f32 %v1165
        %v1182 = vcvt.s32.f32 %v1166
        %v1183 = vcvt.s32.f32 %v1167
        %v1184 = vcvt.s32.f32 %v1168
        %v1185 = vcvt.s32.f32 %v1169
        %v1186 = vcvt.s32.f32 %v1170
        %v1187 = vcvt.s32.f32 %v1171
        %v1188 = vcvt.s32.f32 %v1172
        %v1189 = vcvt.s32.f32 %v1173
        %v1190 = vpack.c.bf16 %v1175, %v1174
        %v1191 = vpack.c.bf16 %v1177, %v1176
        %v1192 = vpack.c.bf16 %v1179, %v1178
        %v1193 = vpack.c.bf16 %v1181, %v1180
        %v1194 = vpack.c.bf16 %v1183, %v1182
        %v1195 = vpack.c.bf16 %v1185, %v1184
        %v1196 = vpack.c.bf16 %v1187, %v1186
        %v1197 = vpack.c.bf16 %v1189, %v1188
        %s1198 = scalar_lea.vmem %s1, 36
        %v1199 = vld [vmem:[%s1198] sm:$0xf]
        %v1200 = vld [vmem:[%s1198 + $0x4] sm:$0xf]
        %v1201 = vld [vmem:[%s1198 + $0x8] sm:$0x7]
        %v1205 = vunpack.c.l.b16 %v1199
        %v1206 = vunpack.c.l.b16 %v1200
        %v1207 = vunpack.c.l.b16 %v1201
        %v1208 = vpack.c.b16 %v1206, %v1205
        %v1209 = vpack.c.b16 %v1207, %v1207
        %v1212 = vsel %vm575, %v1190, 0
        %v1215 = vsel %vm575, %v1191, 0
        %v1218 = vsel %vm575, %v1192, 0
        %v1221 = vsel %vm575, %v1193, 0
        %v1224 = vsel %vm575, %v1194, 0
        %v1227 = vsel %vm575, %v1195, 0
        %v1230 = vsel %vm575, %v1196, 0
        %v1233 = vsel %vm575, %v1197, 0
        %v1236 = vand.u32 %v1209, %v603
        %1238 = vmatprep.subr.bf16.mxu0 0
        %1239 = vmatpush1.bf16.msra.mxu0 %v1208
        %1240 = vmatprep.subr.bf16.mxu0 0
        %1241 = vmatpush1.bf16.msra.mxu0 %v1236
        %1242 = vmatprep.subr.bf16.mxu0 0
        %1243 = vmatpush1.bf16.msra.mxu0 0
        %1244 = vmatprep.subr.bf16.mxu0 0
        %1245 = vmatpush1.bf16.msra.mxu0 0
        %1246 = vmatprep.subr.bf16.mxu0 0
        %1247 = vmatpush1.bf16.msra.mxu0 0
        %1248 = vmatprep.subr.bf16.mxu0 0
        %1249 = vmatpush1.bf16.msra.mxu0 0
        %1250 = vmatprep.subr.bf16.mxu0 0
        %1251 = vmatpush1.bf16.msra.mxu0 0
        %1252 = vmatprep.subr.bf16.mxu0 0
        %1253 = vmatpush1.bf16.msra.mxu0 0
        %1254 = vmatprep.subr.bf16.mxu0 0
        %1255 = vmatpush1.bf16.msra.mxu0 0
        %1256 = vmatprep.subr.bf16.mxu0 0
        %1257 = vmatpush1.bf16.msra.mxu0 0
        %1258 = vmatprep.subr.bf16.mxu0 0
        %1259 = vmatpush1.bf16.msra.mxu0 0
        %1260 = vmatprep.subr.bf16.mxu0 0
        %1261 = vmatpush1.bf16.msra.mxu0 0
        %1262 = vmatprep.subr.bf16.mxu0 0
        %1263 = vmatpush1.bf16.msra.mxu0 0
        %1264 = vmatprep.subr.bf16.mxu0 0
        %1265 = vmatpush1.bf16.msra.mxu0 0
        %1266 = vmatprep.subr.bf16.mxu0 0
        %1267 = vmatpush1.bf16.msra.mxu0 0
        %1268 = vmatprep.subr.bf16.mxu0 0
        %1269 = vmatpush1.bf16.msra.mxu0 0
        %1270 = vmatprep.mubr.bf16.mxu0 0
        %1271 = vmatmul.mubr.bf16.gmra.mrb[0].mxu0 %v1212
        %v1272 = vpop.f32.mrb[0].mxu0
        %v1273 = vadd.f32 0.0, %v1272
        %v1274 = vpop.f32.mrb[0].mxu0
        %v1275 = vpop.f32.mrb[0].mxu0
        %v1276 = vadd.f32 0.0, %v1275
        %v1277 = vpop.f32.mrb[0].mxu0
        %1278 = vmatprep.mubr.bf16.mxu0 0
        %1279 = vmatmul.mubr.bf16.gmra.mrb[0].mxu0 %v1215
        %v1280 = vpop.f32.mrb[0].mxu0
        %v1281 = vadd.f32 0.0, %v1280
        %v1282 = vpop.f32.mrb[0].mxu0
        %v1283 = vpop.f32.mrb[0].mxu0
        %v1284 = vadd.f32 0.0, %v1283
        %v1285 = vpop.f32.mrb[0].mxu0
        %1286 = vmatprep.mubr.bf16.mxu0 0
        %1287 = vmatmul.mubr.bf16.gmra.mrb[0].mxu0 %v1218
        %v1288 = vpop.f32.mrb[0].mxu0
        %v1289 = vadd.f32 0.0, %v1288
        %v1290 = vpop.f32.mrb[0].mxu0
        %v1291 = vpop.f32.mrb[0].mxu0
        %v1292 = vadd.f32 0.0, %v1291
        %v1293 = vpop.f32.mrb[0].mxu0
        %1294 = vmatprep.mubr.bf16.mxu0 0
        %1295 = vmatmul.mubr.bf16.gmra.mrb[0].mxu0 %v1221
        %v1296 = vpop.f32.mrb[0].mxu0
        %v1297 = vadd.f32 0.0, %v1296
        %v1298 = vpop.f32.mrb[0].mxu0
        %v1299 = vpop.f32.mrb[0].mxu0
        %v1300 = vadd.f32 0.0, %v1299
        %v1301 = vpop.f32.mrb[0].mxu0
        %1302 = vmatprep.mubr.bf16.mxu0 0
        %1303 = vmatmul.mubr.bf16.gmra.mrb[0].mxu0 %v1224
        %v1304 = vpop.f32.mrb[0].mxu0
        %v1305 = vadd.f32 0.0, %v1304
        %v1306 = vpop.f32.mrb[0].mxu0
        %v1307 = vpop.f32.mrb[0].mxu0
        %v1308 = vadd.f32 0.0, %v1307
        %v1309 = vpop.f32.mrb[0].mxu0
        %1310 = vmatprep.mubr.bf16.mxu0 0
        %1311 = vmatmul.mubr.bf16.gmra.mrb[0].mxu0 %v1227
        %v1312 = vpop.f32.mrb[0].mxu0
        %v1313 = vadd.f32 0.0, %v1312
        %v1314 = vpop.f32.mrb[0].mxu0
        %v1315 = vpop.f32.mrb[0].mxu0
        %v1316 = vadd.f32 0.0, %v1315
        %v1317 = vpop.f32.mrb[0].mxu0
        %1318 = vmatprep.mubr.bf16.mxu0 0
        %1319 = vmatmul.mubr.bf16.gmra.mrb[0].mxu0 %v1230
        %v1320 = vpop.f32.mrb[0].mxu0
        %v1321 = vadd.f32 0.0, %v1320
        %v1322 = vpop.f32.mrb[0].mxu0
        %v1323 = vpop.f32.mrb[0].mxu0
        %v1324 = vadd.f32 0.0, %v1323
        %v1325 = vpop.f32.mrb[0].mxu0
        %1326 = vmatprep.mubr.bf16.mxu0 0
        %1327 = vmatmul.mubr.bf16.gmra.mrb[0].mxu0 %v1233
        %v1328 = vpop.f32.mrb[0].mxu0
        %v1329 = vadd.f32 0.0, %v1328
        %v1330 = vpop.f32.mrb[0].mxu0
        %v1331 = vpop.f32.mrb[0].mxu0
        %v1332 = vadd.f32 0.0, %v1331
        %v1333 = vpop.f32.mrb[0].mxu0
        %1334 = vdwg.mxu0
        %v1335 = vadd.f32 %v1078, %v1273
        %v1336 = vadd.f32 %v1079, %v1276
        %v1337 = vadd.f32 %v1080, %v1281
        %v1338 = vadd.f32 %v1081, %v1284
        %v1339 = vadd.f32 %v1082, %v1289
        %v1340 = vadd.f32 %v1083, %v1292
        %v1341 = vadd.f32 %v1084, %v1297
        %v1342 = vadd.f32 %v1085, %v1300
        %v1343 = vadd.f32 %v1086, %v1305
        %v1344 = vadd.f32 %v1087, %v1308
        %v1345 = vadd.f32 %v1088, %v1313
        %v1346 = vadd.f32 %v1089, %v1316
        %v1347 = vadd.f32 %v1090, %v1321
        %v1348 = vadd.f32 %v1091, %v1324
        %v1349 = vadd.f32 %v1092, %v1329
        %v1350 = vadd.f32 %v1093, %v1332
        %v1351 = vld [vmem:[%s2] sm:$0x1]
        %v1352 = vlaneseq
        %v1353 = vshrl.u32 %v1352, 7
        %v1354 = vsub.s32 0, %v1353
        %v1355 = vrot.slane %v1351, %v1354
        %v1356 = vmul.f32 %v1335, %v1355
        %v1357 = vmul.f32 %v1336, %v1355
        %v1358 = vmul.f32 %v1337, %v1355
        %v1359 = vmul.f32 %v1338, %v1355
        %v1360 = vmul.f32 %v1339, %v1355
        %v1361 = vmul.f32 %v1340, %v1355
        %v1362 = vmul.f32 %v1341, %v1355
        %v1363 = vmul.f32 %v1342, %v1355
        %v1364 = vmul.f32 %v1343, %v1355
        %v1365 = vmul.f32 %v1344, %v1355
        %v1366 = vmul.f32 %v1345, %v1355
        %v1367 = vmul.f32 %v1346, %v1355
        %v1368 = vmul.f32 %v1347, %v1355
        %v1369 = vmul.f32 %v1348, %v1355
        %v1370 = vmul.f32 %v1349, %v1355
        %v1371 = vmul.f32 %v1350, %v1355
        %vm1372 = vcmask 261120
        %v1373 = vsel %vm1372, %v1356, 0.0
        %1374 = vadd.xlane.f32.xlu0 %v1373
        %v1375 = vpop.xlane.xlu0 %1374
        %v1376 = vsel %vm1372, %v1357, 0.0
        %1377 = vadd.xlane.f32.xlu0 %v1376
        %v1378 = vpop.xlane.xlu0 %1377
        %v1379 = vsel %vm1372, %v1358, 0.0
        %1380 = vadd.xlane.f32.xlu0 %v1379
        %v1381 = vpop.xlane.xlu0 %1380
        %v1382 = vsel %vm1372, %v1359, 0.0
        %1383 = vadd.xlane.f32.xlu0 %v1382
        %v1384 = vpop.xlane.xlu0 %1383
        %v1385 = vsel %vm1372, %v1360, 0.0
        %1386 = vadd.xlane.f32.xlu0 %v1385
        %v1387 = vpop.xlane.xlu0 %1386
        %v1388 = vsel %vm1372, %v1361, 0.0
        %1389 = vadd.xlane.f32.xlu0 %v1388
        %v1390 = vpop.xlane.xlu0 %1389
        %v1391 = vsel %vm1372, %v1362, 0.0
        %1392 = vadd.xlane.f32.xlu0 %v1391
        %v1393 = vpop.xlane.xlu0 %1392
        %v1394 = vsel %vm1372, %v1363, 0.0
        %1395 = vadd.xlane.f32.xlu0 %v1394
        %v1396 = vpop.xlane.xlu0 %1395
        %v1397 = vsel %vm1372, %v1364, 0.0
        %1398 = vadd.xlane.f32.xlu0 %v1397
        %v1399 = vpop.xlane.xlu0 %1398
        %v1400 = vsel %vm1372, %v1365, 0.0
        %1401 = vadd.xlane.f32.xlu0 %v1400
        %v1402 = vpop.xlane.xlu0 %1401
        %v1403 = vsel %vm1372, %v1366, 0.0
        %1404 = vadd.xlane.f32.xlu0 %v1403
        %v1405 = vpop.xlane.xlu0 %1404
        %v1406 = vsel %vm1372, %v1367, 0.0
        %1407 = vadd.xlane.f32.xlu0 %v1406
        %v1408 = vpop.xlane.xlu0 %1407
        %v1409 = vsel %vm1372, %v1368, 0.0
        %1410 = vadd.xlane.f32.xlu0 %v1409
        %v1411 = vpop.xlane.xlu0 %1410
        %v1412 = vsel %vm1372, %v1369, 0.0
        %1413 = vadd.xlane.f32.xlu0 %v1412
        %v1414 = vpop.xlane.xlu0 %1413
        %v1415 = vsel %vm1372, %v1370, 0.0
        %1416 = vadd.xlane.f32.xlu0 %v1415
        %v1417 = vpop.xlane.xlu0 %1416
        %v1418 = vsel %vm1372, %v1371, 0.0
        %1419 = vadd.xlane.f32.xlu0 %v1418
        %v1420 = vpop.xlane.xlu0 %1419
        %v1421 = vmul.f32 %v1335, %v1375
        %v1422 = vmul.f32 %v1336, %v1378
        %v1423 = vmul.f32 %v1337, %v1381
        %v1424 = vmul.f32 %v1338, %v1384
        %v1425 = vmul.f32 %v1339, %v1387
        %v1426 = vmul.f32 %v1340, %v1390
        %v1427 = vmul.f32 %v1341, %v1393
        %v1428 = vmul.f32 %v1342, %v1396
        %v1429 = vmul.f32 %v1343, %v1399
        %v1430 = vmul.f32 %v1344, %v1402
        %v1431 = vmul.f32 %v1345, %v1405
        %v1432 = vmul.f32 %v1346, %v1408
        %v1433 = vmul.f32 %v1347, %v1411
        %v1434 = vmul.f32 %v1348, %v1414
        %v1435 = vmul.f32 %v1349, %v1417
        %v1436 = vmul.f32 %v1350, %v1420
        %v1437 = vld [vmem:[%s3] sm:$0x1]
        %v1438 = vlaneseq
        %v1439 = vshrl.u32 %v1438, 7
        %v1440 = vsub.s32 0, %v1439
        %v1441 = vrot.slane %v1437, %v1440
        %v1442 = vadd.f32 %v1421, %v1441
        %v1443 = vadd.f32 %v1422, %v1441
        %v1444 = vadd.f32 %v1423, %v1441
        %v1445 = vadd.f32 %v1424, %v1441
        %v1446 = vadd.f32 %v1425, %v1441
        %v1447 = vadd.f32 %v1426, %v1441
        %v1448 = vadd.f32 %v1427, %v1441
        %v1449 = vadd.f32 %v1428, %v1441
        %v1450 = vadd.f32 %v1429, %v1441
        %v1451 = vadd.f32 %v1430, %v1441
        %v1452 = vadd.f32 %v1431, %v1441
        %v1453 = vadd.f32 %v1432, %v1441
        %v1454 = vadd.f32 %v1433, %v1441
        %v1455 = vadd.f32 %v1434, %v1441
        %v1456 = vadd.f32 %v1435, %v1441
        %v1457 = vadd.f32 %v1436, %v1441
        %v1458 = vadd.f32 %v1442, %v1335
        %v1459 = vadd.f32 %v1443, %v1336
        %v1460 = vadd.f32 %v1444, %v1337
        %v1461 = vadd.f32 %v1445, %v1338
        %v1462 = vadd.f32 %v1446, %v1339
        %v1463 = vadd.f32 %v1447, %v1340
        %v1464 = vadd.f32 %v1448, %v1341
        %v1465 = vadd.f32 %v1449, %v1342
        %v1466 = vadd.f32 %v1450, %v1343
        %v1467 = vadd.f32 %v1451, %v1344
        %v1468 = vadd.f32 %v1452, %v1345
        %v1469 = vadd.f32 %v1453, %v1346
        %v1470 = vadd.f32 %v1454, %v1347
        %v1471 = vadd.f32 %v1455, %v1348
        %v1472 = vadd.f32 %v1456, %v1349
        %v1473 = vadd.f32 %v1457, %v1350
        %v1474 = vld [vmem:[%s2 + $0x1] sm:$0x1]
        %v1475 = vlaneseq
        %v1476 = vshrl.u32 %v1475, 7
        %v1477 = vsub.s32 0, %v1476
        %v1478 = vrot.slane %v1474, %v1477
        %v1479 = vmul.f32 %v1458, %v1478
        %v1480 = vmul.f32 %v1459, %v1478
        %v1481 = vmul.f32 %v1460, %v1478
        %v1482 = vmul.f32 %v1461, %v1478
        %v1483 = vmul.f32 %v1462, %v1478
        %v1484 = vmul.f32 %v1463, %v1478
        %v1485 = vmul.f32 %v1464, %v1478
        %v1486 = vmul.f32 %v1465, %v1478
        %v1487 = vmul.f32 %v1466, %v1478
        %v1488 = vmul.f32 %v1467, %v1478
        %v1489 = vmul.f32 %v1468, %v1478
        %v1490 = vmul.f32 %v1469, %v1478
        %v1491 = vmul.f32 %v1470, %v1478
        %v1492 = vmul.f32 %v1471, %v1478
        %v1493 = vmul.f32 %v1472, %v1478
        %v1494 = vmul.f32 %v1473, %v1478
        %v1495 = vsel %vm1372, %v1479, 0.0
        %1496 = vadd.xlane.f32.xlu0 %v1495
        %v1497 = vpop.xlane.xlu0 %1496
        %v1498 = vsel %vm1372, %v1480, 0.0
        %1499 = vadd.xlane.f32.xlu0 %v1498
        %v1500 = vpop.xlane.xlu0 %1499
        %v1501 = vsel %vm1372, %v1481, 0.0
        %1502 = vadd.xlane.f32.xlu0 %v1501
        %v1503 = vpop.xlane.xlu0 %1502
        %v1504 = vsel %vm1372, %v1482, 0.0
        %1505 = vadd.xlane.f32.xlu0 %v1504
        %v1506 = vpop.xlane.xlu0 %1505
        %v1507 = vsel %vm1372, %v1483, 0.0
        %1508 = vadd.xlane.f32.xlu0 %v1507
        %v1509 = vpop.xlane.xlu0 %1508
        %v1510 = vsel %vm1372, %v1484, 0.0
        %1511 = vadd.xlane.f32.xlu0 %v1510
        %v1512 = vpop.xlane.xlu0 %1511
        %v1513 = vsel %vm1372, %v1485, 0.0
        %1514 = vadd.xlane.f32.xlu0 %v1513
        %v1515 = vpop.xlane.xlu0 %1514
        %v1516 = vsel %vm1372, %v1486, 0.0
        %1517 = vadd.xlane.f32.xlu0 %v1516
        %v1518 = vpop.xlane.xlu0 %1517
        %v1519 = vsel %vm1372, %v1487, 0.0
        %1520 = vadd.xlane.f32.xlu0 %v1519
        %v1521 = vpop.xlane.xlu0 %1520
        %v1522 = vsel %vm1372, %v1488, 0.0
        %1523 = vadd.xlane.f32.xlu0 %v1522
        %v1524 = vpop.xlane.xlu0 %1523
        %v1525 = vsel %vm1372, %v1489, 0.0
        %1526 = vadd.xlane.f32.xlu0 %v1525
        %v1527 = vpop.xlane.xlu0 %1526
        %v1528 = vsel %vm1372, %v1490, 0.0
        %1529 = vadd.xlane.f32.xlu0 %v1528
        %v1530 = vpop.xlane.xlu0 %1529
        %v1531 = vsel %vm1372, %v1491, 0.0
        %1532 = vadd.xlane.f32.xlu0 %v1531
        %v1533 = vpop.xlane.xlu0 %1532
        %v1534 = vsel %vm1372, %v1492, 0.0
        %1535 = vadd.xlane.f32.xlu0 %v1534
        %v1536 = vpop.xlane.xlu0 %1535
        %v1537 = vsel %vm1372, %v1493, 0.0
        %1538 = vadd.xlane.f32.xlu0 %v1537
        %v1539 = vpop.xlane.xlu0 %1538
        %v1540 = vsel %vm1372, %v1494, 0.0
        %1541 = vadd.xlane.f32.xlu0 %v1540
        %v1542 = vpop.xlane.xlu0 %1541
        %v1543 = vmul.f32 %v1335, %v1497
        %v1544 = vmul.f32 %v1336, %v1500
        %v1545 = vmul.f32 %v1337, %v1503
        %v1546 = vmul.f32 %v1338, %v1506
        %v1547 = vmul.f32 %v1339, %v1509
        %v1548 = vmul.f32 %v1340, %v1512
        %v1549 = vmul.f32 %v1341, %v1515
        %v1550 = vmul.f32 %v1342, %v1518
        %v1551 = vmul.f32 %v1343, %v1521
        %v1552 = vmul.f32 %v1344, %v1524
        %v1553 = vmul.f32 %v1345, %v1527
        %v1554 = vmul.f32 %v1346, %v1530
        %v1555 = vmul.f32 %v1347, %v1533
        %v1556 = vmul.f32 %v1348, %v1536
        %v1557 = vmul.f32 %v1349, %v1539
        %v1558 = vmul.f32 %v1350, %v1542
        %v1559 = vld [vmem:[%s3 + $0x1] sm:$0x1]
        %v1560 = vlaneseq
        %v1561 = vshrl.u32 %v1560, 7
        %v1562 = vsub.s32 0, %v1561
        %v1563 = vrot.slane %v1559, %v1562
        %v1564 = vadd.f32 %v1543, %v1563
        %v1565 = vadd.f32 %v1544, %v1563
        %v1566 = vadd.f32 %v1545, %v1563
        %v1567 = vadd.f32 %v1546, %v1563
        %v1568 = vadd.f32 %v1547, %v1563
        %v1569 = vadd.f32 %v1548, %v1563
        %v1570 = vadd.f32 %v1549, %v1563
        %v1571 = vadd.f32 %v1550, %v1563
        %v1572 = vadd.f32 %v1551, %v1563
        %v1573 = vadd.f32 %v1552, %v1563
        %v1574 = vadd.f32 %v1553, %v1563
        %v1575 = vadd.f32 %v1554, %v1563
        %v1576 = vadd.f32 %v1555, %v1563
        %v1577 = vadd.f32 %v1556, %v1563
        %v1578 = vadd.f32 %v1557, %v1563
        %v1579 = vadd.f32 %v1558, %v1563
        %v1580 = vadd.f32 %v1564, %v1458
        %v1581 = vadd.f32 %v1565, %v1459
        %v1582 = vadd.f32 %v1566, %v1460
        %v1583 = vadd.f32 %v1567, %v1461
        %v1584 = vadd.f32 %v1568, %v1462
        %v1585 = vadd.f32 %v1569, %v1463
        %v1586 = vadd.f32 %v1570, %v1464
        %v1587 = vadd.f32 %v1571, %v1465
        %v1588 = vadd.f32 %v1572, %v1466
        %v1589 = vadd.f32 %v1573, %v1467
        %v1590 = vadd.f32 %v1574, %v1468
        %v1591 = vadd.f32 %v1575, %v1469
        %v1592 = vadd.f32 %v1576, %v1470
        %v1593 = vadd.f32 %v1577, %v1471
        %v1594 = vadd.f32 %v1578, %v1472
        %v1595 = vadd.f32 %v1579, %v1473
        %v1596 = vld [vmem:[%s2 + $0x2] sm:$0x1]
        %v1597 = vlaneseq
        %v1598 = vshrl.u32 %v1597, 7
        %v1599 = vsub.s32 0, %v1598
        %v1600 = vrot.slane %v1596, %v1599
        %v1601 = vmul.f32 %v1580, %v1600
        %v1602 = vmul.f32 %v1581, %v1600
        %v1603 = vmul.f32 %v1582, %v1600
        %v1604 = vmul.f32 %v1583, %v1600
        %v1605 = vmul.f32 %v1584, %v1600
        %v1606 = vmul.f32 %v1585, %v1600
        %v1607 = vmul.f32 %v1586, %v1600
        %v1608 = vmul.f32 %v1587, %v1600
        %v1609 = vmul.f32 %v1588, %v1600
        %v1610 = vmul.f32 %v1589, %v1600
        %v1611 = vmul.f32 %v1590, %v1600
        %v1612 = vmul.f32 %v1591, %v1600
        %v1613 = vmul.f32 %v1592, %v1600
        %v1614 = vmul.f32 %v1593, %v1600
        %v1615 = vmul.f32 %v1594, %v1600
        %v1616 = vmul.f32 %v1595, %v1600
        %v1617 = vsel %vm1372, %v1601, 0.0
        %1618 = vadd.xlane.f32.xlu0 %v1617
        %v1619 = vpop.xlane.xlu0 %1618
        %v1620 = vsel %vm1372, %v1602, 0.0
        %1621 = vadd.xlane.f32.xlu0 %v1620
        %v1622 = vpop.xlane.xlu0 %1621
        %v1623 = vsel %vm1372, %v1603, 0.0
        %1624 = vadd.xlane.f32.xlu0 %v1623
        %v1625 = vpop.xlane.xlu0 %1624
        %v1626 = vsel %vm1372, %v1604, 0.0
        %1627 = vadd.xlane.f32.xlu0 %v1626
        %v1628 = vpop.xlane.xlu0 %1627
        %v1629 = vsel %vm1372, %v1605, 0.0
        %1630 = vadd.xlane.f32.xlu0 %v1629
        %v1631 = vpop.xlane.xlu0 %1630
        %v1632 = vsel %vm1372, %v1606, 0.0
        %1633 = vadd.xlane.f32.xlu0 %v1632
        %v1634 = vpop.xlane.xlu0 %1633
        %v1635 = vsel %vm1372, %v1607, 0.0
        %1636 = vadd.xlane.f32.xlu0 %v1635
        %v1637 = vpop.xlane.xlu0 %1636
        %v1638 = vsel %vm1372, %v1608, 0.0
        %1639 = vadd.xlane.f32.xlu0 %v1638
        %v1640 = vpop.xlane.xlu0 %1639
        %v1641 = vsel %vm1372, %v1609, 0.0
        %1642 = vadd.xlane.f32.xlu0 %v1641
        %v1643 = vpop.xlane.xlu0 %1642
        %v1644 = vsel %vm1372, %v1610, 0.0
        %1645 = vadd.xlane.f32.xlu0 %v1644
        %v1646 = vpop.xlane.xlu0 %1645
        %v1647 = vsel %vm1372, %v1611, 0.0
        %1648 = vadd.xlane.f32.xlu0 %v1647
        %v1649 = vpop.xlane.xlu0 %1648
        %v1650 = vsel %vm1372, %v1612, 0.0
        %1651 = vadd.xlane.f32.xlu0 %v1650
        %v1652 = vpop.xlane.xlu0 %1651
        %v1653 = vsel %vm1372, %v1613, 0.0
        %1654 = vadd.xlane.f32.xlu0 %v1653
        %v1655 = vpop.xlane.xlu0 %1654
        %v1656 = vsel %vm1372, %v1614, 0.0
        %1657 = vadd.xlane.f32.xlu0 %v1656
        %v1658 = vpop.xlane.xlu0 %1657
        %v1659 = vsel %vm1372, %v1615, 0.0
        %1660 = vadd.xlane.f32.xlu0 %v1659
        %v1661 = vpop.xlane.xlu0 %1660
        %v1662 = vsel %vm1372, %v1616, 0.0
        %1663 = vadd.xlane.f32.xlu0 %v1662
        %v1664 = vpop.xlane.xlu0 %1663
        %v1665 = vmul.f32 %v1335, %v1619
        %v1666 = vmul.f32 %v1336, %v1622
        %v1667 = vmul.f32 %v1337, %v1625
        %v1668 = vmul.f32 %v1338, %v1628
        %v1669 = vmul.f32 %v1339, %v1631
        %v1670 = vmul.f32 %v1340, %v1634
        %v1671 = vmul.f32 %v1341, %v1637
        %v1672 = vmul.f32 %v1342, %v1640
        %v1673 = vmul.f32 %v1343, %v1643
        %v1674 = vmul.f32 %v1344, %v1646
        %v1675 = vmul.f32 %v1345, %v1649
        %v1676 = vmul.f32 %v1346, %v1652
        %v1677 = vmul.f32 %v1347, %v1655
        %v1678 = vmul.f32 %v1348, %v1658
        %v1679 = vmul.f32 %v1349, %v1661
        %v1680 = vmul.f32 %v1350, %v1664
        %v1681 = vld [vmem:[%s3 + $0x2] sm:$0x1]
        %v1682 = vlaneseq
        %v1683 = vshrl.u32 %v1682, 7
        %v1684 = vsub.s32 0, %v1683
        %v1685 = vrot.slane %v1681, %v1684
        %v1686 = vadd.f32 %v1665, %v1685
        %v1687 = vadd.f32 %v1666, %v1685
        %v1688 = vadd.f32 %v1667, %v1685
        %v1689 = vadd.f32 %v1668, %v1685
        %v1690 = vadd.f32 %v1669, %v1685
        %v1691 = vadd.f32 %v1670, %v1685
        %v1692 = vadd.f32 %v1671, %v1685
        %v1693 = vadd.f32 %v1672, %v1685
        %v1694 = vadd.f32 %v1673, %v1685
        %v1695 = vadd.f32 %v1674, %v1685
        %v1696 = vadd.f32 %v1675, %v1685
        %v1697 = vadd.f32 %v1676, %v1685
        %v1698 = vadd.f32 %v1677, %v1685
        %v1699 = vadd.f32 %v1678, %v1685
        %v1700 = vadd.f32 %v1679, %v1685
        %v1701 = vadd.f32 %v1680, %v1685
        %v1702 = vadd.f32 %v1686, %v1580
        %v1703 = vadd.f32 %v1687, %v1581
        %v1704 = vadd.f32 %v1688, %v1582
        %v1705 = vadd.f32 %v1689, %v1583
        %v1706 = vadd.f32 %v1690, %v1584
        %v1707 = vadd.f32 %v1691, %v1585
        %v1708 = vadd.f32 %v1692, %v1586
        %v1709 = vadd.f32 %v1693, %v1587
        %v1710 = vadd.f32 %v1694, %v1588
        %v1711 = vadd.f32 %v1695, %v1589
        %v1712 = vadd.f32 %v1696, %v1590
        %v1713 = vadd.f32 %v1697, %v1591
        %v1714 = vadd.f32 %v1698, %v1592
        %v1715 = vadd.f32 %v1699, %v1593
        %v1716 = vadd.f32 %v1700, %v1594
        %v1717 = vadd.f32 %v1701, %v1595
        %v1718 = vld [vmem:[%s4] sm:$0xf]
        %v1719 = vld [vmem:[%s4 + $0x4] sm:$0xf]
        %v1720 = vld [vmem:[%s4 + $0x8] sm:$0xf]
        %v1721 = vld [vmem:[%s4 + $0xc] sm:$0xf]
        %v1722 = vld [vmem:[%s5] sm:$0x1]
        %v1723 = vpack.c.bf16 %v1336, %v1335
        %v1724 = vpack.c.bf16 %v1338, %v1337
        %v1725 = vpack.c.bf16 %v1340, %v1339
        %v1726 = vpack.c.bf16 %v1342, %v1341
        %v1727 = vpack.c.bf16 %v1344, %v1343
        %v1728 = vpack.c.bf16 %v1346, %v1345
        %v1729 = vpack.c.bf16 %v1348, %v1347
        %v1730 = vpack.c.bf16 %v1350, %v1349
        %v1732 = vlaneseq
        %v1733 = vshrl.u32 %v1732, 7
        %v1734 = vsub.s32 0, %v1733
        %v1735 = vrot.slane %v1722, %v1734
        %v1741 = vunpack.c.l.b16 %v1718
        %v1742 = vunpack.c.l.b16 %v1719
        %v1743 = vunpack.c.l.b16 %v1720
        %v1744 = vunpack.c.l.b16 %v1721
        %v1745 = vpack.c.b16 %v1742, %v1741
        %v1746 = vpack.c.b16 %v1744, %v1743
        %v1750 = vsel %vm1372, %v1723, 0
        %v1753 = vsel %vm1372, %v1724, 0
        %v1756 = vsel %vm1372, %v1725, 0
        %v1759 = vsel %vm1372, %v1726, 0
        %v1762 = vsel %vm1372, %v1727, 0
        %v1765 = vsel %vm1372, %v1728, 0
        %v1768 = vsel %vm1372, %v1729, 0
        %v1771 = vsel %vm1372, %v1730, 0
        %1773 = vmatprep.subr.bf16.mxu0 0
        %1774 = vmatpush1.bf16.msra.mxu0 %v1745
        %1775 = vmatprep.subr.bf16.mxu0 0
        %1776 = vmatpush1.bf16.msra.mxu0 %v1746
        %1777 = vmatprep.subr.bf16.mxu0 0
        %1778 = vmatpush1.bf16.msra.mxu0 0
        %1779 = vmatprep.subr.bf16.mxu0 0
        %1780 = vmatpush1.bf16.msra.mxu0 0
        %1781 = vmatprep.subr.bf16.mxu0 0
        %1782 = vmatpush1.bf16.msra.mxu0 0
        %1783 = vmatprep.subr.bf16.mxu0 0
        %1784 = vmatpush1.bf16.msra.mxu0 0
        %1785 = vmatprep.subr.bf16.mxu0 0
        %1786 = vmatpush1.bf16.msra.mxu0 0
        %1787 = vmatprep.subr.bf16.mxu0 0
        %1788 = vmatpush1.bf16.msra.mxu0 0
        %1789 = vmatprep.subr.bf16.mxu0 0
        %1790 = vmatpush1.bf16.msra.mxu0 0
        %1791 = vmatprep.subr.bf16.mxu0 0
        %1792 = vmatpush1.bf16.msra.mxu0 0
        %1793 = vmatprep.subr.bf16.mxu0 0
        %1794 = vmatpush1.bf16.msra.mxu0 0
        %1795 = vmatprep.subr.bf16.mxu0 0
        %1796 = vmatpush1.bf16.msra.mxu0 0
        %1797 = vmatprep.subr.bf16.mxu0 0
        %1798 = vmatpush1.bf16.msra.mxu0 0
        %1799 = vmatprep.subr.bf16.mxu0 0
        %1800 = vmatpush1.bf16.msra.mxu0 0
        %1801 = vmatprep.subr.bf16.mxu0 0
        %1802 = vmatpush1.bf16.msra.mxu0 0
        %1803 = vmatprep.subr.bf16.mxu0 0
        %1804 = vmatpush1.bf16.msra.mxu0 0
        %1805 = vmatprep.mubr.bf16.mxu0 0
        %1806 = vmatmul.mubr.bf16.gmra.mrb[0].mxu0 %v1750
        %v1807 = vpop.f32.mrb[0].mxu0
        %v1808 = vadd.f32 %v1735, %v1807
        %v1809 = vpop.f32.mrb[0].mxu0
        %v1810 = vpop.f32.mrb[0].mxu0
        %v1811 = vadd.f32 %v1735, %v1810
        %v1812 = vpop.f32.mrb[0].mxu0
        %1813 = vmatprep.mubr.bf16.mxu0 0
        %1814 = vmatmul.mubr.bf16.gmra.mrb[0].mxu0 %v1753
        %v1815 = vpop.f32.mrb[0].mxu0
        %v1816 = vadd.f32 %v1735, %v1815
        %v1817 = vpop.f32.mrb[0].mxu0
        %v1818 = vpop.f32.mrb[0].mxu0
        %v1819 = vadd.f32 %v1735, %v1818
        %v1820 = vpop.f32.mrb[0].mxu0
        %1821 = vmatprep.mubr.bf16.mxu0 0
        %1822 = vmatmul.mubr.bf16.gmra.mrb[0].mxu0 %v1756
        %v1823 = vpop.f32.mrb[0].mxu0
        %v1824 = vadd.f32 %v1735, %v1823
        %v1825 = vpop.f32.mrb[0].mxu0
        %v1826 = vpop.f32.mrb[0].mxu0
        %v1827 = vadd.f32 %v1735, %v1826
        %v1828 = vpop.f32.mrb[0].mxu0
        %1829 = vmatprep.mubr.bf16.mxu0 0
        %1830 = vmatmul.mubr.bf16.gmra.mrb[0].mxu0 %v1759
        %v1831 = vpop.f32.mrb[0].mxu0
        %v1832 = vadd.f32 %v1735, %v1831
        %v1833 = vpop.f32.mrb[0].mxu0
        %v1834 = vpop.f32.mrb[0].mxu0
        %v1835 = vadd.f32 %v1735, %v1834
        %v1836 = vpop.f32.mrb[0].mxu0
        %1837 = vmatprep.mubr.bf16.mxu0 0
        %1838 = vmatmul.mubr.bf16.gmra.mrb[0].mxu0 %v1762
        %v1839 = vpop.f32.mrb[0].mxu0
        %v1840 = vadd.f32 %v1735, %v1839
        %v1841 = vpop.f32.mrb[0].mxu0
        %v1842 = vpop.f32.mrb[0].mxu0
        %v1843 = vadd.f32 %v1735, %v1842
        %v1844 = vpop.f32.mrb[0].mxu0
        %1845 = vmatprep.mubr.bf16.mxu0 0
        %1846 = vmatmul.mubr.bf16.gmra.mrb[0].mxu0 %v1765
        %v1847 = vpop.f32.mrb[0].mxu0
        %v1848 = vadd.f32 %v1735, %v1847
        %v1849 = vpop.f32.mrb[0].mxu0
        %v1850 = vpop.f32.mrb[0].mxu0
        %v1851 = vadd.f32 %v1735, %v1850
        %v1852 = vpop.f32.mrb[0].mxu0
        %1853 = vmatprep.mubr.bf16.mxu0 0
        %1854 = vmatmul.mubr.bf16.gmra.mrb[0].mxu0 %v1768
        %v1855 = vpop.f32.mrb[0].mxu0
        %v1856 = vadd.f32 %v1735, %v1855
        %v1857 = vpop.f32.mrb[0].mxu0
        %v1858 = vpop.f32.mrb[0].mxu0
        %v1859 = vadd.f32 %v1735, %v1858
        %v1860 = vpop.f32.mrb[0].mxu0
        %1861 = vmatprep.mubr.bf16.mxu0 0
        %1862 = vmatmul.mubr.bf16.gmra.mrb[0].mxu0 %v1771
        %v1863 = vpop.f32.mrb[0].mxu0
        %v1864 = vadd.f32 %v1735, %v1863
        %v1865 = vpop.f32.mrb[0].mxu0
        %v1866 = vpop.f32.mrb[0].mxu0
        %v1867 = vadd.f32 %v1735, %v1866
        %v1868 = vpop.f32.mrb[0].mxu0
        %1869 = vdwg.mxu0
        %v1870 = vmax.f32 %v1808, 0.0
        %v1871 = vmax.f32 %v1811, 0.0
        %v1872 = vmax.f32 %v1816, 0.0
        %v1873 = vmax.f32 %v1819, 0.0
        %v1874 = vmax.f32 %v1824, 0.0
        %v1875 = vmax.f32 %v1827, 0.0
        %v1876 = vmax.f32 %v1832, 0.0
        %v1877 = vmax.f32 %v1835, 0.0
        %v1878 = vmax.f32 %v1840, 0.0
        %v1879 = vmax.f32 %v1843, 0.0
        %v1880 = vmax.f32 %v1848, 0.0
        %v1881 = vmax.f32 %v1851, 0.0
        %v1882 = vmax.f32 %v1856, 0.0
        %v1883 = vmax.f32 %v1859, 0.0
        %v1884 = vmax.f32 %v1864, 0.0
        %v1885 = vmax.f32 %v1867, 0.0
        %v1886 = vld [vmem:[%s6] sm:$0xf]
        %v1887 = vld [vmem:[%s6 + $0x4] sm:$0xf]
        %v1888 = vld [vmem:[%s6 + $0x8] sm:$0xf]
        %v1889 = vld [vmem:[%s6 + $0xc] sm:$0xf]
        %v1890 = vld [vmem:[%s7] sm:$0x1]
        %v1891 = vpack.c.bf16 %v1871, %v1870
        %v1892 = vpack.c.bf16 %v1873, %v1872
        %v1893 = vpack.c.bf16 %v1875, %v1874
        %v1894 = vpack.c.bf16 %v1877, %v1876
        %v1895 = vpack.c.bf16 %v1879, %v1878
        %v1896 = vpack.c.bf16 %v1881, %v1880
        %v1897 = vpack.c.bf16 %v1883, %v1882
        %v1898 = vpack.c.bf16 %v1885, %v1884
        %v1900 = vlaneseq
        %v1901 = vshrl.u32 %v1900, 7
        %v1902 = vsub.s32 0, %v1901
        %v1903 = vrot.slane %v1890, %v1902
        %v1909 = vunpack.c.l.b16 %v1886
        %v1910 = vunpack.c.l.b16 %v1887
        %v1911 = vunpack.c.l.b16 %v1888
        %v1912 = vunpack.c.l.b16 %v1889
        %v1913 = vpack.c.b16 %v1910, %v1909
        %v1914 = vpack.c.b16 %v1912, %v1911
        %v1918 = vsel %vm1372, %v1891, 0
        %v1921 = vsel %vm1372, %v1892, 0
        %v1924 = vsel %vm1372, %v1893, 0
        %v1927 = vsel %vm1372, %v1894, 0
        %v1930 = vsel %vm1372, %v1895, 0
        %v1933 = vsel %vm1372, %v1896, 0
        %v1936 = vsel %vm1372, %v1897, 0
        %v1939 = vsel %vm1372, %v1898, 0
        %1941 = vmatprep.subr.bf16.mxu0 0
        %1942 = vmatpush1.bf16.msra.mxu0 %v1913
        %1943 = vmatprep.subr.bf16.mxu0 0
        %1944 = vmatpush1.bf16.msra.mxu0 %v1914
        %1945 = vmatprep.subr.bf16.mxu0 0
        %1946 = vmatpush1.bf16.msra.mxu0 0
        %1947 = vmatprep.subr.bf16.mxu0 0
        %1948 = vmatpush1.bf16.msra.mxu0 0
        %1949 = vmatprep.subr.bf16.mxu0 0
        %1950 = vmatpush1.bf16.msra.mxu0 0
        %1951 = vmatprep.subr.bf16.mxu0 0
        %1952 = vmatpush1.bf16.msra.mxu0 0
        %1953 = vmatprep.subr.bf16.mxu0 0
        %1954 = vmatpush1.bf16.msra.mxu0 0
        %1955 = vmatprep.subr.bf16.mxu0 0
        %1956 = vmatpush1.bf16.msra.mxu0 0
        %1957 = vmatprep.subr.bf16.mxu0 0
        %1958 = vmatpush1.bf16.msra.mxu0 0
        %1959 = vmatprep.subr.bf16.mxu0 0
        %1960 = vmatpush1.bf16.msra.mxu0 0
        %1961 = vmatprep.subr.bf16.mxu0 0
        %1962 = vmatpush1.bf16.msra.mxu0 0
        %1963 = vmatprep.subr.bf16.mxu0 0
        %1964 = vmatpush1.bf16.msra.mxu0 0
        %1965 = vmatprep.subr.bf16.mxu0 0
        %1966 = vmatpush1.bf16.msra.mxu0 0
        %1967 = vmatprep.subr.bf16.mxu0 0
        %1968 = vmatpush1.bf16.msra.mxu0 0
        %1969 = vmatprep.subr.bf16.mxu0 0
        %1970 = vmatpush1.bf16.msra.mxu0 0
        %1971 = vmatprep.subr.bf16.mxu0 0
        %1972 = vmatpush1.bf16.msra.mxu0 0
        %1973 = vmatprep.mubr.bf16.mxu0 0
        %1974 = vmatmul.mubr.bf16.gmra.mrb[0].mxu0 %v1918
        %v1975 = vpop.f32.mrb[0].mxu0
        %v1976 = vadd.f32 %v1903, %v1975
        %v1977 = vpop.f32.mrb[0].mxu0
        %v1978 = vpop.f32.mrb[0].mxu0
        %v1979 = vadd.f32 %v1903, %v1978
        %v1980 = vpop.f32.mrb[0].mxu0
        %1981 = vmatprep.mubr.bf16.mxu0 0
        %1982 = vmatmul.mubr.bf16.gmra.mrb[0].mxu0 %v1921
        %v1983 = vpop.f32.mrb[0].mxu0
        %v1984 = vadd.f32 %v1903, %v1983
        %v1985 = vpop.f32.mrb[0].mxu0
        %v1986 = vpop.f32.mrb[0].mxu0
        %v1987 = vadd.f32 %v1903, %v1986
        %v1988 = vpop.f32.mrb[0].mxu0
        %1989 = vmatprep.mubr.bf16.mxu0 0
        %1990 = vmatmul.mubr.bf16.gmra.mrb[0].mxu0 %v1924
        %v1991 = vpop.f32.mrb[0].mxu0
        %v1992 = vadd.f32 %v1903, %v1991
        %v1993 = vpop.f32.mrb[0].mxu0
        %v1994 = vpop.f32.mrb[0].mxu0
        %v1995 = vadd.f32 %v1903, %v1994
        %v1996 = vpop.f32.mrb[0].mxu0
        %1997 = vmatprep.mubr.bf16.mxu0 0
        %1998 = vmatmul.mubr.bf16.gmra.mrb[0].mxu0 %v1927
        %v1999 = vpop.f32.mrb[0].mxu0
        %v2000 = vadd.f32 %v1903, %v1999
        %v2001 = vpop.f32.mrb[0].mxu0
        %v2002 = vpop.f32.mrb[0].mxu0
        %v2003 = vadd.f32 %v1903, %v2002
        %v2004 = vpop.f32.mrb[0].mxu0
        %2005 = vmatprep.mubr.bf16.mxu0 0
        %2006 = vmatmul.mubr.bf16.gmra.mrb[0].mxu0 %v1930
        %v2007 = vpop.f32.mrb[0].mxu0
        %v2008 = vadd.f32 %v1903, %v2007
        %v2009 = vpop.f32.mrb[0].mxu0
        %v2010 = vpop.f32.mrb[0].mxu0
        %v2011 = vadd.f32 %v1903, %v2010
        %v2012 = vpop.f32.mrb[0].mxu0
        %2013 = vmatprep.mubr.bf16.mxu0 0
        %2014 = vmatmul.mubr.bf16.gmra.mrb[0].mxu0 %v1933
        %v2015 = vpop.f32.mrb[0].mxu0
        %v2016 = vadd.f32 %v1903, %v2015
        %v2017 = vpop.f32.mrb[0].mxu0
        %v2018 = vpop.f32.mrb[0].mxu0
        %v2019 = vadd.f32 %v1903, %v2018
        %v2020 = vpop.f32.mrb[0].mxu0
        %2021 = vmatprep.mubr.bf16.mxu0 0
        %2022 = vmatmul.mubr.bf16.gmra.mrb[0].mxu0 %v1936
        %v2023 = vpop.f32.mrb[0].mxu0
        %v2024 = vadd.f32 %v1903, %v2023
        %v2025 = vpop.f32.mrb[0].mxu0
        %v2026 = vpop.f32.mrb[0].mxu0
        %v2027 = vadd.f32 %v1903, %v2026
        %v2028 = vpop.f32.mrb[0].mxu0
        %2029 = vmatprep.mubr.bf16.mxu0 0
        %2030 = vmatmul.mubr.bf16.gmra.mrb[0].mxu0 %v1939
        %v2031 = vpop.f32.mrb[0].mxu0
        %v2032 = vadd.f32 %v1903, %v2031
        %v2033 = vpop.f32.mrb[0].mxu0
        %v2034 = vpop.f32.mrb[0].mxu0
        %v2035 = vadd.f32 %v1903, %v2034
        %v2036 = vpop.f32.mrb[0].mxu0
        %2037 = vdwg.mxu0
        %v2038 = vmax.f32 %v1976, 0.0
        %v2039 = vmax.f32 %v1979, 0.0
        %v2040 = vmax.f32 %v1984, 0.0
        %v2041 = vmax.f32 %v1987, 0.0
        %v2042 = vmax.f32 %v1992, 0.0
        %v2043 = vmax.f32 %v1995, 0.0
        %v2044 = vmax.f32 %v2000, 0.0
        %v2045 = vmax.f32 %v2003, 0.0
        %v2046 = vmax.f32 %v2008, 0.0
        %v2047 = vmax.f32 %v2011, 0.0
        %v2048 = vmax.f32 %v2016, 0.0
        %v2049 = vmax.f32 %v2019, 0.0
        %v2050 = vmax.f32 %v2024, 0.0
        %v2051 = vmax.f32 %v2027, 0.0
        %v2052 = vmax.f32 %v2032, 0.0
        %v2053 = vmax.f32 %v2035, 0.0
        %v2054 = vld [vmem:[%s8] sm:$0x1]
        %v2056 = vlaneseq
        %v2057 = vshrl.u32 %v2056, 7
        %v2058 = vsub.s32 0, %v2057
        %v2059 = vrot.slane %v2054, %v2058
        %2060 = vrot.lane.b32.xlu0 %v2059, 96
        %v2061 = vpop.permute.xlu0 %2060
        %vm2062 = vcmask 130048
        %v2063 = vsel %vm2062, %v2061, 0
        %v2066 = vsel %vm2062, %v2038, 0
        %v2069 = vsel %vm2062, %v2039, 0
        %v2072 = vsel %vm2062, %v2040, 0
        %v2075 = vsel %vm2062, %v2041, 0
        %v2078 = vsel %vm2062, %v2042, 0
        %v2081 = vsel %vm2062, %v2043, 0
        %v2084 = vsel %vm2062, %v2044, 0
        %v2087 = vsel %vm2062, %v2045, 0
        %v2090 = vsel %vm2062, %v2046, 0
        %v2093 = vsel %vm2062, %v2047, 0
        %v2096 = vsel %vm2062, %v2048, 0
        %v2099 = vsel %vm2062, %v2049, 0
        %v2102 = vsel %vm2062, %v2050, 0
        %v2105 = vsel %vm2062, %v2051, 0
        %v2108 = vsel %vm2062, %v2052, 0
        %v2111 = vsel %vm2062, %v2053, 0
        %2113 = vmatprep.subr.mxu0 0.0
        %2114 = vmatpush1.xpose.msra.mxu0 %v2066
        %2115 = vmatprep.subr.mxu0 0.0
        %2116 = vmatpush1.xpose.msra.mxu0 %v2069
        %2117 = vmatprep.subr.mxu0 0.0
        %2118 = vmatpush1.xpose.msra.mxu0 %v2072
        %2119 = vmatprep.subr.mxu0 0.0
        %2120 = vmatpush1.xpose.msra.mxu0 %v2075
        %2121 = vmatprep.subr.mxu0 0.0
        %2122 = vmatpush1.xpose.msra.mxu0 %v2078
        %2123 = vmatprep.subr.mxu0 0.0
        %2124 = vmatpush1.xpose.msra.mxu0 %v2081
        %2125 = vmatprep.subr.mxu0 0.0
        %2126 = vmatpush1.xpose.msra.mxu0 %v2084
        %2127 = vmatprep.subr.mxu0 0.0
        %2128 = vmatpush1.xpose.msra.mxu0 %v2087
        %2129 = vmatprep.subr.mxu0 0.0
        %2130 = vmatpush1.xpose.msra.mxu0 %v2090
        %2131 = vmatprep.subr.mxu0 0.0
        %2132 = vmatpush1.xpose.msra.mxu0 %v2093
        %2133 = vmatprep.subr.mxu0 0.0
        %2134 = vmatpush1.xpose.msra.mxu0 %v2096
        %2135 = vmatprep.subr.mxu0 0.0
        %2136 = vmatpush1.xpose.msra.mxu0 %v2099
        %2137 = vmatprep.subr.mxu0 0.0
        %2138 = vmatpush1.xpose.msra.mxu0 %v2102
        %2139 = vmatprep.subr.mxu0 0.0
        %2140 = vmatpush1.xpose.msra.mxu0 %v2105
        %2141 = vmatprep.subr.mxu0 0.0
        %2142 = vmatpush1.xpose.msra.mxu0 %v2108
        %2143 = vmatprep.subr.mxu0 0.0
        %2144 = vmatpush1.xpose.msra.mxu0 %v2111
        %2145 = vmatprep.subr.mxu0 0.0
        %2146 = vmatpush1.xpose.msra.mxu0 0.0
        %2147 = vmatprep.subr.mxu0 0.0
        %2148 = vmatpush1.xpose.msra.mxu0 0.0
        %2149 = vmatprep.subr.mxu0 0.0
        %2150 = vmatpush1.xpose.msra.mxu0 0.0
        %2151 = vmatprep.subr.mxu0 0.0
        %2152 = vmatpush1.xpose.msra.mxu0 0.0
        %2153 = vmatprep.subr.mxu0 0.0
        %2154 = vmatpush1.xpose.msra.mxu0 0.0
        %2155 = vmatprep.subr.mxu0 0.0
        %2156 = vmatpush1.xpose.msra.mxu0 0.0
        %2157 = vmatprep.subr.mxu0 0.0
        %2158 = vmatpush1.xpose.msra.mxu0 0.0
        %2159 = vmatprep.subr.mxu0 0.0
        %2160 = vmatpush1.xpose.msra.mxu0 0.0
        %2161 = vmatprep.subr.mxu0 0.0
        %2162 = vmatpush1.xpose.msra.mxu0 0.0
        %2163 = vmatprep.subr.mxu0 0.0
        %2164 = vmatpush1.xpose.msra.mxu0 0.0
        %2165 = vmatprep.subr.mxu0 0.0
        %2166 = vmatpush1.xpose.msra.mxu0 0.0
        %2167 = vmatprep.subr.mxu0 0.0
        %2168 = vmatpush1.xpose.msra.mxu0 0.0
        %2169 = vmatprep.subr.mxu0 0.0
        %2170 = vmatpush1.xpose.msra.mxu0 0.0
        %2171 = vmatprep.subr.mxu0 0.0
        %2172 = vmatpush1.xpose.msra.mxu0 0.0
        %2173 = vmatprep.subr.mxu0 0.0
        %2174 = vmatpush1.xpose.msra.mxu0 0.0
        %2175 = vmatprep.subr.mxu0 0.0
        %2176 = vmatpush1.xpose.msra.mxu0 0.0
        %2177 = vmatprep.mubr.f32.mxu0 0.0
        %2178 = vmatmul.mubr.f32.gmra.mrb[0].mxu0 %v2063
        %v2179 = vpop.f32.mrb[0].mxu0
        %v2180 = vadd.f32 0.0, %v2179
        %v2181 = vpop.f32.mrb[0].mxu0
        %2182 = vdwg.mxu0
        %v2183 = vsel %vm1372, %v2054, 0
        %v2186 = vsel %vm1372, %v1702, 0
        %v2189 = vsel %vm1372, %v1703, 0
        %v2192 = vsel %vm1372, %v1704, 0
        %v2195 = vsel %vm1372, %v1705, 0
        %v2198 = vsel %vm1372, %v1706, 0
        %v2201 = vsel %vm1372, %v1707, 0
        %v2204 = vsel %vm1372, %v1708, 0
        %v2207 = vsel %vm1372, %v1709, 0
        %v2210 = vsel %vm1372, %v1710, 0
        %v2213 = vsel %vm1372, %v1711, 0
        %v2216 = vsel %vm1372, %v1712, 0
        %v2219 = vsel %vm1372, %v1713, 0
        %v2222 = vsel %vm1372, %v1714, 0
        %v2225 = vsel %vm1372, %v1715, 0
        %v2228 = vsel %vm1372, %v1716, 0
        %v2231 = vsel %vm1372, %v1717, 0
        %2233 = vmatprep.subr.mxu0 0.0
        %2234 = vmatpush1.xpose.msra.mxu0 %v2186
        %2235 = vmatprep.subr.mxu0 0.0
        %2236 = vmatpush1.xpose.msra.mxu0 %v2189
        %2237 = vmatprep.subr.mxu0 0.0
        %2238 = vmatpush1.xpose.msra.mxu0 %v2192
        %2239 = vmatprep.subr.mxu0 0.0
        %2240 = vmatpush1.xpose.msra.mxu0 %v2195
        %2241 = vmatprep.subr.mxu0 0.0
        %2242 = vmatpush1.xpose.msra.mxu0 %v2198
        %2243 = vmatprep.subr.mxu0 0.0
        %2244 = vmatpush1.xpose.msra.mxu0 %v2201
        %2245 = vmatprep.subr.mxu0 0.0
        %2246 = vmatpush1.xpose.msra.mxu0 %v2204
        %2247 = vmatprep.subr.mxu0 0.0
        %2248 = vmatpush1.xpose.msra.mxu0 %v2207
        %2249 = vmatprep.subr.mxu0 0.0
        %2250 = vmatpush1.xpose.msra.mxu0 %v2210
        %2251 = vmatprep.subr.mxu0 0.0
        %2252 = vmatpush1.xpose.msra.mxu0 %v2213
        %2253 = vmatprep.subr.mxu0 0.0
        %2254 = vmatpush1.xpose.msra.mxu0 %v2216
        %2255 = vmatprep.subr.mxu0 0.0
        %2256 = vmatpush1.xpose.msra.mxu0 %v2219
        %2257 = vmatprep.subr.mxu0 0.0
        %2258 = vmatpush1.xpose.msra.mxu0 %v2222
        %2259 = vmatprep.subr.mxu0 0.0
        %2260 = vmatpush1.xpose.msra.mxu0 %v2225
        %2261 = vmatprep.subr.mxu0 0.0
        %2262 = vmatpush1.xpose.msra.mxu0 %v2228
        %2263 = vmatprep.subr.mxu0 0.0
        %2264 = vmatpush1.xpose.msra.mxu0 %v2231
        %2265 = vmatprep.subr.mxu0 0.0
        %2266 = vmatpush1.xpose.msra.mxu0 0.0
        %2267 = vmatprep.subr.mxu0 0.0
        %2268 = vmatpush1.xpose.msra.mxu0 0.0
        %2269 = vmatprep.subr.mxu0 0.0
        %2270 = vmatpush1.xpose.msra.mxu0 0.0
        %2271 = vmatprep.subr.mxu0 0.0
        %2272 = vmatpush1.xpose.msra.mxu0 0.0
        %2273 = vmatprep.subr.mxu0 0.0
        %2274 = vmatpush1.xpose.msra.mxu0 0.0
        %2275 = vmatprep.subr.mxu0 0.0
        %2276 = vmatpush1.xpose.msra.mxu0 0.0
        %2277 = vmatprep.subr.mxu0 0.0
        %2278 = vmatpush1.xpose.msra.mxu0 0.0
        %2279 = vmatprep.subr.mxu0 0.0
        %2280 = vmatpush1.xpose.msra.mxu0 0.0
        %2281 = vmatprep.subr.mxu0 0.0
        %2282 = vmatpush1.xpose.msra.mxu0 0.0
        %2283 = vmatprep.subr.mxu0 0.0
        %2284 = vmatpush1.xpose.msra.mxu0 0.0
        %2285 = vmatprep.subr.mxu0 0.0
        %2286 = vmatpush1.xpose.msra.mxu0 0.0
        %2287 = vmatprep.subr.mxu0 0.0
        %2288 = vmatpush1.xpose.msra.mxu0 0.0
        %2289 = vmatprep.subr.mxu0 0.0
        %2290 = vmatpush1.xpose.msra.mxu0 0.0
        %2291 = vmatprep.subr.mxu0 0.0
        %2292 = vmatpush1.xpose.msra.mxu0 0.0
        %2293 = vmatprep.subr.mxu0 0.0
        %2294 = vmatpush1.xpose.msra.mxu0 0.0
        %2295 = vmatprep.subr.mxu0 0.0
        %2296 = vmatpush1.xpose.msra.mxu0 0.0
        %2297 = vmatprep.mubr.f32.mxu0 0.0
        %2298 = vmatmul.mubr.f32.gmra.mrb[0].mxu0 %v2183
        %v2299 = vpop.f32.mrb[0].mxu0
        %v2300 = vadd.f32 %v2180, %v2299
        %v2301 = vpop.f32.mrb[0].mxu0
        %2302 = vdwg.mxu0
        %2303 = vset.pattern.permute.xlu0 48
        %2304 = vperm.xlu0 %2303, %v2054
        %v2305 = vpop.permute.xlu0 %2304
        %v2307 = vlaneseq
        %v2308 = vshrl.u32 %v2307, 7
        %v2309 = vsub.s32 0, %v2308
        %v2310 = vrot.slane %v2305, %v2309
        %v2311 = vadd.f32 %v2300, %v2310
        %2312 = vst [vmem:[%s325] sm:$0x1] %v2311
        %s2313 = sand.u32 %s225, 1
        %s2314 = scalar_lea.sflag [#allocation3], %s2313
        %s2315 = sand.u32 %s225, 1
        %s2316 = scalar_lea.vmem [#allocation2], %s2315
        // Predicated region
        $region57: #{tpu_custom_call.1} parent=55 // pred_check
          %p2317 = pneg %p235
        $region58: #{tpu_custom_call.1} parent=55 // pred_check_branch
          %2319 = sbr.rel (%p2317) target = $region60
        $region59: #{tpu_custom_call.1} parent=55 // pred_region
          %s2321 = ssub.s32 16, 16
          %2322 = vsyncadd %s2314, %s2321
          %s2323 = smul.addr %s23, 16
          %s2324 = scalar_lea.hbm %s9, %s2323
          %s2326 = sshll.u32 %s2316, 4
          %s2327 = int_to_ptr.vmem [resolvable:$true] %s2326
          %2329 = dma.vmem_to_hbm [thread:$0]  %s2327, 16, %s2324, %s2314
        $region60: #{tpu_custom_call.1} parent=55 // pred_fallthru
          _
      $region56: #{tpu_custom_call.1} parent=5 // pred_fallthru
        _
      %p2330 = scmp.le.s32.totalorder 2, %s18
      // Predicated region
      $region61: #{tpu_custom_call.1} parent=5 // pred_check
        %p2331 = pneg %p2330
      $region62: #{tpu_custom_call.1} parent=5 // pred_check_branch
        %2333 = sbr.rel (%p2331) target = $region64
      $region63: #{tpu_custom_call.1} parent=5 // pred_region
        %s2334 = ssub.s32 %s18, 2
        // Predicated region
        $region65: #{tpu_custom_call.1} parent=63 // pred_check
          %p2335 = pneg %p241
        $region66: #{tpu_custom_call.1} parent=63 // pred_check_branch
          %2337 = sbr.rel (%p2335) target = $region68
        $region67: #{tpu_custom_call.1} parent=63 // pred_region
          %s2338 = sand.u32 %s226, 1
          %s2339 = scalar_lea.sflag [#allocation3], %s2338
          %s2340 = sand.u32 %s226, 1
          %s2341 = scalar_lea.vmem [#allocation2], %s2340
          %2342 = dma.done %s2339, 16
        $region68: #{tpu_custom_call.1} parent=63 // pred_fallthru
          _
      $region64: #{tpu_custom_call.1} parent=5 // pred_fallthru
        _
    $region6: #{tpu_custom_call.1} parent=1 // loop_footer
      %s22 = sadd.s32 1, %s18
    $region7: #{tpu_custom_call.1} parent=1 // loop_footer_branch
      %17 = sbr.rel target = $region3
    $region8: #{tpu_custom_call.1} parent=1 // loop_exit
      _
    %2343 = vsyncpa [#allocation3], 1
    %s2344 = scalar_lea.sflag [#allocation3], 1
    %2345 = vsyncpa %s2344, 1

// kernel: tpu_custom_call.1
$region0: #{tpu_custom_call.1}
  #allocation0 [shape = 'u32[]', space=smem, size = 0x4, offset = 0x4, fixed_abs, tag = 'smem constant byte address 0x4 - core index']
  #allocation1 [shape = 'u32[144,128]{1,0:T(1,128)}', space=vmem, size = 0x12000, scoped, tag = 'internal scratch']
  %s0 = inlined_call_operand.vmem [shape: s32[256,4], index: 0, kind: input, shape index: {}]
  %s1 = inlined_call_operand.vmem [shape: bf16[4,21,32], index: 1, kind: input, shape index: {}]
  %s2 = inlined_call_operand.vmem [shape: f32[3,32], index: 2, kind: input, shape index: {}]
  %s3 = inlined_call_operand.vmem [shape: f32[3,32], index: 3, kind: input, shape index: {}]
  %s4 = inlined_call_operand.vmem [shape: bf16[32,32], index: 4, kind: input, shape index: {}]
  %s5 = inlined_call_operand.vmem [shape: f32[1,32], index: 5, kind: input, shape index: {}]
  %s6 = inlined_call_operand.vmem [shape: bf16[32,16], index: 6, kind: input, shape index: {}]
  %s7 = inlined_call_operand.vmem [shape: f32[1,16], index: 7, kind: input, shape index: {}]
  %s8 = inlined_call_operand.vmem [shape: f32[1,49], index: 8, kind: input, shape index: {}]
  %s9 = inlined_call_operand.hbm [shape: f32[2,1,128], index: 9, kind: output, shape index: {}]
  %s10 = sld [smem:[#allocation0]]
  $region69: #{tpu_custom_call.1} parent=0
    _
  %s12 = ssub.s32 1, %s10
  %s13 = scalar_select 0, %s12, %s10
  $region1: #{tpu_custom_call.1} parent=0
    #allocation2 [shape = 'u8[1024]{0}', space=vmem, size = 0x400, scoped, tag = 'output window, operand 0']
    #allocation3 [shape = 's32[2]{0}', space=sflag, size = 0x8, scoped, tag = 'scoped memory for tpu_custom_call.1']
    %14 = vsyncpa [#allocation3], 0
    %s15 = scalar_lea.sflag [#allocation3], 1
    %16 = vsyncpa %s15, 0
    loop: start=0, step=1, limit=4
    $region2: #{tpu_custom_call.1} parent=1 // loop_pre_header
      _
    $region3: #{tpu_custom_call.1} parent=1 // loop_header
      %s18 = sphi 0, %s22
      %p19 = scmp.ge.s32.totalorder %s18, 4
      %s28 = sphi 0, %s30
      %s31 = sphi 0, %s28
      %s32 = sphi 0, %s31
      %s48 = sphi 0, %s32
      %s52 = sphi 0, %s52
      %s54 = sphi 0, %s52
      %s55 = sphi 0, %s54
      %s69 = sphi 0, %s55
      %s73 = sphi 0, %s73
      %s75 = sphi 0, %s73
      %s76 = sphi 0, %s75
      %s90 = sphi 0, %s76
      %s94 = sphi 0, %s94
      %s96 = sphi 0, %s94
      %s97 = sphi 0, %s96
      %s111 = sphi 0, %s97
      %s115 = sphi 0, %s115
      %s117 = sphi 0, %s115
      %s118 = sphi 0, %s117
      %s132 = sphi 0, %s118
      %s136 = sphi 0, %s136
      %s138 = sphi 0, %s136
      %s139 = sphi 0, %s138
      %s153 = sphi 0, %s139
      %s157 = sphi 0, %s157
      %s159 = sphi 0, %s157
      %s160 = sphi 0, %s159
      %s174 = sphi 0, %s160
      %s178 = sphi 0, %s178
      %s180 = sphi 0, %s178
      %s181 = sphi 0, %s180
      %s195 = sphi 0, %s181
      %s199 = sphi 0, %s199
      %s201 = sphi 0, %s199
      %s202 = sphi 0, %s201
      %s216 = sphi 0, %s202
      %s222 = sphi 0, %s224
      %s225 = sphi 0, %s222
      %s226 = sphi 0, %s225
      %s242 = sphi 0, %s226
    $region4: #{tpu_custom_call.1} parent=1 // loop_header_branch
      %21 = sbr.rel (%p19) target = $region8
    $region5: #{tpu_custom_call.1} parent=1 // loop_body
      %s23 = ssub.s32 %s18, 1
      %s24 = ssub.s32 %s18, 2
      %s25 = sadd.s32 %s18, 1
      %s26 = ssub.s32 %s18, %s25
      %p27 = scmp.eq.s32.totalorder %s26, 0
      %s29 = sadd.s32 %s28, 1
      %s30 = scalar_select %p27, %s28, %s29
      %p33 = pneg %p27
      %p34 = scmp.eq.s32.totalorder %s18, 1
      %p35 = por %p33, %p34
      %p36 = scmp.ne.s32.totalorder %s28, %s31
      %p37 = scmp.eq.s32.totalorder %s18, 0
      %p38 = por %p36, %p37
      %p39 = scmp.ne.s32.totalorder %s28, %s31
      %p40 = scmp.eq.s32.totalorder %s23, 1
      %p41 = por %p39, %p40
      %p42 = scmp.ne.s32.totalorder %s31, %s32
      %p43 = scmp.eq.s32.totalorder %s23, 0
      %p44 = por %p42, %p43
      %p45 = scmp.ne.s32.totalorder %s31, %s32
      %p46 = scmp.eq.s32.totalorder %s24, 1
      %p47 = por %p45, %p46
      %p49 = scmp.ne.s32.totalorder %s32, %s48
      %p50 = scmp.eq.s32.totalorder %s24, 0
      %p51 = por %p49, %p50
      %s53 = sadd.s32 %s52, 1
      %p56 = scmp.eq.s32.totalorder %s18, 1
      %p57 = scmp.ne.s32.totalorder %s52, %s54
      %p58 = scmp.eq.s32.totalorder %s18, 0
      %p59 = por %p57, %p58
      %p60 = scmp.ne.s32.totalorder %s52, %s54
      %p61 = scmp.eq.s32.totalorder %s23, 1
      %p62 = por %p60, %p61
      %p63 = scmp.ne.s32.totalorder %s54, %s55
      %p64 = scmp.eq.s32.totalorder %s23, 0
      %p65 = por %p63, %p64
      %p66 = scmp.ne.s32.totalorder %s54, %s55
      %p67 = scmp.eq.s32.totalorder %s24, 1
      %p68 = por %p66, %p67
      %p70 = scmp.ne.s32.totalorder %s55, %s69
      %p71 = scmp.eq.s32.totalorder %s24, 0
      %p72 = por %p70, %p71
      %s74 = sadd.s32 %s73, 1
      %p77 = scmp.eq.s32.totalorder %s18, 1
      %p78 = scmp.ne.s32.totalorder %s73, %s75
      %p79 = scmp.eq.s32.totalorder %s18, 0
      %p80 = por %p78, %p79
      %p81 = scmp.ne.s32.totalorder %s73, %s75
      %p82 = scmp.eq.s32.totalorder %s23, 1
      %p83 = por %p81, %p82
      %p84 = scmp.ne.s32.totalorder %s75, %s76
      %p85 = scmp.eq.s32.totalorder %s23, 0
      %p86 = por %p84, %p85
      %p87 = scmp.ne.s32.totalorder %s75, %s76
      %p88 = scmp.eq.s32.totalorder %s24, 1
      %p89 = por %p87, %p88
      %p91 = scmp.ne.s32.totalorder %s76, %s90
      %p92 = scmp.eq.s32.totalorder %s24, 0
      %p93 = por %p91, %p92
      %s95 = sadd.s32 %s94, 1
      %p98 = scmp.eq.s32.totalorder %s18, 1
      %p99 = scmp.ne.s32.totalorder %s94, %s96
      %p100 = scmp.eq.s32.totalorder %s18, 0
      %p101 = por %p99, %p100
      %p102 = scmp.ne.s32.totalorder %s94, %s96
      %p103 = scmp.eq.s32.totalorder %s23, 1
      %p104 = por %p102, %p103
      %p105 = scmp.ne.s32.totalorder %s96, %s97
      %p106 = scmp.eq.s32.totalorder %s23, 0
      %p107 = por %p105, %p106
      %p108 = scmp.ne.s32.totalorder %s96, %s97
      %p109 = scmp.eq.s32.totalorder %s24, 1
      %p110 = por %p108, %p109
      %p112 = scmp.ne.s32.totalorder %s97, %s111
      %p113 = scmp.eq.s32.totalorder %s24, 0
      %p114 = por %p112, %p113
      %s116 = sadd.s32 %s115, 1
      %p119 = scmp.eq.s32.totalorder %s18, 1
      %p120 = scmp.ne.s32.totalorder %s115, %s117
      %p121 = scmp.eq.s32.totalorder %s18, 0
      %p122 = por %p120, %p121
      %p123 = scmp.ne.s32.totalorder %s115, %s117
      %p124 = scmp.eq.s32.totalorder %s23, 1
      %p125 = por %p123, %p124
      %p126 = scmp.ne.s32.totalorder %s117, %s118
      %p127 = scmp.eq.s32.totalorder %s23, 0
      %p128 = por %p126, %p127
      %p129 = scmp.ne.s32.totalorder %s117, %s118
      %p130 = scmp.eq.s32.totalorder %s24, 1
      %p131 = por %p129, %p130
      %p133 = scmp.ne.s32.totalorder %s118, %s132
      %p134 = scmp.eq.s32.totalorder %s24, 0
      %p135 = por %p133, %p134
      %s137 = sadd.s32 %s136, 1
      %p140 = scmp.eq.s32.totalorder %s18, 1
      %p141 = scmp.ne.s32.totalorder %s136, %s138
      %p142 = scmp.eq.s32.totalorder %s18, 0
      %p143 = por %p141, %p142
      %p144 = scmp.ne.s32.totalorder %s136, %s138
      %p145 = scmp.eq.s32.totalorder %s23, 1
      %p146 = por %p144, %p145
      %p147 = scmp.ne.s32.totalorder %s138, %s139
      %p148 = scmp.eq.s32.totalorder %s23, 0
      %p149 = por %p147, %p148
      %p150 = scmp.ne.s32.totalorder %s138, %s139
      %p151 = scmp.eq.s32.totalorder %s24, 1
      %p152 = por %p150, %p151
      %p154 = scmp.ne.s32.totalorder %s139, %s153
      %p155 = scmp.eq.s32.totalorder %s24, 0
      %p156 = por %p154, %p155
      %s158 = sadd.s32 %s157, 1
      %p161 = scmp.eq.s32.totalorder %s18, 1
      %p162 = scmp.ne.s32.totalorder %s157, %s159
      %p163 = scmp.eq.s32.totalorder %s18, 0
      %p164 = por %p162, %p163
      %p165 = scmp.ne.s32.totalorder %s157, %s159
      %p166 = scmp.eq.s32.totalorder %s23, 1
      %p167 = por %p165, %p166
      %p168 = scmp.ne.s32.totalorder %s159, %s160
      %p169 = scmp.eq.s32.totalorder %s23, 0
      %p170 = por %p168, %p169
      %p171 = scmp.ne.s32.totalorder %s159, %s160
      %p172 = scmp.eq.s32.totalorder %s24, 1
      %p173 = por %p171, %p172
      %p175 = scmp.ne.s32.totalorder %s160, %s174
      %p176 = scmp.eq.s32.totalorder %s24, 0
      %p177 = por %p175, %p176
      %s179 = sadd.s32 %s178, 1
      %p182 = scmp.eq.s32.totalorder %s18, 1
      %p183 = scmp.ne.s32.totalorder %s178, %s180
      %p184 = scmp.eq.s32.totalorder %s18, 0
      %p185 = por %p183, %p184
      %p186 = scmp.ne.s32.totalorder %s178, %s180
      %p187 = scmp.eq.s32.totalorder %s23, 1
      %p188 = por %p186, %p187
      %p189 = scmp.ne.s32.totalorder %s180, %s181
      %p190 = scmp.eq.s32.totalorder %s23, 0
      %p191 = por %p189, %p190
      %p192 = scmp.ne.s32.totalorder %s180, %s181
      %p193 = scmp.eq.s32.totalorder %s24, 1
      %p194 = por %p192, %p193
      %p196 = scmp.ne.s32.totalorder %s181, %s195
      %p197 = scmp.eq.s32.totalorder %s24, 0
      %p198 = por %p196, %p197
      %s200 = sadd.s32 %s199, 1
      %p203 = scmp.eq.s32.totalorder %s18, 1
      %p204 = scmp.ne.s32.totalorder %s199, %s201
      %p205 = scmp.eq.s32.totalorder %s18, 0
      %p206 = por %p204, %p205
      %p207 = scmp.ne.s32.totalorder %s199, %s201
      %p208 = scmp.eq.s32.totalorder %s23, 1
      %p209 = por %p207, %p208
      %p210 = scmp.ne.s32.totalorder %s201, %s202
      %p211 = scmp.eq.s32.totalorder %s23, 0
      %p212 = por %p210, %p211
      %p213 = scmp.ne.s32.totalorder %s201, %s202
      %p214 = scmp.eq.s32.totalorder %s24, 1
      %p215 = por %p213, %p214
      %p217 = scmp.ne.s32.totalorder %s202, %s216
      %p218 = scmp.eq.s32.totalorder %s24, 0
      %p219 = por %p217, %p218
      %s220 = ssub.s32 %s18, %s25
      %p221 = scmp.eq.s32.totalorder %s220, 0
      %s223 = sadd.s32 %s222, 1
      %s224 = scalar_select %p221, %s222, %s223
      %p227 = pneg %p221
      %p228 = scmp.eq.s32.totalorder %s18, 1
      %p229 = por %p227, %p228
      %p230 = scmp.ne.s32.totalorder %s222, %s225
      %p231 = scmp.eq.s32.totalorder %s18, 0
      %p232 = por %p230, %p231
      %p233 = scmp.ne.s32.totalorder %s222, %s225
      %p234 = scmp.eq.s32.totalorder %s23, 1
      %p235 = por %p233, %p234
      %p236 = scmp.ne.s32.totalorder %s225, %s226
      %p237 = scmp.eq.s32.totalorder %s23, 0
      %p238 = por %p236, %p237
      %p239 = scmp.ne.s32.totalorder %s225, %s226
      %p240 = scmp.eq.s32.totalorder %s24, 1
      %p241 = por %p239, %p240
      %p243 = scmp.ne.s32.totalorder %s226, %s242
      %p244 = scmp.eq.s32.totalorder %s24, 0
      %p245 = por %p243, %p244
      %p246 = scmp.le.s32.totalorder 1, %s18
      %p247 = scmp.lt.s32.totalorder %s18, 3
      %p248 = pnand %p246, %p247
      %p249 = pneg %p248
      // Predicated region
      $region9: #{tpu_custom_call.1} parent=5 // pred_check
        _
      $region10: #{tpu_custom_call.1} parent=5 // pred_check_branch
        %251 = sbr.rel (%p248) target = $region12
      $region11: #{tpu_custom_call.1} parent=5 // pred_region
        %s252 = ssub.s32 %s18, 1
        // Predicated region
        $region13: #{tpu_custom_call.1} parent=11 // pred_check
          %p253 = pneg %p65
        $region14: #{tpu_custom_call.1} parent=11 // pred_check_branch
          %255 = sbr.rel (%p253) target = $region16
        $region15: #{tpu_custom_call.1} parent=11 // pred_region
          _
        $region16: #{tpu_custom_call.1} parent=11 // pred_fallthru
          _
        // Predicated region
        $region17: #{tpu_custom_call.1} parent=11 // pred_check
          %p256 = pneg %p86
        $region18: #{tpu_custom_call.1} parent=11 // pred_check_branch
          %258 = sbr.rel (%p256) target = $region20
        $region19: #{tpu_custom_call.1} parent=11 // pred_region
          _
        $region20: #{tpu_custom_call.1} parent=11 // pred_fallthru
          _
        // Predicated region
        $region21: #{tpu_custom_call.1} parent=11 // pred_check
          %p259 = pneg %p107
        $region22: #{tpu_custom_call.1} parent=11 // pred_check_branch
          %261 = sbr.rel (%p259) target = $region24
        $region23: #{tpu_custom_call.1} parent=11 // pred_region
          _
        $region24: #{tpu_custom_call.1} parent=11 // pred_fallthru
          _
        // Predicated region
        $region25: #{tpu_custom_call.1} parent=11 // pred_check
          %p262 = pneg %p128
        $region26: #{tpu_custom_call.1} parent=11 // pred_check_branch
          %264 = sbr.rel (%p262) target = $region28
        $region27: #{tpu_custom_call.1} parent=11 // pred_region
          _
        $region28: #{tpu_custom_call.1} parent=11 // pred_fallthru
          _
        // Predicated region
        $region29: #{tpu_custom_call.1} parent=11 // pred_check
          %p265 = pneg %p149
        $region30: #{tpu_custom_call.1} parent=11 // pred_check_branch
          %267 = sbr.rel (%p265) target = $region32
        $region31: #{tpu_custom_call.1} parent=11 // pred_region
          _
        $region32: #{tpu_custom_call.1} parent=11 // pred_fallthru
          _
        // Predicated region
        $region33: #{tpu_custom_call.1} parent=11 // pred_check
          %p268 = pneg %p170
        $region34: #{tpu_custom_call.1} parent=11 // pred_check_branch
          %270 = sbr.rel (%p268) target = $region36
        $region35: #{tpu_custom_call.1} parent=11 // pred_region
          _
        $region36: #{tpu_custom_call.1} parent=11 // pred_fallthru
          _
        // Predicated region
        $region37: #{tpu_custom_call.1} parent=11 // pred_check
          %p271 = pneg %p191
        $region38: #{tpu_custom_call.1} parent=11 // pred_check_branch
          %273 = sbr.rel (%p271) target = $region40
        $region39: #{tpu_custom_call.1} parent=11 // pred_region
          _
        $region40: #{tpu_custom_call.1} parent=11 // pred_fallthru
          _
        // Predicated region
        $region41: #{tpu_custom_call.1} parent=11 // pred_check
          %p274 = pneg %p212
        $region42: #{tpu_custom_call.1} parent=11 // pred_check_branch
          %276 = sbr.rel (%p274) target = $region44
        $region43: #{tpu_custom_call.1} parent=11 // pred_region
          _
        $region44: #{tpu_custom_call.1} parent=11 // pred_fallthru
          _
      $region12: #{tpu_custom_call.1} parent=5 // pred_fallthru
        _
      %p277 = scmp.lt.s32.totalorder %s18, 2
      // Predicated region
      $region45: #{tpu_custom_call.1} parent=5 // pred_check
        %p278 = pneg %p277
      $region46: #{tpu_custom_call.1} parent=5 // pred_check_branch
        %280 = sbr.rel (%p278) target = $region48
      $region47: #{tpu_custom_call.1} parent=5 // pred_region
        // Predicated region
        $region49: #{tpu_custom_call.1} parent=47 // pred_check
          %p281 = pneg %p38
        $region50: #{tpu_custom_call.1} parent=47 // pred_check_branch
          %283 = sbr.rel (%p281) target = $region52
        $region51: #{tpu_custom_call.1} parent=47 // pred_region
          %s284 = smul.u32 16, %s18
          %p285 = scmp.lt.s32.totalorder %s284, 31
          %s286 = scalar_select %p285, %s284, 31
          %s287 = smul.addr %s286, 8
          %s288 = scalar_lea.vmem %s0, %s287
          %s289 = smul.u32 16, %s18
        $region52: #{tpu_custom_call.1} parent=47 // pred_fallthru
          _
      $region48: #{tpu_custom_call.1} parent=5 // pred_fallthru
        _
      %p290 = scmp.le.s32.totalorder 1, %s18
      %p291 = scmp.lt.s32.totalorder %s18, 3
      %p292 = pnand %p290, %p291
      %p293 = pneg %p292
      // Predicated region
      $region53: #{tpu_custom_call.1} parent=5 // pred_check
        _
      $region54: #{tpu_custom_call.1} parent=5 // pred_check_branch
        %295 = sbr.rel (%p292) target = $region56
      $region55: #{tpu_custom_call.1} parent=5 // pred_region
        %s296 = ssub.s32 %s18, 1
        %s297 = smul.u32 16, %s23
        %p298 = scmp.lt.s32.totalorder %s297, 31
        %s299 = scalar_select %p298, %s297, 31
        %s300 = smul.addr %s299, 8
        %s301 = scalar_lea.vmem %s0, %s300
        %p302 = pneg %p44
        %p303 = pneg %p41
        %p304 = pneg %p65
        %p305 = pneg %p62
        %p306 = pneg %p86
        %p307 = pneg %p83
        %p308 = pneg %p107
        %p309 = pneg %p104
        %p310 = pneg %p128
        %p311 = pneg %p125
        %p312 = pneg %p149
        %p313 = pneg %p146
        %p314 = pneg %p170
        %p315 = pneg %p167
        %p316 = pneg %p191
        %p317 = pneg %p188
        %p318 = pneg %p212
        %p319 = pneg %p209
        %p320 = pneg %p238
        %p321 = pneg %p235
        %s322 = sand.u32 %s225, 1
        %s323 = scalar_lea.sflag [#allocation3], %s322
        %s324 = sand.u32 %s225, 1
        %s325 = scalar_lea.vmem [#allocation2], %s324
        %s326 = smul.u32 16, %s23
        %p327 = scmp.lt.s32.totalorder %s326, 31
        %s328 = scalar_select %p327, %s326, 31
        %s329 = smul.addr %s328, 8
        %s330 = scalar_lea.vmem %s0, %s329
        %s331 = smul.u32 16, %s23
        %v333 = vld [vmem:[%s330] sm:$0xff]
        %v334 = vld [vmem:[%s330 + $0x8] sm:$0xff]
        %v335 = vld [vmem:[%s330 + $0x10] sm:$0xff]
        %v336 = vld [vmem:[%s330 + $0x18] sm:$0xff]
        %v337 = vld [vmem:[%s330 + $0x20] sm:$0xff]
        %v338 = vld [vmem:[%s330 + $0x28] sm:$0xff]
        %v339 = vld [vmem:[%s330 + $0x30] sm:$0xff]
        %v340 = vld [vmem:[%s330 + $0x38] sm:$0xff]
        %v341 = vld [vmem:[%s330 + $0x40] sm:$0xff]
        %v342 = vld [vmem:[%s330 + $0x48] sm:$0xff]
        %v343 = vld [vmem:[%s330 + $0x50] sm:$0xff]
        %v344 = vld [vmem:[%s330 + $0x58] sm:$0xff]
        %v345 = vld [vmem:[%s330 + $0x60] sm:$0xff]
        %v346 = vld [vmem:[%s330 + $0x68] sm:$0xff]
        %v347 = vld [vmem:[%s330 + $0x70] sm:$0xff]
        %v348 = vld [vmem:[%s330 + $0x78] sm:$0xff]
        %v349 = vlaneseq
        %v350 = vand.u32 %v349, 127
        %351 = vset.pattern.permute.xlu0 0
        %352 = vperm.xlu0 %351, %v333
        %v353 = vpop.permute.xlu0 %352
        %354 = vset.pattern.permute.xlu0 0
        %355 = vperm.xlu0 %354, %v334
        %v356 = vpop.permute.xlu0 %355
        %357 = vset.pattern.permute.xlu0 0
        %358 = vperm.xlu0 %357, %v335
        %v359 = vpop.permute.xlu0 %358
        %360 = vset.pattern.permute.xlu0 0
        %361 = vperm.xlu0 %360, %v336
        %v362 = vpop.permute.xlu0 %361
        %363 = vset.pattern.permute.xlu0 0
        %364 = vperm.xlu0 %363, %v337
        %v365 = vpop.permute.xlu0 %364
        %366 = vset.pattern.permute.xlu0 0
        %367 = vperm.xlu0 %366, %v338
        %v368 = vpop.permute.xlu0 %367
        %369 = vset.pattern.permute.xlu0 0
        %370 = vperm.xlu0 %369, %v339
        %v371 = vpop.permute.xlu0 %370
        %372 = vset.pattern.permute.xlu0 0
        %373 = vperm.xlu0 %372, %v340
        %v374 = vpop.permute.xlu0 %373
        %375 = vset.pattern.permute.xlu0 0
        %376 = vperm.xlu0 %375, %v341
        %v377 = vpop.permute.xlu0 %376
        %378 = vset.pattern.permute.xlu0 0
        %379 = vperm.xlu0 %378, %v342
        %v380 = vpop.permute.xlu0 %379
        %381 = vset.pattern.permute.xlu0 0
        %382 = vperm.xlu0 %381, %v343
        %v383 = vpop.permute.xlu0 %382
        %384 = vset.pattern.permute.xlu0 0
        %385 = vperm.xlu0 %384, %v344
        %v386 = vpop.permute.xlu0 %385
        %387 = vset.pattern.permute.xlu0 0
        %388 = vperm.xlu0 %387, %v345
        %v389 = vpop.permute.xlu0 %388
        %390 = vset.pattern.permute.xlu0 0
        %391 = vperm.xlu0 %390, %v346
        %v392 = vpop.permute.xlu0 %391
        %393 = vset.pattern.permute.xlu0 0
        %394 = vperm.xlu0 %393, %v347
        %v395 = vpop.permute.xlu0 %394
        %396 = vset.pattern.permute.xlu0 0
        %397 = vperm.xlu0 %396, %v348
        %v398 = vpop.permute.xlu0 %397
        %vm399 = vcmp.eq.s32.totalorder %v353, %v350
        %vm400 = vcmp.eq.s32.totalorder %v356, %v350
        %vm401 = vcmp.eq.s32.totalorder %v359, %v350
        %vm402 = vcmp.eq.s32.totalorder %v362, %v350
        %vm403 = vcmp.eq.s32.totalorder %v365, %v350
        %vm404 = vcmp.eq.s32.totalorder %v368, %v350
        %vm405 = vcmp.eq.s32.totalorder %v371, %v350
        %vm406 = vcmp.eq.s32.totalorder %v374, %v350
        %vm407 = vcmp.eq.s32.totalorder %v377, %v350
        %vm408 = vcmp.eq.s32.totalorder %v380, %v350
        %vm409 = vcmp.eq.s32.totalorder %v383, %v350
        %vm410 = vcmp.eq.s32.totalorder %v386, %v350
        %vm411 = vcmp.eq.s32.totalorder %v389, %v350
        %vm412 = vcmp.eq.s32.totalorder %v392, %v350
        %vm413 = vcmp.eq.s32.totalorder %v395, %v350
        %vm414 = vcmp.eq.s32.totalorder %v398, %v350
        %v415 = vsel %vm399, 1, 0
        %v416 = vsel %vm400, 1, 0
        %v417 = vsel %vm401, 1, 0
        %v418 = vsel %vm402, 1, 0
        %v419 = vsel %vm403, 1, 0
        %v420 = vsel %vm404, 1, 0
        %v421 = vsel %vm405, 1, 0
        %v422 = vsel %vm406, 1, 0
        %v423 = vsel %vm407, 1, 0
        %v424 = vsel %vm408, 1, 0
        %v425 = vsel %vm409, 1, 0
        %v426 = vsel %vm410, 1, 0
        %v427 = vsel %vm411, 1, 0
        %v428 = vsel %vm412, 1, 0
        %v429 = vsel %vm413, 1, 0
        %v430 = vsel %vm414, 1, 0
        %v431 = vcvt.s32.f32 %v415
        %v432 = vcvt.s32.f32 %v416
        %v433 = vcvt.s32.f32 %v417
        %v434 = vcvt.s32.f32 %v418
        %v435 = vcvt.s32.f32 %v419
        %v436 = vcvt.s32.f32 %v420
        %v437 = vcvt.s32.f32 %v421
        %v438 = vcvt.s32.f32 %v422
        %v439 = vcvt.s32.f32 %v423
        %v440 = vcvt.s32.f32 %v424
        %v441 = vcvt.s32.f32 %v425
        %v442 = vcvt.s32.f32 %v426
        %v443 = vcvt.s32.f32 %v427
        %v444 = vcvt.s32.f32 %v428
        %v445 = vcvt.s32.f32 %v429
        %v446 = vcvt.s32.f32 %v430
        %v447 = vpack.c.bf16 %v432, %v431
        %v448 = vpack.c.bf16 %v434, %v433
        %v449 = vpack.c.bf16 %v436, %v435
        %v450 = vpack.c.bf16 %v438, %v437
        %v451 = vpack.c.bf16 %v440, %v439
        %v452 = vpack.c.bf16 %v442, %v441
        %v453 = vpack.c.bf16 %v444, %v443
        %v454 = vpack.c.bf16 %v446, %v445
        %v455 = vld [vmem:[%s1] sm:$0xf]
        %v456 = vld [vmem:[%s1 + $0x4] sm:$0xf]
        %v457 = vld [vmem:[%s1 + $0x8] sm:$0x7]
        %458 = vset.pattern.permute.xlu0 1
        %459 = vperm.xlu0 %458, %v333
        %v460 = vpop.permute.xlu0 %459
        %461 = vset.pattern.permute.xlu0 1
        %462 = vperm.xlu0 %461, %v334
        %v463 = vpop.permute.xlu0 %462
        %464 = vset.pattern.permute.xlu0 1
        %465 = vperm.xlu0 %464, %v335
        %v466 = vpop.permute.xlu0 %465
        %467 = vset.pattern.permute.xlu0 1
        %468 = vperm.xlu0 %467, %v336
        %v469 = vpop.permute.xlu0 %468
        %470 = vset.pattern.permute.xlu0 1
        %471 = vperm.xlu0 %470, %v337
        %v472 = vpop.permute.xlu0 %471
        %473 = vset.pattern.permute.xlu0 1
        %474 = vperm.xlu0 %473, %v338
        %v475 = vpop.permute.xlu0 %474
        %476 = vset.pattern.permute.xlu0 1
        %477 = vperm.xlu0 %476, %v339
        %v478 = vpop.permute.xlu0 %477
        %479 = vset.pattern.permute.xlu0 1
        %480 = vperm.xlu0 %479, %v340
        %v481 = vpop.permute.xlu0 %480
        %482 = vset.pattern.permute.xlu0 1
        %483 = vperm.xlu0 %482, %v341
        %v484 = vpop.permute.xlu0 %483
        %485 = vset.pattern.permute.xlu0 1
        %486 = vperm.xlu0 %485, %v342
        %v487 = vpop.permute.xlu0 %486
        %488 = vset.pattern.permute.xlu0 1
        %489 = vperm.xlu0 %488, %v343
        %v490 = vpop.permute.xlu0 %489
        %491 = vset.pattern.permute.xlu0 1
        %492 = vperm.xlu0 %491, %v344
        %v493 = vpop.permute.xlu0 %492
        %494 = vset.pattern.permute.xlu0 1
        %495 = vperm.xlu0 %494, %v345
        %v496 = vpop.permute.xlu0 %495
        %497 = vset.pattern.permute.xlu0 1
        %498 = vperm.xlu0 %497, %v346
        %v499 = vpop.permute.xlu0 %498
        %500 = vset.pattern.permute.xlu0 1
        %501 = vperm.xlu0 %500, %v347
        %v502 = vpop.permute.xlu0 %501
        %503 = vset.pattern.permute.xlu0 1
        %504 = vperm.xlu0 %503, %v348
        %v505 = vpop.permute.xlu0 %504
        %vm506 = vcmp.eq.s32.totalorder %v460, %v350
        %vm507 = vcmp.eq.s32.totalorder %v463, %v350
        %vm508 = vcmp.eq.s32.totalorder %v466, %v350
        %vm509 = vcmp.eq.s32.totalorder %v469, %v350
        %vm510 = vcmp.eq.s32.totalorder %v472, %v350
        %vm511 = vcmp.eq.s32.totalorder %v475, %v350
        %vm512 = vcmp.eq.s32.totalorder %v478, %v350
        %vm513 = vcmp.eq.s32.totalorder %v481, %v350
        %vm514 = vcmp.eq.s32.totalorder %v484, %v350
        %vm515 = vcmp.eq.s32.totalorder %v487, %v350
        %vm516 = vcmp.eq.s32.totalorder %v490, %v350
        %vm517 = vcmp.eq.s32.totalorder %v493, %v350
        %vm518 = vcmp.eq.s32.totalorder %v496, %v350
        %vm519 = vcmp.eq.s32.totalorder %v499, %v350
        %vm520 = vcmp.eq.s32.totalorder %v502, %v350
        %vm521 = vcmp.eq.s32.totalorder %v505, %v350
        %v522 = vsel %vm506, 1, 0
        %v523 = vsel %vm507, 1, 0
        %v524 = vsel %vm508, 1, 0
        %v525 = vsel %vm509, 1, 0
        %v526 = vsel %vm510, 1, 0
        %v527 = vsel %vm511, 1, 0
        %v528 = vsel %vm512, 1, 0
        %v529 = vsel %vm513, 1, 0
        %v530 = vsel %vm514, 1, 0
        %v531 = vsel %vm515, 1, 0
        %v532 = vsel %vm516, 1, 0
        %v533 = vsel %vm517, 1, 0
        %v534 = vsel %vm518, 1, 0
        %v535 = vsel %vm519, 1, 0
        %v536 = vsel %vm520, 1, 0
        %v537 = vsel %vm521, 1, 0
        %v538 = vcvt.s32.f32 %v522
        %v539 = vcvt.s32.f32 %v523
        %v540 = vcvt.s32.f32 %v524
        %v541 = vcvt.s32.f32 %v525
        %v542 = vcvt.s32.f32 %v526
        %v543 = vcvt.s32.f32 %v527
        %v544 = vcvt.s32.f32 %v528
        %v545 = vcvt.s32.f32 %v529
        %v546 = vcvt.s32.f32 %v530
        %v547 = vcvt.s32.f32 %v531
        %v548 = vcvt.s32.f32 %v532
        %v549 = vcvt.s32.f32 %v533
        %v550 = vcvt.s32.f32 %v534
        %v551 = vcvt.s32.f32 %v535
        %v552 = vcvt.s32.f32 %v536
        %v553 = vcvt.s32.f32 %v537
        %v554 = vpack.c.bf16 %v539, %v538
        %v555 = vpack.c.bf16 %v541, %v540
        %v556 = vpack.c.bf16 %v543, %v542
        %v557 = vpack.c.bf16 %v545, %v544
        %v558 = vpack.c.bf16 %v547, %v546
        %v559 = vpack.c.bf16 %v549, %v548
        %v560 = vpack.c.bf16 %v551, %v550
        %v561 = vpack.c.bf16 %v553, %v552
        %s562 = scalar_lea.vmem %s1, 12
        %v563 = vld [vmem:[%s562] sm:$0xf]
        %v564 = vld [vmem:[%s562 + $0x4] sm:$0xf]
        %v565 = vld [vmem:[%s562 + $0x8] sm:$0x7]
        %v569 = vunpack.c.l.b16 %v563
        %v570 = vunpack.c.l.b16 %v564
        %v571 = vunpack.c.l.b16 %v565
        %v572 = vpack.c.b16 %v570, %v569
        %v573 = vpack.c.b16 %v571, %v571
        %vm575 = vcmask 171008
        %v577 = vsel %vm575, %v554, 0
        %v580 = vsel %vm575, %v555, 0
        %v583 = vsel %vm575, %v556, 0
        %v586 = vsel %vm575, %v557, 0
        %v589 = vsel %vm575, %v558, 0
        %v592 = vsel %vm575, %v559, 0
        %v595 = vsel %vm575, %v560, 0
        %v598 = vsel %vm575, %v561, 0
        %vm600 = vcmask 1041408
        %vm601 = vcmask 1042432
        %v602 = vsel %vm600, 4294967295, 65535
        %v603 = vsel %vm601, %v602, 0
        %v605 = vand.u32 %v573, %v603
        %607 = vmatprep.subr.bf16.mxu0 0
        %608 = vmatpush1.bf16.msra.mxu0 %v572
        %609 = vmatprep.subr.bf16.mxu0 0
        %610 = vmatpush1.bf16.msra.mxu0 %v605
        %611 = vmatprep.subr.bf16.mxu0 0
        %612 = vmatpush1.bf16.msra.mxu0 0
        %613 = vmatprep.subr.bf16.mxu0 0
        %614 = vmatpush1.bf16.msra.mxu0 0
        %615 = vmatprep.subr.bf16.mxu0 0
        %616 = vmatpush1.bf16.msra.mxu0 0
        %617 = vmatprep.subr.bf16.mxu0 0
        %618 = vmatpush1.bf16.msra.mxu0 0
        %619 = vmatprep.subr.bf16.mxu0 0
        %620 = vmatpush1.bf16.msra.mxu0 0
        %621 = vmatprep.subr.bf16.mxu0 0
        %622 = vmatpush1.bf16.msra.mxu0 0
        %623 = vmatprep.subr.bf16.mxu0 0
        %624 = vmatpush1.bf16.msra.mxu0 0
        %625 = vmatprep.subr.bf16.mxu0 0
        %626 = vmatpush1.bf16.msra.mxu0 0
        %627 = vmatprep.subr.bf16.mxu0 0
        %628 = vmatpush1.bf16.msra.mxu0 0
        %629 = vmatprep.subr.bf16.mxu0 0
        %630 = vmatpush1.bf16.msra.mxu0 0
        %631 = vmatprep.subr.bf16.mxu0 0
        %632 = vmatpush1.bf16.msra.mxu0 0
        %633 = vmatprep.subr.bf16.mxu0 0
        %634 = vmatpush1.bf16.msra.mxu0 0
        %635 = vmatprep.subr.bf16.mxu0 0
        %636 = vmatpush1.bf16.msra.mxu0 0
        %637 = vmatprep.subr.bf16.mxu0 0
        %638 = vmatpush1.bf16.msra.mxu0 0
        %639 = vmatprep.mubr.bf16.mxu0 0
        %640 = vmatmul.mubr.bf16.gmra.mrb[0].mxu0 %v577
        %v641 = vpop.f32.mrb[0].mxu0
        %v642 = vadd.f32 0.0, %v641
        %v643 = vpop.f32.mrb[0].mxu0
        %v644 = vpop.f32.mrb[0].mxu0
        %v645 = vadd.f32 0.0, %v644
        %v646 = vpop.f32.mrb[0].mxu0
        %647 = vmatprep.mubr.bf16.mxu0 0
        %648 = vmatmul.mubr.bf16.gmra.mrb[0].mxu0 %v580
        %v649 = vpop.f32.mrb[0].mxu0
        %v650 = vadd.f32 0.0, %v649
        %v651 = vpop.f32.mrb[0].mxu0
        %v652 = vpop.f32.mrb[0].mxu0
        %v653 = vadd.f32 0.0, %v652
        %v654 = vpop.f32.mrb[0].mxu0
        %655 = vmatprep.mubr.bf16.mxu0 0
        %656 = vmatmul.mubr.bf16.gmra.mrb[0].mxu0 %v583
        %v657 = vpop.f32.mrb[0].mxu0
        %v658 = vadd.f32 0.0, %v657
        %v659 = vpop.f32.mrb[0].mxu0
        %v660 = vpop.f32.mrb[0].mxu0
        %v661 = vadd.f32 0.0, %v660
        %v662 = vpop.f32.mrb[0].mxu0
        %663 = vmatprep.mubr.bf16.mxu0 0
        %664 = vmatmul.mubr.bf16.gmra.mrb[0].mxu0 %v586
        %v665 = vpop.f32.mrb[0].mxu0
        %v666 = vadd.f32 0.0, %v665
        %v667 = vpop.f32.mrb[0].mxu0
        %v668 = vpop.f32.mrb[0].mxu0
        %v669 = vadd.f32 0.0, %v668
        %v670 = vpop.f32.mrb[0].mxu0
        %671 = vmatprep.mubr.bf16.mxu0 0
        %672 = vmatmul.mubr.bf16.gmra.mrb[0].mxu0 %v589
        %v673 = vpop.f32.mrb[0].mxu0
        %v674 = vadd.f32 0.0, %v673
        %v675 = vpop.f32.mrb[0].mxu0
        %v676 = vpop.f32.mrb[0].mxu0
        %v677 = vadd.f32 0.0, %v676
        %v678 = vpop.f32.mrb[0].mxu0
        %679 = vmatprep.mubr.bf16.mxu0 0
        %680 = vmatmul.mubr.bf16.gmra.mrb[0].mxu0 %v592
        %v681 = vpop.f32.mrb[0].mxu0
        %v682 = vadd.f32 0.0, %v681
        %v683 = vpop.f32.mrb[0].mxu0
        %v684 = vpop.f32.mrb[0].mxu0
        %v685 = vadd.f32 0.0, %v684
        %v686 = vpop.f32.mrb[0].mxu0
        %687 = vmatprep.mubr.bf16.mxu0 0
        %688 = vmatmul.mubr.bf16.gmra.mrb[0].mxu0 %v595
        %v689 = vpop.f32.mrb[0].mxu0
        %v690 = vadd.f32 0.0, %v689
        %v691 = vpop.f32.mrb[0].mxu0
        %v692 = vpop.f32.mrb[0].mxu0
        %v693 = vadd.f32 0.0, %v692
        %v694 = vpop.f32.mrb[0].mxu0
        %695 = vmatprep.mubr.bf16.mxu0 0
        %696 = vmatmul.mubr.bf16.gmra.mrb[0].mxu0 %v598
        %v697 = vpop.f32.mrb[0].mxu0
        %v698 = vadd.f32 0.0, %v697
        %v699 = vpop.f32.mrb[0].mxu0
        %v700 = vpop.f32.mrb[0].mxu0
        %v701 = vadd.f32 0.0, %v700
        %v702 = vpop.f32.mrb[0].mxu0
        %703 = vdwg.mxu0
        %v707 = vunpack.c.l.b16 %v455
        %v708 = vunpack.c.l.b16 %v456
        %v709 = vunpack.c.l.b16 %v457
        %v710 = vpack.c.b16 %v708, %v707
        %v711 = vpack.c.b16 %v709, %v709
        %v714 = vsel %vm575, %v447, 0
        %v717 = vsel %vm575, %v448, 0
        %v720 = vsel %vm575, %v449, 0
        %v723 = vsel %vm575, %v450, 0
        %v726 = vsel %vm575, %v451, 0
        %v729 = vsel %vm575, %v452, 0
        %v732 = vsel %vm575, %v453, 0
        %v735 = vsel %vm575, %v454, 0
        %v738 = vand.u32 %v711, %v603
        %740 = vmatprep.subr.bf16.mxu0 0
        %741 = vmatpush1.bf16.msra.mxu0 %v710
        %742 = vmatprep.subr.bf16.mxu0 0
        %743 = vmatpush1.bf16.msra.mxu0 %v738
        %744 = vmatprep.subr.bf16.mxu0 0
        %745 = vmatpush1.bf16.msra.mxu0 0
        %746 = vmatprep.subr.bf16.mxu0 0
        %747 = vmatpush1.bf16.msra.mxu0 0
        %748 = vmatprep.subr.bf16.mxu0 0
        %749 = vmatpush1.bf16.msra.mxu0 0
        %750 = vmatprep.subr.bf16.mxu0 0
        %751 = vmatpush1.bf16.msra.mxu0 0
        %752 = vmatprep.subr.bf16.mxu0 0
        %753 = vmatpush1.bf16.msra.mxu0 0
        %754 = vmatprep.subr.bf16.mxu0 0
        %755 = vmatpush1.bf16.msra.mxu0 0
        %756 = vmatprep.subr.bf16.mxu0 0
        %757 = vmatpush1.bf16.msra.mxu0 0
        %758 = vmatprep.subr.bf16.mxu0 0
        %759 = vmatpush1.bf16.msra.mxu0 0
        %760 = vmatprep.subr.bf16.mxu0 0
        %761 = vmatpush1.bf16.msra.mxu0 0
        %762 = vmatprep.subr.bf16.mxu0 0
        %763 = vmatpush1.bf16.msra.mxu0 0
        %764 = vmatprep.subr.bf16.mxu0 0
        %765 = vmatpush1.bf16.msra.mxu0 0
        %766 = vmatprep.subr.bf16.mxu0 0
        %767 = vmatpush1.bf16.msra.mxu0 0
        %768 = vmatprep.subr.bf16.mxu0 0
        %769 = vmatpush1.bf16.msra.mxu0 0
        %770 = vmatprep.subr.bf16.mxu0 0
        %771 = vmatpush1.bf16.msra.mxu0 0
        %772 = vmatprep.mubr.bf16.mxu0 0
        %773 = vmatmul.mubr.bf16.gmra.mrb[0].mxu0 %v714
        %v774 = vpop.f32.mrb[0].mxu0
        %v775 = vadd.f32 %v642, %v774
        %v776 = vpop.f32.mrb[0].mxu0
        %v777 = vpop.f32.mrb[0].mxu0
        %v778 = vadd.f32 %v645, %v777
        %v779 = vpop.f32.mrb[0].mxu0
        %780 = vmatprep.mubr.bf16.mxu0 0
        %781 = vmatmul.mubr.bf16.gmra.mrb[0].mxu0 %v717
        %v782 = vpop.f32.mrb[0].mxu0
        %v783 = vadd.f32 %v650, %v782
        %v784 = vpop.f32.mrb[0].mxu0
        %v785 = vpop.f32.mrb[0].mxu0
        %v786 = vadd.f32 %v653, %v785
        %v787 = vpop.f32.mrb[0].mxu0
        %788 = vmatprep.mubr.bf16.mxu0 0
        %789 = vmatmul.mubr.bf16.gmra.mrb[0].mxu0 %v720
        %v790 = vpop.f32.mrb[0].mxu0
        %v791 = vadd.f32 %v658, %v790
        %v792 = vpop.f32.mrb[0].mxu0
        %v793 = vpop.f32.mrb[0].mxu0
        %v794 = vadd.f32 %v661, %v793
        %v795 = vpop.f32.mrb[0].mxu0
        %796 = vmatprep.mubr.bf16.mxu0 0
        %797 = vmatmul.mubr.bf16.gmra.mrb[0].mxu0 %v723
        %v798 = vpop.f32.mrb[0].mxu0
        %v799 = vadd.f32 %v666, %v798
        %v800 = vpop.f32.mrb[0].mxu0
        %v801 = vpop.f32.mrb[0].mxu0
        %v802 = vadd.f32 %v669, %v801
        %v803 = vpop.f32.mrb[0].mxu0
        %804 = vmatprep.mubr.bf16.mxu0 0
        %805 = vmatmul.mubr.bf16.gmra.mrb[0].mxu0 %v726
        %v806 = vpop.f32.mrb[0].mxu0
        %v807 = vadd.f32 %v674, %v806
        %v808 = vpop.f32.mrb[0].mxu0
        %v809 = vpop.f32.mrb[0].mxu0
        %v810 = vadd.f32 %v677, %v809
        %v811 = vpop.f32.mrb[0].mxu0
        %812 = vmatprep.mubr.bf16.mxu0 0
        %813 = vmatmul.mubr.bf16.gmra.mrb[0].mxu0 %v729
        %v814 = vpop.f32.mrb[0].mxu0
        %v815 = vadd.f32 %v682, %v814
        %v816 = vpop.f32.mrb[0].mxu0
        %v817 = vpop.f32.mrb[0].mxu0
        %v818 = vadd.f32 %v685, %v817
        %v819 = vpop.f32.mrb[0].mxu0
        %820 = vmatprep.mubr.bf16.mxu0 0
        %821 = vmatmul.mubr.bf16.gmra.mrb[0].mxu0 %v732
        %v822 = vpop.f32.mrb[0].mxu0
        %v823 = vadd.f32 %v690, %v822
        %v824 = vpop.f32.mrb[0].mxu0
        %v825 = vpop.f32.mrb[0].mxu0
        %v826 = vadd.f32 %v693, %v825
        %v827 = vpop.f32.mrb[0].mxu0
        %828 = vmatprep.mubr.bf16.mxu0 0
        %829 = vmatmul.mubr.bf16.gmra.mrb[0].mxu0 %v735
        %v830 = vpop.f32.mrb[0].mxu0
        %v831 = vadd.f32 %v698, %v830
        %v832 = vpop.f32.mrb[0].mxu0
        %v833 = vpop.f32.mrb[0].mxu0
        %v834 = vadd.f32 %v701, %v833
        %v835 = vpop.f32.mrb[0].mxu0
        %836 = vdwg.mxu0
        %837 = vset.pattern.permute.xlu0 2
        %838 = vperm.xlu0 %837, %v333
        %v839 = vpop.permute.xlu0 %838
        %840 = vset.pattern.permute.xlu0 2
        %841 = vperm.xlu0 %840, %v334
        %v842 = vpop.permute.xlu0 %841
        %843 = vset.pattern.permute.xlu0 2
        %844 = vperm.xlu0 %843, %v335
        %v845 = vpop.permute.xlu0 %844
        %846 = vset.pattern.permute.xlu0 2
        %847 = vperm.xlu0 %846, %v336
        %v848 = vpop.permute.xlu0 %847
        %849 = vset.pattern.permute.xlu0 2
        %850 = vperm.xlu0 %849, %v337
        %v851 = vpop.permute.xlu0 %850
        %852 = vset.pattern.permute.xlu0 2
        %853 = vperm.xlu0 %852, %v338
        %v854 = vpop.permute.xlu0 %853
        %855 = vset.pattern.permute.xlu0 2
        %856 = vperm.xlu0 %855, %v339
        %v857 = vpop.permute.xlu0 %856
        %858 = vset.pattern.permute.xlu0 2
        %859 = vperm.xlu0 %858, %v340
        %v860 = vpop.permute.xlu0 %859
        %861 = vset.pattern.permute.xlu0 2
        %862 = vperm.xlu0 %861, %v341
        %v863 = vpop.permute.xlu0 %862
        %864 = vset.pattern.permute.xlu0 2
        %865 = vperm.xlu0 %864, %v342
        %v866 = vpop.permute.xlu0 %865
        %867 = vset.pattern.permute.xlu0 2
        %868 = vperm.xlu0 %867, %v343
        %v869 = vpop.permute.xlu0 %868
        %870 = vset.pattern.permute.xlu0 2
        %871 = vperm.xlu0 %870, %v344
        %v872 = vpop.permute.xlu0 %871
        %873 = vset.pattern.permute.xlu0 2
        %874 = vperm.xlu0 %873, %v345
        %v875 = vpop.permute.xlu0 %874
        %876 = vset.pattern.permute.xlu0 2
        %877 = vperm.xlu0 %876, %v346
        %v878 = vpop.permute.xlu0 %877
        %879 = vset.pattern.permute.xlu0 2
        %880 = vperm.xlu0 %879, %v347
        %v881 = vpop.permute.xlu0 %880
        %882 = vset.pattern.permute.xlu0 2
        %883 = vperm.xlu0 %882, %v348
        %v884 = vpop.permute.xlu0 %883
        %vm885 = vcmp.eq.s32.totalorder %v839, %v350
        %vm886 = vcmp.eq.s32.totalorder %v842, %v350
        %vm887 = vcmp.eq.s32.totalorder %v845, %v350
        %vm888 = vcmp.eq.s32.totalorder %v848, %v350
        %vm889 = vcmp.eq.s32.totalorder %v851, %v350
        %vm890 = vcmp.eq.s32.totalorder %v854, %v350
        %vm891 = vcmp.eq.s32.totalorder %v857, %v350
        %vm892 = vcmp.eq.s32.totalorder %v860, %v350
        %vm893 = vcmp.eq.s32.totalorder %v863, %v350
        %vm894 = vcmp.eq.s32.totalorder %v866, %v350
        %vm895 = vcmp.eq.s32.totalorder %v869, %v350
        %vm896 = vcmp.eq.s32.totalorder %v872, %v350
        %vm897 = vcmp.eq.s32.totalorder %v875, %v350
        %vm898 = vcmp.eq.s32.totalorder %v878, %v350
        %vm899 = vcmp.eq.s32.totalorder %v881, %v350
        %vm900 = vcmp.eq.s32.totalorder %v884, %v350
        %v901 = vsel %vm885, 1, 0
        %v902 = vsel %vm886, 1, 0
        %v903 = vsel %vm887, 1, 0
        %v904 = vsel %vm888, 1, 0
        %v905 = vsel %vm889, 1, 0
        %v906 = vsel %vm890, 1, 0
        %v907 = vsel %vm891, 1, 0
        %v908 = vsel %vm892, 1, 0
        %v909 = vsel %vm893, 1, 0
        %v910 = vsel %vm894, 1, 0
        %v911 = vsel %vm895, 1, 0
        %v912 = vsel %vm896, 1, 0
        %v913 = vsel %vm897, 1, 0
        %v914 = vsel %vm898, 1, 0
        %v915 = vsel %vm899, 1, 0
        %v916 = vsel %vm900, 1, 0
        %v917 = vcvt.s32.f32 %v901
        %v918 = vcvt.s32.f32 %v902
        %v919 = vcvt.s32.f32 %v903
        %v920 = vcvt.s32.f32 %v904
        %v921 = vcvt.s32.f32 %v905
        %v922 = vcvt.s32.f32 %v906
        %v923 = vcvt.s32.f32 %v907
        %v924 = vcvt.s32.f32 %v908
        %v925 = vcvt.s32.f32 %v909
        %v926 = vcvt.s32.f32 %v910
        %v927 = vcvt.s32.f32 %v911
        %v928 = vcvt.s32.f32 %v912
        %v929 = vcvt.s32.f32 %v913
        %v930 = vcvt.s32.f32 %v914
        %v931 = vcvt.s32.f32 %v915
        %v932 = vcvt.s32.f32 %v916
        %v933 = vpack.c.bf16 %v918, %v917
        %v934 = vpack.c.bf16 %v920, %v919
        %v935 = vpack.c.bf16 %v922, %v921
        %v936 = vpack.c.bf16 %v924, %v923
        %v937 = vpack.c.bf16 %v926, %v925
        %v938 = vpack.c.bf16 %v928, %v927
        %v939 = vpack.c.bf16 %v930, %v929
        %v940 = vpack.c.bf16 %v932, %v931
        %s941 = scalar_lea.vmem %s1, 24
        %v942 = vld [vmem:[%s941] sm:$0xf]
        %v943 = vld [vmem:[%s941 + $0x4] sm:$0xf]
        %v944 = vld [vmem:[%s941 + $0x8] sm:$0x7]
        %v948 = vunpack.c.l.b16 %v942
        %v949 = vunpack.c.l.b16 %v943
        %v950 = vunpack.c.l.b16 %v944
        %v951 = vpack.c.b16 %v949, %v948
        %v952 = vpack.c.b16 %v950, %v950
        %v955 = vsel %vm575, %v933, 0
        %v958 = vsel %vm575, %v934, 0
        %v961 = vsel %vm575, %v935, 0
        %v964 = vsel %vm575, %v936, 0
        %v967 = vsel %vm575, %v937, 0
        %v970 = vsel %vm575, %v938, 0
        %v973 = vsel %vm575, %v939, 0
        %v976 = vsel %vm575, %v940, 0
        %v979 = vand.u32 %v952, %v603
        %981 = vmatprep.subr.bf16.mxu0 0
        %982 = vmatpush1.bf16.msra.mxu0 %v951
        %983 = vmatprep.subr.bf16.mxu0 0
        %984 = vmatpush1.bf16.msra.mxu0 %v979
        %985 = vmatprep.subr.bf16.mxu0 0
        %986 = vmatpush1.bf16.msra.mxu0 0
        %987 = vmatprep.subr.bf16.mxu0 0
        %988 = vmatpush1.bf16.msra.mxu0 0
        %989 = vmatprep.subr.bf16.mxu0 0
        %990 = vmatpush1.bf16.msra.mxu0 0
        %991 = vmatprep.subr.bf16.mxu0 0
        %992 = vmatpush1.bf16.msra.mxu0 0
        %993 = vmatprep.subr.bf16.mxu0 0
        %994 = vmatpush1.bf16.msra.mxu0 0
        %995 = vmatprep.subr.bf16.mxu0 0
        %996 = vmatpush1.bf16.msra.mxu0 0
        %997 = vmatprep.subr.bf16.mxu0 0
        %998 = vmatpush1.bf16.msra.mxu0 0
        %999 = vmatprep.subr.bf16.mxu0 0
        %1000 = vmatpush1.bf16.msra.mxu0 0
        %1001 = vmatprep.subr.bf16.mxu0 0
        %1002 = vmatpush1.bf16.msra.mxu0 0
        %1003 = vmatprep.subr.bf16.mxu0 0
        %1004 = vmatpush1.bf16.msra.mxu0 0
        %1005 = vmatprep.subr.bf16.mxu0 0
        %1006 = vmatpush1.bf16.msra.mxu0 0
        %1007 = vmatprep.subr.bf16.mxu0 0
        %1008 = vmatpush1.bf16.msra.mxu0 0
        %1009 = vmatprep.subr.bf16.mxu0 0
        %1010 = vmatpush1.bf16.msra.mxu0 0
        %1011 = vmatprep.subr.bf16.mxu0 0
        %1012 = vmatpush1.bf16.msra.mxu0 0
        %1013 = vmatprep.mubr.bf16.mxu0 0
        %1014 = vmatmul.mubr.bf16.gmra.mrb[0].mxu0 %v955
        %v1015 = vpop.f32.mrb[0].mxu0
        %v1016 = vadd.f32 0.0, %v1015
        %v1017 = vpop.f32.mrb[0].mxu0
        %v1018 = vpop.f32.mrb[0].mxu0
        %v1019 = vadd.f32 0.0, %v1018
        %v1020 = vpop.f32.mrb[0].mxu0
        %1021 = vmatprep.mubr.bf16.mxu0 0
        %1022 = vmatmul.mubr.bf16.gmra.mrb[0].mxu0 %v958
        %v1023 = vpop.f32.mrb[0].mxu0
        %v1024 = vadd.f32 0.0, %v1023
        %v1025 = vpop.f32.mrb[0].mxu0
        %v1026 = vpop.f32.mrb[0].mxu0
        %v1027 = vadd.f32 0.0, %v1026
        %v1028 = vpop.f32.mrb[0].mxu0
        %1029 = vmatprep.mubr.bf16.mxu0 0
        %1030 = vmatmul.mubr.bf16.gmra.mrb[0].mxu0 %v961
        %v1031 = vpop.f32.mrb[0].mxu0
        %v1032 = vadd.f32 0.0, %v1031
        %v1033 = vpop.f32.mrb[0].mxu0
        %v1034 = vpop.f32.mrb[0].mxu0
        %v1035 = vadd.f32 0.0, %v1034
        %v1036 = vpop.f32.mrb[0].mxu0
        %1037 = vmatprep.mubr.bf16.mxu0 0
        %1038 = vmatmul.mubr.bf16.gmra.mrb[0].mxu0 %v964
        %v1039 = vpop.f32.mrb[0].mxu0
        %v1040 = vadd.f32 0.0, %v1039
        %v1041 = vpop.f32.mrb[0].mxu0
        %v1042 = vpop.f32.mrb[0].mxu0
        %v1043 = vadd.f32 0.0, %v1042
        %v1044 = vpop.f32.mrb[0].mxu0
        %1045 = vmatprep.mubr.bf16.mxu0 0
        %1046 = vmatmul.mubr.bf16.gmra.mrb[0].mxu0 %v967
        %v1047 = vpop.f32.mrb[0].mxu0
        %v1048 = vadd.f32 0.0, %v1047
        %v1049 = vpop.f32.mrb[0].mxu0
        %v1050 = vpop.f32.mrb[0].mxu0
        %v1051 = vadd.f32 0.0, %v1050
        %v1052 = vpop.f32.mrb[0].mxu0
        %1053 = vmatprep.mubr.bf16.mxu0 0
        %1054 = vmatmul.mubr.bf16.gmra.mrb[0].mxu0 %v970
        %v1055 = vpop.f32.mrb[0].mxu0
        %v1056 = vadd.f32 0.0, %v1055
        %v1057 = vpop.f32.mrb[0].mxu0
        %v1058 = vpop.f32.mrb[0].mxu0
        %v1059 = vadd.f32 0.0, %v1058
        %v1060 = vpop.f32.mrb[0].mxu0
        %1061 = vmatprep.mubr.bf16.mxu0 0
        %1062 = vmatmul.mubr.bf16.gmra.mrb[0].mxu0 %v973
        %v1063 = vpop.f32.mrb[0].mxu0
        %v1064 = vadd.f32 0.0, %v1063
        %v1065 = vpop.f32.mrb[0].mxu0
        %v1066 = vpop.f32.mrb[0].mxu0
        %v1067 = vadd.f32 0.0, %v1066
        %v1068 = vpop.f32.mrb[0].mxu0
        %1069 = vmatprep.mubr.bf16.mxu0 0
        %1070 = vmatmul.mubr.bf16.gmra.mrb[0].mxu0 %v976
        %v1071 = vpop.f32.mrb[0].mxu0
        %v1072 = vadd.f32 0.0, %v1071
        %v1073 = vpop.f32.mrb[0].mxu0
        %v1074 = vpop.f32.mrb[0].mxu0
        %v1075 = vadd.f32 0.0, %v1074
        %v1076 = vpop.f32.mrb[0].mxu0
        %1077 = vdwg.mxu0
        %v1078 = vadd.f32 %v775, %v1016
        %v1079 = vadd.f32 %v778, %v1019
        %v1080 = vadd.f32 %v783, %v1024
        %v1081 = vadd.f32 %v786, %v1027
        %v1082 = vadd.f32 %v791, %v1032
        %v1083 = vadd.f32 %v794, %v1035
        %v1084 = vadd.f32 %v799, %v1040
        %v1085 = vadd.f32 %v802, %v1043
        %v1086 = vadd.f32 %v807, %v1048
        %v1087 = vadd.f32 %v810, %v1051
        %v1088 = vadd.f32 %v815, %v1056
        %v1089 = vadd.f32 %v818, %v1059
        %v1090 = vadd.f32 %v823, %v1064
        %v1091 = vadd.f32 %v826, %v1067
        %v1092 = vadd.f32 %v831, %v1072
        %v1093 = vadd.f32 %v834, %v1075
        %1094 = vset.pattern.permute.xlu0 3
        %1095 = vperm.xlu0 %1094, %v333
        %v1096 = vpop.permute.xlu0 %1095
        %1097 = vset.pattern.permute.xlu0 3
        %1098 = vperm.xlu0 %1097, %v334
        %v1099 = vpop.permute.xlu0 %1098
        %1100 = vset.pattern.permute.xlu0 3
        %1101 = vperm.xlu0 %1100, %v335
        %v1102 = vpop.permute.xlu0 %1101
        %1103 = vset.pattern.permute.xlu0 3
        %1104 = vperm.xlu0 %1103, %v336
        %v1105 = vpop.permute.xlu0 %1104
        %1106 = vset.pattern.permute.xlu0 3
        %1107 = vperm.xlu0 %1106, %v337
        %v1108 = vpop.permute.xlu0 %1107
        %1109 = vset.pattern.permute.xlu0 3
        %1110 = vperm.xlu0 %1109, %v338
        %v1111 = vpop.permute.xlu0 %1110
        %1112 = vset.pattern.permute.xlu0 3
        %1113 = vperm.xlu0 %1112, %v339
        %v1114 = vpop.permute.xlu0 %1113
        %1115 = vset.pattern.permute.xlu0 3
        %1116 = vperm.xlu0 %1115, %v340
        %v1117 = vpop.permute.xlu0 %1116
        %1118 = vset.pattern.permute.xlu0 3
        %1119 = vperm.xlu0 %1118, %v341
        %v1120 = vpop.permute.xlu0 %1119
        %1121 = vset.pattern.permute.xlu0 3
        %1122 = vperm.xlu0 %1121, %v342
        %v1123 = vpop.permute.xlu0 %1122
        %1124 = vset.pattern.permute.xlu0 3
        %1125 = vperm.xlu0 %1124, %v343
        %v1126 = vpop.permute.xlu0 %1125
        %1127 = vset.pattern.permute.xlu0 3
        %1128 = vperm.xlu0 %1127, %v344
        %v1129 = vpop.permute.xlu0 %1128
        %1130 = vset.pattern.permute.xlu0 3
        %1131 = vperm.xlu0 %1130, %v345
        %v1132 = vpop.permute.xlu0 %1131
        %1133 = vset.pattern.permute.xlu0 3
        %1134 = vperm.xlu0 %1133, %v346
        %v1135 = vpop.permute.xlu0 %1134
        %1136 = vset.pattern.permute.xlu0 3
        %1137 = vperm.xlu0 %1136, %v347
        %v1138 = vpop.permute.xlu0 %1137
        %1139 = vset.pattern.permute.xlu0 3
        %1140 = vperm.xlu0 %1139, %v348
        %v1141 = vpop.permute.xlu0 %1140
        %vm1142 = vcmp.eq.s32.totalorder %v1096, %v350
        %vm1143 = vcmp.eq.s32.totalorder %v1099, %v350
        %vm1144 = vcmp.eq.s32.totalorder %v1102, %v350
        %vm1145 = vcmp.eq.s32.totalorder %v1105, %v350
        %vm1146 = vcmp.eq.s32.totalorder %v1108, %v350
        %vm1147 = vcmp.eq.s32.totalorder %v1111, %v350
        %vm1148 = vcmp.eq.s32.totalorder %v1114, %v350
        %vm1149 = vcmp.eq.s32.totalorder %v1117, %v350
        %vm1150 = vcmp.eq.s32.totalorder %v1120, %v350
        %vm1151 = vcmp.eq.s32.totalorder %v1123, %v350
        %vm1152 = vcmp.eq.s32.totalorder %v1126, %v350
        %vm1153 = vcmp.eq.s32.totalorder %v1129, %v350
        %vm1154 = vcmp.eq.s32.totalorder %v1132, %v350
        %vm1155 = vcmp.eq.s32.totalorder %v1135, %v350
        %vm1156 = vcmp.eq.s32.totalorder %v1138, %v350
        %vm1157 = vcmp.eq.s32.totalorder %v1141, %v350
        %v1158 = vsel %vm1142, 1, 0
        %v1159 = vsel %vm1143, 1, 0
        %v1160 = vsel %vm1144, 1, 0
        %v1161 = vsel %vm1145, 1, 0
        %v1162 = vsel %vm1146, 1, 0
        %v1163 = vsel %vm1147, 1, 0
        %v1164 = vsel %vm1148, 1, 0
        %v1165 = vsel %vm1149, 1, 0
        %v1166 = vsel %vm1150, 1, 0
        %v1167 = vsel %vm1151, 1, 0
        %v1168 = vsel %vm1152, 1, 0
        %v1169 = vsel %vm1153, 1, 0
        %v1170 = vsel %vm1154, 1, 0
        %v1171 = vsel %vm1155, 1, 0
        %v1172 = vsel %vm1156, 1, 0
        %v1173 = vsel %vm1157, 1, 0
        %v1174 = vcvt.s32.f32 %v1158
        %v1175 = vcvt.s32.f32 %v1159
        %v1176 = vcvt.s32.f32 %v1160
        %v1177 = vcvt.s32.f32 %v1161
        %v1178 = vcvt.s32.f32 %v1162
        %v1179 = vcvt.s32.f32 %v1163
        %v1180 = vcvt.s32.f32 %v1164
        %v1181 = vcvt.s32.f32 %v1165
        %v1182 = vcvt.s32.f32 %v1166
        %v1183 = vcvt.s32.f32 %v1167
        %v1184 = vcvt.s32.f32 %v1168
        %v1185 = vcvt.s32.f32 %v1169
        %v1186 = vcvt.s32.f32 %v1170
        %v1187 = vcvt.s32.f32 %v1171
        %v1188 = vcvt.s32.f32 %v1172
        %v1189 = vcvt.s32.f32 %v1173
        %v1190 = vpack.c.bf16 %v1175, %v1174
        %v1191 = vpack.c.bf16 %v1177, %v1176
        %v1192 = vpack.c.bf16 %v1179, %v1178
        %v1193 = vpack.c.bf16 %v1181, %v1180
        %v1194 = vpack.c.bf16 %v1183, %v1182
        %v1195 = vpack.c.bf16 %v1185, %v1184
        %v1196 = vpack.c.bf16 %v1187, %v1186
        %v1197 = vpack.c.bf16 %v1189, %v1188
        %s1198 = scalar_lea.vmem %s1, 36
        %v1199 = vld [vmem:[%s1198] sm:$0xf]
        %v1200 = vld [vmem:[%s1198 + $0x4] sm:$0xf]
        %v1201 = vld [vmem:[%s1198 + $0x8] sm:$0x7]
        %v1205 = vunpack.c.l.b16 %v1199
        %v1206 = vunpack.c.l.b16 %v1200
        %v1207 = vunpack.c.l.b16 %v1201
        %v1208 = vpack.c.b16 %v1206, %v1205
        %v1209 = vpack.c.b16 %v1207, %v1207
        %v1212 = vsel %vm575, %v1190, 0
        %v1215 = vsel %vm575, %v1191, 0
        %v1218 = vsel %vm575, %v1192, 0
        %v1221 = vsel %vm575, %v1193, 0
        %v1224 = vsel %vm575, %v1194, 0
        %v1227 = vsel %vm575, %v1195, 0
        %v1230 = vsel %vm575, %v1196, 0
        %v1233 = vsel %vm575, %v1197, 0
        %v1236 = vand.u32 %v1209, %v603
        %1238 = vmatprep.subr.bf16.mxu0 0
        %1239 = vmatpush1.bf16.msra.mxu0 %v1208
        %1240 = vmatprep.subr.bf16.mxu0 0
        %1241 = vmatpush1.bf16.msra.mxu0 %v1236
        %1242 = vmatprep.subr.bf16.mxu0 0
        %1243 = vmatpush1.bf16.msra.mxu0 0
        %1244 = vmatprep.subr.bf16.mxu0 0
        %1245 = vmatpush1.bf16.msra.mxu0 0
        %1246 = vmatprep.subr.bf16.mxu0 0
        %1247 = vmatpush1.bf16.msra.mxu0 0
        %1248 = vmatprep.subr.bf16.mxu0 0
        %1249 = vmatpush1.bf16.msra.mxu0 0
        %1250 = vmatprep.subr.bf16.mxu0 0
        %1251 = vmatpush1.bf16.msra.mxu0 0
        %1252 = vmatprep.subr.bf16.mxu0 0
        %1253 = vmatpush1.bf16.msra.mxu0 0
        %1254 = vmatprep.subr.bf16.mxu0 0
        %1255 = vmatpush1.bf16.msra.mxu0 0
        %1256 = vmatprep.subr.bf16.mxu0 0
        %1257 = vmatpush1.bf16.msra.mxu0 0
        %1258 = vmatprep.subr.bf16.mxu0 0
        %1259 = vmatpush1.bf16.msra.mxu0 0
        %1260 = vmatprep.subr.bf16.mxu0 0
        %1261 = vmatpush1.bf16.msra.mxu0 0
        %1262 = vmatprep.subr.bf16.mxu0 0
        %1263 = vmatpush1.bf16.msra.mxu0 0
        %1264 = vmatprep.subr.bf16.mxu0 0
        %1265 = vmatpush1.bf16.msra.mxu0 0
        %1266 = vmatprep.subr.bf16.mxu0 0
        %1267 = vmatpush1.bf16.msra.mxu0 0
        %1268 = vmatprep.subr.bf16.mxu0 0
        %1269 = vmatpush1.bf16.msra.mxu0 0
        %1270 = vmatprep.mubr.bf16.mxu0 0
        %1271 = vmatmul.mubr.bf16.gmra.mrb[0].mxu0 %v1212
        %v1272 = vpop.f32.mrb[0].mxu0
        %v1273 = vadd.f32 0.0, %v1272
        %v1274 = vpop.f32.mrb[0].mxu0
        %v1275 = vpop.f32.mrb[0].mxu0
        %v1276 = vadd.f32 0.0, %v1275
        %v1277 = vpop.f32.mrb[0].mxu0
        %1278 = vmatprep.mubr.bf16.mxu0 0
        %1279 = vmatmul.mubr.bf16.gmra.mrb[0].mxu0 %v1215
        %v1280 = vpop.f32.mrb[0].mxu0
        %v1281 = vadd.f32 0.0, %v1280
        %v1282 = vpop.f32.mrb[0].mxu0
        %v1283 = vpop.f32.mrb[0].mxu0
        %v1284 = vadd.f32 0.0, %v1283
        %v1285 = vpop.f32.mrb[0].mxu0
        %1286 = vmatprep.mubr.bf16.mxu0 0
        %1287 = vmatmul.mubr.bf16.gmra.mrb[0].mxu0 %v1218
        %v1288 = vpop.f32.mrb[0].mxu0
        %v1289 = vadd.f32 0.0, %v1288
        %v1290 = vpop.f32.mrb[0].mxu0
        %v1291 = vpop.f32.mrb[0].mxu0
        %v1292 = vadd.f32 0.0, %v1291
        %v1293 = vpop.f32.mrb[0].mxu0
        %1294 = vmatprep.mubr.bf16.mxu0 0
        %1295 = vmatmul.mubr.bf16.gmra.mrb[0].mxu0 %v1221
        %v1296 = vpop.f32.mrb[0].mxu0
        %v1297 = vadd.f32 0.0, %v1296
        %v1298 = vpop.f32.mrb[0].mxu0
        %v1299 = vpop.f32.mrb[0].mxu0
        %v1300 = vadd.f32 0.0, %v1299
        %v1301 = vpop.f32.mrb[0].mxu0
        %1302 = vmatprep.mubr.bf16.mxu0 0
        %1303 = vmatmul.mubr.bf16.gmra.mrb[0].mxu0 %v1224
        %v1304 = vpop.f32.mrb[0].mxu0
        %v1305 = vadd.f32 0.0, %v1304
        %v1306 = vpop.f32.mrb[0].mxu0
        %v1307 = vpop.f32.mrb[0].mxu0
        %v1308 = vadd.f32 0.0, %v1307
        %v1309 = vpop.f32.mrb[0].mxu0
        %1310 = vmatprep.mubr.bf16.mxu0 0
        %1311 = vmatmul.mubr.bf16.gmra.mrb[0].mxu0 %v1227
        %v1312 = vpop.f32.mrb[0].mxu0
        %v1313 = vadd.f32 0.0, %v1312
        %v1314 = vpop.f32.mrb[0].mxu0
        %v1315 = vpop.f32.mrb[0].mxu0
        %v1316 = vadd.f32 0.0, %v1315
        %v1317 = vpop.f32.mrb[0].mxu0
        %1318 = vmatprep.mubr.bf16.mxu0 0
        %1319 = vmatmul.mubr.bf16.gmra.mrb[0].mxu0 %v1230
        %v1320 = vpop.f32.mrb[0].mxu0
        %v1321 = vadd.f32 0.0, %v1320
        %v1322 = vpop.f32.mrb[0].mxu0
        %v1323 = vpop.f32.mrb[0].mxu0
        %v1324 = vadd.f32 0.0, %v1323
        %v1325 = vpop.f32.mrb[0].mxu0
        %1326 = vmatprep.mubr.bf16.mxu0 0
        %1327 = vmatmul.mubr.bf16.gmra.mrb[0].mxu0 %v1233
        %v1328 = vpop.f32.mrb[0].mxu0
        %v1329 = vadd.f32 0.0, %v1328
        %v1330 = vpop.f32.mrb[0].mxu0
        %v1331 = vpop.f32.mrb[0].mxu0
        %v1332 = vadd.f32 0.0, %v1331
        %v1333 = vpop.f32.mrb[0].mxu0
        %1334 = vdwg.mxu0
        %v1335 = vadd.f32 %v1078, %v1273
        %v1336 = vadd.f32 %v1079, %v1276
        %v1337 = vadd.f32 %v1080, %v1281
        %v1338 = vadd.f32 %v1081, %v1284
        %v1339 = vadd.f32 %v1082, %v1289
        %v1340 = vadd.f32 %v1083, %v1292
        %v1341 = vadd.f32 %v1084, %v1297
        %v1342 = vadd.f32 %v1085, %v1300
        %v1343 = vadd.f32 %v1086, %v1305
        %v1344 = vadd.f32 %v1087, %v1308
        %v1345 = vadd.f32 %v1088, %v1313
        %v1346 = vadd.f32 %v1089, %v1316
        %v1347 = vadd.f32 %v1090, %v1321
        %v1348 = vadd.f32 %v1091, %v1324
        %v1349 = vadd.f32 %v1092, %v1329
        %v1350 = vadd.f32 %v1093, %v1332
        %v1351 = vld [vmem:[%s2] sm:$0x1]
        %v1352 = vlaneseq
        %v1353 = vshrl.u32 %v1352, 7
        %v1354 = vsub.s32 0, %v1353
        %v1355 = vrot.slane %v1351, %v1354
        %v1356 = vmul.f32 %v1335, %v1355
        %v1357 = vmul.f32 %v1336, %v1355
        %v1358 = vmul.f32 %v1337, %v1355
        %v1359 = vmul.f32 %v1338, %v1355
        %v1360 = vmul.f32 %v1339, %v1355
        %v1361 = vmul.f32 %v1340, %v1355
        %v1362 = vmul.f32 %v1341, %v1355
        %v1363 = vmul.f32 %v1342, %v1355
        %v1364 = vmul.f32 %v1343, %v1355
        %v1365 = vmul.f32 %v1344, %v1355
        %v1366 = vmul.f32 %v1345, %v1355
        %v1367 = vmul.f32 %v1346, %v1355
        %v1368 = vmul.f32 %v1347, %v1355
        %v1369 = vmul.f32 %v1348, %v1355
        %v1370 = vmul.f32 %v1349, %v1355
        %v1371 = vmul.f32 %v1350, %v1355
        %vm1372 = vcmask 261120
        %v1373 = vsel %vm1372, %v1356, 0.0
        %1374 = vadd.xlane.f32.xlu0 %v1373
        %v1375 = vpop.xlane.xlu0 %1374
        %v1376 = vsel %vm1372, %v1357, 0.0
        %1377 = vadd.xlane.f32.xlu0 %v1376
        %v1378 = vpop.xlane.xlu0 %1377
        %v1379 = vsel %vm1372, %v1358, 0.0
        %1380 = vadd.xlane.f32.xlu0 %v1379
        %v1381 = vpop.xlane.xlu0 %1380
        %v1382 = vsel %vm1372, %v1359, 0.0
        %1383 = vadd.xlane.f32.xlu0 %v1382
        %v1384 = vpop.xlane.xlu0 %1383
        %v1385 = vsel %vm1372, %v1360, 0.0
        %1386 = vadd.xlane.f32.xlu0 %v1385
        %v1387 = vpop.xlane.xlu0 %1386
        %v1388 = vsel %vm1372, %v1361, 0.0
        %1389 = vadd.xlane.f32.xlu0 %v1388
        %v1390 = vpop.xlane.xlu0 %1389
        %v1391 = vsel %vm1372, %v1362, 0.0
        %1392 = vadd.xlane.f32.xlu0 %v1391
        %v1393 = vpop.xlane.xlu0 %1392
        %v1394 = vsel %vm1372, %v1363, 0.0
        %1395 = vadd.xlane.f32.xlu0 %v1394
        %v1396 = vpop.xlane.xlu0 %1395
        %v1397 = vsel %vm1372, %v1364, 0.0
        %1398 = vadd.xlane.f32.xlu0 %v1397
        %v1399 = vpop.xlane.xlu0 %1398
        %v1400 = vsel %vm1372, %v1365, 0.0
        %1401 = vadd.xlane.f32.xlu0 %v1400
        %v1402 = vpop.xlane.xlu0 %1401
        %v1403 = vsel %vm1372, %v1366, 0.0
        %1404 = vadd.xlane.f32.xlu0 %v1403
        %v1405 = vpop.xlane.xlu0 %1404
        %v1406 = vsel %vm1372, %v1367, 0.0
        %1407 = vadd.xlane.f32.xlu0 %v1406
        %v1408 = vpop.xlane.xlu0 %1407
        %v1409 = vsel %vm1372, %v1368, 0.0
        %1410 = vadd.xlane.f32.xlu0 %v1409
        %v1411 = vpop.xlane.xlu0 %1410
        %v1412 = vsel %vm1372, %v1369, 0.0
        %1413 = vadd.xlane.f32.xlu0 %v1412
        %v1414 = vpop.xlane.xlu0 %1413
        %v1415 = vsel %vm1372, %v1370, 0.0
        %1416 = vadd.xlane.f32.xlu0 %v1415
        %v1417 = vpop.xlane.xlu0 %1416
        %v1418 = vsel %vm1372, %v1371, 0.0
        %1419 = vadd.xlane.f32.xlu0 %v1418
        %v1420 = vpop.xlane.xlu0 %1419
        %v1421 = vmul.f32 %v1335, %v1375
        %v1422 = vmul.f32 %v1336, %v1378
        %v1423 = vmul.f32 %v1337, %v1381
        %v1424 = vmul.f32 %v1338, %v1384
        %v1425 = vmul.f32 %v1339, %v1387
        %v1426 = vmul.f32 %v1340, %v1390
        %v1427 = vmul.f32 %v1341, %v1393
        %v1428 = vmul.f32 %v1342, %v1396
        %v1429 = vmul.f32 %v1343, %v1399
        %v1430 = vmul.f32 %v1344, %v1402
        %v1431 = vmul.f32 %v1345, %v1405
        %v1432 = vmul.f32 %v1346, %v1408
        %v1433 = vmul.f32 %v1347, %v1411
        %v1434 = vmul.f32 %v1348, %v1414
        %v1435 = vmul.f32 %v1349, %v1417
        %v1436 = vmul.f32 %v1350, %v1420
        %v1437 = vld [vmem:[%s3] sm:$0x1]
        %v1438 = vlaneseq
        %v1439 = vshrl.u32 %v1438, 7
        %v1440 = vsub.s32 0, %v1439
        %v1441 = vrot.slane %v1437, %v1440
        %v1442 = vadd.f32 %v1421, %v1441
        %v1443 = vadd.f32 %v1422, %v1441
        %v1444 = vadd.f32 %v1423, %v1441
        %v1445 = vadd.f32 %v1424, %v1441
        %v1446 = vadd.f32 %v1425, %v1441
        %v1447 = vadd.f32 %v1426, %v1441
        %v1448 = vadd.f32 %v1427, %v1441
        %v1449 = vadd.f32 %v1428, %v1441
        %v1450 = vadd.f32 %v1429, %v1441
        %v1451 = vadd.f32 %v1430, %v1441
        %v1452 = vadd.f32 %v1431, %v1441
        %v1453 = vadd.f32 %v1432, %v1441
        %v1454 = vadd.f32 %v1433, %v1441
        %v1455 = vadd.f32 %v1434, %v1441
        %v1456 = vadd.f32 %v1435, %v1441
        %v1457 = vadd.f32 %v1436, %v1441
        %v1458 = vadd.f32 %v1442, %v1335
        %v1459 = vadd.f32 %v1443, %v1336
        %v1460 = vadd.f32 %v1444, %v1337
        %v1461 = vadd.f32 %v1445, %v1338
        %v1462 = vadd.f32 %v1446, %v1339
        %v1463 = vadd.f32 %v1447, %v1340
        %v1464 = vadd.f32 %v1448, %v1341
        %v1465 = vadd.f32 %v1449, %v1342
        %v1466 = vadd.f32 %v1450, %v1343
        %v1467 = vadd.f32 %v1451, %v1344
        %v1468 = vadd.f32 %v1452, %v1345
        %v1469 = vadd.f32 %v1453, %v1346
        %v1470 = vadd.f32 %v1454, %v1347
        %v1471 = vadd.f32 %v1455, %v1348
        %v1472 = vadd.f32 %v1456, %v1349
        %v1473 = vadd.f32 %v1457, %v1350
        %v1474 = vld [vmem:[%s2 + $0x1] sm:$0x1]
        %v1475 = vlaneseq
        %v1476 = vshrl.u32 %v1475, 7
        %v1477 = vsub.s32 0, %v1476
        %v1478 = vrot.slane %v1474, %v1477
        %v1479 = vmul.f32 %v1458, %v1478
        %v1480 = vmul.f32 %v1459, %v1478
        %v1481 = vmul.f32 %v1460, %v1478
        %v1482 = vmul.f32 %v1461, %v1478
        %v1483 = vmul.f32 %v1462, %v1478
        %v1484 = vmul.f32 %v1463, %v1478
        %v1485 = vmul.f32 %v1464, %v1478
        %v1486 = vmul.f32 %v1465, %v1478
        %v1487 = vmul.f32 %v1466, %v1478
        %v1488 = vmul.f32 %v1467, %v1478
        %v1489 = vmul.f32 %v1468, %v1478
        %v1490 = vmul.f32 %v1469, %v1478
        %v1491 = vmul.f32 %v1470, %v1478
        %v1492 = vmul.f32 %v1471, %v1478
        %v1493 = vmul.f32 %v1472, %v1478
        %v1494 = vmul.f32 %v1473, %v1478
        %v1495 = vsel %vm1372, %v1479, 0.0
        %1496 = vadd.xlane.f32.xlu0 %v1495
        %v1497 = vpop.xlane.xlu0 %1496
        %v1498 = vsel %vm1372, %v1480, 0.0
        %1499 = vadd.xlane.f32.xlu0 %v1498
        %v1500 = vpop.xlane.xlu0 %1499
        %v1501 = vsel %vm1372, %v1481, 0.0
        %1502 = vadd.xlane.f32.xlu0 %v1501
        %v1503 = vpop.xlane.xlu0 %1502
        %v1504 = vsel %vm1372, %v1482, 0.0
        %1505 = vadd.xlane.f32.xlu0 %v1504
        %v1506 = vpop.xlane.xlu0 %1505
        %v1507 = vsel %vm1372, %v1483, 0.0
        %1508 = vadd.xlane.f32.xlu0 %v1507
        %v1509 = vpop.xlane.xlu0 %1508
        %v1510 = vsel %vm1372, %v1484, 0.0
        %1511 = vadd.xlane.f32.xlu0 %v1510
        %v1512 = vpop.xlane.xlu0 %1511
        %v1513 = vsel %vm1372, %v1485, 0.0
        %1514 = vadd.xlane.f32.xlu0 %v1513
        %v1515 = vpop.xlane.xlu0 %1514
        %v1516 = vsel %vm1372, %v1486, 0.0
        %1517 = vadd.xlane.f32.xlu0 %v1516
        %v1518 = vpop.xlane.xlu0 %1517
        %v1519 = vsel %vm1372, %v1487, 0.0
        %1520 = vadd.xlane.f32.xlu0 %v1519
        %v1521 = vpop.xlane.xlu0 %1520
        %v1522 = vsel %vm1372, %v1488, 0.0
        %1523 = vadd.xlane.f32.xlu0 %v1522
        %v1524 = vpop.xlane.xlu0 %1523
        %v1525 = vsel %vm1372, %v1489, 0.0
        %1526 = vadd.xlane.f32.xlu0 %v1525
        %v1527 = vpop.xlane.xlu0 %1526
        %v1528 = vsel %vm1372, %v1490, 0.0
        %1529 = vadd.xlane.f32.xlu0 %v1528
        %v1530 = vpop.xlane.xlu0 %1529
        %v1531 = vsel %vm1372, %v1491, 0.0
        %1532 = vadd.xlane.f32.xlu0 %v1531
        %v1533 = vpop.xlane.xlu0 %1532
        %v1534 = vsel %vm1372, %v1492, 0.0
        %1535 = vadd.xlane.f32.xlu0 %v1534
        %v1536 = vpop.xlane.xlu0 %1535
        %v1537 = vsel %vm1372, %v1493, 0.0
        %1538 = vadd.xlane.f32.xlu0 %v1537
        %v1539 = vpop.xlane.xlu0 %1538
        %v1540 = vsel %vm1372, %v1494, 0.0
        %1541 = vadd.xlane.f32.xlu0 %v1540
        %v1542 = vpop.xlane.xlu0 %1541
        %v1543 = vmul.f32 %v1335, %v1497
        %v1544 = vmul.f32 %v1336, %v1500
        %v1545 = vmul.f32 %v1337, %v1503
        %v1546 = vmul.f32 %v1338, %v1506
        %v1547 = vmul.f32 %v1339, %v1509
        %v1548 = vmul.f32 %v1340, %v1512
        %v1549 = vmul.f32 %v1341, %v1515
        %v1550 = vmul.f32 %v1342, %v1518
        %v1551 = vmul.f32 %v1343, %v1521
        %v1552 = vmul.f32 %v1344, %v1524
        %v1553 = vmul.f32 %v1345, %v1527
        %v1554 = vmul.f32 %v1346, %v1530
        %v1555 = vmul.f32 %v1347, %v1533
        %v1556 = vmul.f32 %v1348, %v1536
        %v1557 = vmul.f32 %v1349, %v1539
        %v1558 = vmul.f32 %v1350, %v1542
        %v1559 = vld [vmem:[%s3 + $0x1] sm:$0x1]
        %v1560 = vlaneseq
        %v1561 = vshrl.u32 %v1560, 7
        %v1562 = vsub.s32 0, %v1561
        %v1563 = vrot.slane %v1559, %v1562
        %v1564 = vadd.f32 %v1543, %v1563
        %v1565 = vadd.f32 %v1544, %v1563
        %v1566 = vadd.f32 %v1545, %v1563
        %v1567 = vadd.f32 %v1546, %v1563
        %v1568 = vadd.f32 %v1547, %v1563
        %v1569 = vadd.f32 %v1548, %v1563
        %v1570 = vadd.f32 %v1549, %v1563
        %v1571 = vadd.f32 %v1550, %v1563
        %v1572 = vadd.f32 %v1551, %v1563
        %v1573 = vadd.f32 %v1552, %v1563
        %v1574 = vadd.f32 %v1553, %v1563
        %v1575 = vadd.f32 %v1554, %v1563
        %v1576 = vadd.f32 %v1555, %v1563
        %v1577 = vadd.f32 %v1556, %v1563
        %v1578 = vadd.f32 %v1557, %v1563
        %v1579 = vadd.f32 %v1558, %v1563
        %v1580 = vadd.f32 %v1564, %v1458
        %v1581 = vadd.f32 %v1565, %v1459
        %v1582 = vadd.f32 %v1566, %v1460
        %v1583 = vadd.f32 %v1567, %v1461
        %v1584 = vadd.f32 %v1568, %v1462
        %v1585 = vadd.f32 %v1569, %v1463
        %v1586 = vadd.f32 %v1570, %v1464
        %v1587 = vadd.f32 %v1571, %v1465
        %v1588 = vadd.f32 %v1572, %v1466
        %v1589 = vadd.f32 %v1573, %v1467
        %v1590 = vadd.f32 %v1574, %v1468
        %v1591 = vadd.f32 %v1575, %v1469
        %v1592 = vadd.f32 %v1576, %v1470
        %v1593 = vadd.f32 %v1577, %v1471
        %v1594 = vadd.f32 %v1578, %v1472
        %v1595 = vadd.f32 %v1579, %v1473
        %v1596 = vld [vmem:[%s2 + $0x2] sm:$0x1]
        %v1597 = vlaneseq
        %v1598 = vshrl.u32 %v1597, 7
        %v1599 = vsub.s32 0, %v1598
        %v1600 = vrot.slane %v1596, %v1599
        %v1601 = vmul.f32 %v1580, %v1600
        %v1602 = vmul.f32 %v1581, %v1600
        %v1603 = vmul.f32 %v1582, %v1600
        %v1604 = vmul.f32 %v1583, %v1600
        %v1605 = vmul.f32 %v1584, %v1600
        %v1606 = vmul.f32 %v1585, %v1600
        %v1607 = vmul.f32 %v1586, %v1600
        %v1608 = vmul.f32 %v1587, %v1600
        %v1609 = vmul.f32 %v1588, %v1600
        %v1610 = vmul.f32 %v1589, %v1600
        %v1611 = vmul.f32 %v1590, %v1600
        %v1612 = vmul.f32 %v1591, %v1600
        %v1613 = vmul.f32 %v1592, %v1600
        %v1614 = vmul.f32 %v1593, %v1600
        %v1615 = vmul.f32 %v1594, %v1600
        %v1616 = vmul.f32 %v1595, %v1600
        %v1617 = vsel %vm1372, %v1601, 0.0
        %1618 = vadd.xlane.f32.xlu0 %v1617
        %v1619 = vpop.xlane.xlu0 %1618
        %v1620 = vsel %vm1372, %v1602, 0.0
        %1621 = vadd.xlane.f32.xlu0 %v1620
        %v1622 = vpop.xlane.xlu0 %1621
        %v1623 = vsel %vm1372, %v1603, 0.0
        %1624 = vadd.xlane.f32.xlu0 %v1623
        %v1625 = vpop.xlane.xlu0 %1624
        %v1626 = vsel %vm1372, %v1604, 0.0
        %1627 = vadd.xlane.f32.xlu0 %v1626
        %v1628 = vpop.xlane.xlu0 %1627
        %v1629 = vsel %vm1372, %v1605, 0.0
        %1630 = vadd.xlane.f32.xlu0 %v1629
        %v1631 = vpop.xlane.xlu0 %1630
        %v1632 = vsel %vm1372, %v1606, 0.0
        %1633 = vadd.xlane.f32.xlu0 %v1632
        %v1634 = vpop.xlane.xlu0 %1633
        %v1635 = vsel %vm1372, %v1607, 0.0
        %1636 = vadd.xlane.f32.xlu0 %v1635
        %v1637 = vpop.xlane.xlu0 %1636
        %v1638 = vsel %vm1372, %v1608, 0.0
        %1639 = vadd.xlane.f32.xlu0 %v1638
        %v1640 = vpop.xlane.xlu0 %1639
        %v1641 = vsel %vm1372, %v1609, 0.0
        %1642 = vadd.xlane.f32.xlu0 %v1641
        %v1643 = vpop.xlane.xlu0 %1642
        %v1644 = vsel %vm1372, %v1610, 0.0
        %1645 = vadd.xlane.f32.xlu0 %v1644
        %v1646 = vpop.xlane.xlu0 %1645
        %v1647 = vsel %vm1372, %v1611, 0.0
        %1648 = vadd.xlane.f32.xlu0 %v1647
        %v1649 = vpop.xlane.xlu0 %1648
        %v1650 = vsel %vm1372, %v1612, 0.0
        %1651 = vadd.xlane.f32.xlu0 %v1650
        %v1652 = vpop.xlane.xlu0 %1651
        %v1653 = vsel %vm1372, %v1613, 0.0
        %1654 = vadd.xlane.f32.xlu0 %v1653
        %v1655 = vpop.xlane.xlu0 %1654
        %v1656 = vsel %vm1372, %v1614, 0.0
        %1657 = vadd.xlane.f32.xlu0 %v1656
        %v1658 = vpop.xlane.xlu0 %1657
        %v1659 = vsel %vm1372, %v1615, 0.0
        %1660 = vadd.xlane.f32.xlu0 %v1659
        %v1661 = vpop.xlane.xlu0 %1660
        %v1662 = vsel %vm1372, %v1616, 0.0
        %1663 = vadd.xlane.f32.xlu0 %v1662
        %v1664 = vpop.xlane.xlu0 %1663
        %v1665 = vmul.f32 %v1335, %v1619
        %v1666 = vmul.f32 %v1336, %v1622
        %v1667 = vmul.f32 %v1337, %v1625
        %v1668 = vmul.f32 %v1338, %v1628
        %v1669 = vmul.f32 %v1339, %v1631
        %v1670 = vmul.f32 %v1340, %v1634
        %v1671 = vmul.f32 %v1341, %v1637
        %v1672 = vmul.f32 %v1342, %v1640
        %v1673 = vmul.f32 %v1343, %v1643
        %v1674 = vmul.f32 %v1344, %v1646
        %v1675 = vmul.f32 %v1345, %v1649
        %v1676 = vmul.f32 %v1346, %v1652
        %v1677 = vmul.f32 %v1347, %v1655
        %v1678 = vmul.f32 %v1348, %v1658
        %v1679 = vmul.f32 %v1349, %v1661
        %v1680 = vmul.f32 %v1350, %v1664
        %v1681 = vld [vmem:[%s3 + $0x2] sm:$0x1]
        %v1682 = vlaneseq
        %v1683 = vshrl.u32 %v1682, 7
        %v1684 = vsub.s32 0, %v1683
        %v1685 = vrot.slane %v1681, %v1684
        %v1686 = vadd.f32 %v1665, %v1685
        %v1687 = vadd.f32 %v1666, %v1685
        %v1688 = vadd.f32 %v1667, %v1685
        %v1689 = vadd.f32 %v1668, %v1685
        %v1690 = vadd.f32 %v1669, %v1685
        %v1691 = vadd.f32 %v1670, %v1685
        %v1692 = vadd.f32 %v1671, %v1685
        %v1693 = vadd.f32 %v1672, %v1685
        %v1694 = vadd.f32 %v1673, %v1685
        %v1695 = vadd.f32 %v1674, %v1685
        %v1696 = vadd.f32 %v1675, %v1685
        %v1697 = vadd.f32 %v1676, %v1685
        %v1698 = vadd.f32 %v1677, %v1685
        %v1699 = vadd.f32 %v1678, %v1685
        %v1700 = vadd.f32 %v1679, %v1685
        %v1701 = vadd.f32 %v1680, %v1685
        %v1702 = vadd.f32 %v1686, %v1580
        %v1703 = vadd.f32 %v1687, %v1581
        %v1704 = vadd.f32 %v1688, %v1582
        %v1705 = vadd.f32 %v1689, %v1583
        %v1706 = vadd.f32 %v1690, %v1584
        %v1707 = vadd.f32 %v1691, %v1585
        %v1708 = vadd.f32 %v1692, %v1586
        %v1709 = vadd.f32 %v1693, %v1587
        %v1710 = vadd.f32 %v1694, %v1588
        %v1711 = vadd.f32 %v1695, %v1589
        %v1712 = vadd.f32 %v1696, %v1590
        %v1713 = vadd.f32 %v1697, %v1591
        %v1714 = vadd.f32 %v1698, %v1592
        %v1715 = vadd.f32 %v1699, %v1593
        %v1716 = vadd.f32 %v1700, %v1594
        %v1717 = vadd.f32 %v1701, %v1595
        %v1718 = vld [vmem:[%s4] sm:$0xf]
        %v1719 = vld [vmem:[%s4 + $0x4] sm:$0xf]
        %v1720 = vld [vmem:[%s4 + $0x8] sm:$0xf]
        %v1721 = vld [vmem:[%s4 + $0xc] sm:$0xf]
        %v1722 = vld [vmem:[%s5] sm:$0x1]
        %v1723 = vpack.c.bf16 %v1336, %v1335
        %v1724 = vpack.c.bf16 %v1338, %v1337
        %v1725 = vpack.c.bf16 %v1340, %v1339
        %v1726 = vpack.c.bf16 %v1342, %v1341
        %v1727 = vpack.c.bf16 %v1344, %v1343
        %v1728 = vpack.c.bf16 %v1346, %v1345
        %v1729 = vpack.c.bf16 %v1348, %v1347
        %v1730 = vpack.c.bf16 %v1350, %v1349
        %v1732 = vlaneseq
        %v1733 = vshrl.u32 %v1732, 7
        %v1734 = vsub.s32 0, %v1733
        %v1735 = vrot.slane %v1722, %v1734
        %v1741 = vunpack.c.l.b16 %v1718
        %v1742 = vunpack.c.l.b16 %v1719
        %v1743 = vunpack.c.l.b16 %v1720
        %v1744 = vunpack.c.l.b16 %v1721
        %v1745 = vpack.c.b16 %v1742, %v1741
        %v1746 = vpack.c.b16 %v1744, %v1743
        %v1750 = vsel %vm1372, %v1723, 0
        %v1753 = vsel %vm1372, %v1724, 0
        %v1756 = vsel %vm1372, %v1725, 0
        %v1759 = vsel %vm1372, %v1726, 0
        %v1762 = vsel %vm1372, %v1727, 0
        %v1765 = vsel %vm1372, %v1728, 0
        %v1768 = vsel %vm1372, %v1729, 0
        %v1771 = vsel %vm1372, %v1730, 0
        %1773 = vmatprep.subr.bf16.mxu0 0
        %1774 = vmatpush1.bf16.msra.mxu0 %v1745
        %1775 = vmatprep.subr.bf16.mxu0 0
        %1776 = vmatpush1.bf16.msra.mxu0 %v1746
        %1777 = vmatprep.subr.bf16.mxu0 0
        %1778 = vmatpush1.bf16.msra.mxu0 0
        %1779 = vmatprep.subr.bf16.mxu0 0
        %1780 = vmatpush1.bf16.msra.mxu0 0
        %1781 = vmatprep.subr.bf16.mxu0 0
        %1782 = vmatpush1.bf16.msra.mxu0 0
        %1783 = vmatprep.subr.bf16.mxu0 0
        %1784 = vmatpush1.bf16.msra.mxu0 0
        %1785 = vmatprep.subr.bf16.mxu0 0
        %1786 = vmatpush1.bf16.msra.mxu0 0
        %1787 = vmatprep.subr.bf16.mxu0 0
        %1788 = vmatpush1.bf16.msra.mxu0 0
        %1789 = vmatprep.subr.bf16.mxu0 0
        %1790 = vmatpush1.bf16.msra.mxu0 0
        %1791 = vmatprep.subr.bf16.mxu0 0
        %1792 = vmatpush1.bf16.msra.mxu0 0
        %1793 = vmatprep.subr.bf16.mxu0 0
        %1794 = vmatpush1.bf16.msra.mxu0 0
        %1795 = vmatprep.subr.bf16.mxu0 0
        %1796 = vmatpush1.bf16.msra.mxu0 0
        %1797 = vmatprep.subr.bf16.mxu0 0
        %1798 = vmatpush1.bf16.msra.mxu0 0
        %1799 = vmatprep.subr.bf16.mxu0 0
        %1800 = vmatpush1.bf16.msra.mxu0 0
        %1801 = vmatprep.subr.bf16.mxu0 0
        %1802 = vmatpush1.bf16.msra.mxu0 0
        %1803 = vmatprep.subr.bf16.mxu0 0
        %1804 = vmatpush1.bf16.msra.mxu0 0
        %1805 = vmatprep.mubr.bf16.mxu0 0
        %1806 = vmatmul.mubr.bf16.gmra.mrb[0].mxu0 %v1750
        %v1807 = vpop.f32.mrb[0].mxu0
        %v1808 = vadd.f32 %v1735, %v1807
        %v1809 = vpop.f32.mrb[0].mxu0
        %v1810 = vpop.f32.mrb[0].mxu0
        %v1811 = vadd.f32 %v1735, %v1810
        %v1812 = vpop.f32.mrb[0].mxu0
        %1813 = vmatprep.mubr.bf16.mxu0 0
        %1814 = vmatmul.mubr.bf16.gmra.mrb[0].mxu0 %v1753
        %v1815 = vpop.f32.mrb[0].mxu0
        %v1816 = vadd.f32 %v1735, %v1815
        %v1817 = vpop.f32.mrb[0].mxu0
        %v1818 = vpop.f32.mrb[0].mxu0
        %v1819 = vadd.f32 %v1735, %v1818
        %v1820 = vpop.f32.mrb[0].mxu0
        %1821 = vmatprep.mubr.bf16.mxu0 0
        %1822 = vmatmul.mubr.bf16.gmra.mrb[0].mxu0 %v1756
        %v1823 = vpop.f32.mrb[0].mxu0
        %v1824 = vadd.f32 %v1735, %v1823
        %v1825 = vpop.f32.mrb[0].mxu0
        %v1826 = vpop.f32.mrb[0].mxu0
        %v1827 = vadd.f32 %v1735, %v1826
        %v1828 = vpop.f32.mrb[0].mxu0
        %1829 = vmatprep.mubr.bf16.mxu0 0
        %1830 = vmatmul.mubr.bf16.gmra.mrb[0].mxu0 %v1759
        %v1831 = vpop.f32.mrb[0].mxu0
        %v1832 = vadd.f32 %v1735, %v1831
        %v1833 = vpop.f32.mrb[0].mxu0
        %v1834 = vpop.f32.mrb[0].mxu0
        %v1835 = vadd.f32 %v1735, %v1834
        %v1836 = vpop.f32.mrb[0].mxu0
        %1837 = vmatprep.mubr.bf16.mxu0 0
        %1838 = vmatmul.mubr.bf16.gmra.mrb[0].mxu0 %v1762
        %v1839 = vpop.f32.mrb[0].mxu0
        %v1840 = vadd.f32 %v1735, %v1839
        %v1841 = vpop.f32.mrb[0].mxu0
        %v1842 = vpop.f32.mrb[0].mxu0
        %v1843 = vadd.f32 %v1735, %v1842
        %v1844 = vpop.f32.mrb[0].mxu0
        %1845 = vmatprep.mubr.bf16.mxu0 0
        %1846 = vmatmul.mubr.bf16.gmra.mrb[0].mxu0 %v1765
        %v1847 = vpop.f32.mrb[0].mxu0
        %v1848 = vadd.f32 %v1735, %v1847
        %v1849 = vpop.f32.mrb[0].mxu0
        %v1850 = vpop.f32.mrb[0].mxu0
        %v1851 = vadd.f32 %v1735, %v1850
        %v1852 = vpop.f32.mrb[0].mxu0
        %1853 = vmatprep.mubr.bf16.mxu0 0
        %1854 = vmatmul.mubr.bf16.gmra.mrb[0].mxu0 %v1768
        %v1855 = vpop.f32.mrb[0].mxu0
        %v1856 = vadd.f32 %v1735, %v1855
        %v1857 = vpop.f32.mrb[0].mxu0
        %v1858 = vpop.f32.mrb[0].mxu0
        %v1859 = vadd.f32 %v1735, %v1858
        %v1860 = vpop.f32.mrb[0].mxu0
        %1861 = vmatprep.mubr.bf16.mxu0 0
        %1862 = vmatmul.mubr.bf16.gmra.mrb[0].mxu0 %v1771
        %v1863 = vpop.f32.mrb[0].mxu0
        %v1864 = vadd.f32 %v1735, %v1863
        %v1865 = vpop.f32.mrb[0].mxu0
        %v1866 = vpop.f32.mrb[0].mxu0
        %v1867 = vadd.f32 %v1735, %v1866
        %v1868 = vpop.f32.mrb[0].mxu0
        %1869 = vdwg.mxu0
        %v1870 = vmax.f32 %v1808, 0.0
        %v1871 = vmax.f32 %v1811, 0.0
        %v1872 = vmax.f32 %v1816, 0.0
        %v1873 = vmax.f32 %v1819, 0.0
        %v1874 = vmax.f32 %v1824, 0.0
        %v1875 = vmax.f32 %v1827, 0.0
        %v1876 = vmax.f32 %v1832, 0.0
        %v1877 = vmax.f32 %v1835, 0.0
        %v1878 = vmax.f32 %v1840, 0.0
        %v1879 = vmax.f32 %v1843, 0.0
        %v1880 = vmax.f32 %v1848, 0.0
        %v1881 = vmax.f32 %v1851, 0.0
        %v1882 = vmax.f32 %v1856, 0.0
        %v1883 = vmax.f32 %v1859, 0.0
        %v1884 = vmax.f32 %v1864, 0.0
        %v1885 = vmax.f32 %v1867, 0.0
        %v1886 = vld [vmem:[%s6] sm:$0xf]
        %v1887 = vld [vmem:[%s6 + $0x4] sm:$0xf]
        %v1888 = vld [vmem:[%s6 + $0x8] sm:$0xf]
        %v1889 = vld [vmem:[%s6 + $0xc] sm:$0xf]
        %v1890 = vld [vmem:[%s7] sm:$0x1]
        %v1891 = vpack.c.bf16 %v1871, %v1870
        %v1892 = vpack.c.bf16 %v1873, %v1872
        %v1893 = vpack.c.bf16 %v1875, %v1874
        %v1894 = vpack.c.bf16 %v1877, %v1876
        %v1895 = vpack.c.bf16 %v1879, %v1878
        %v1896 = vpack.c.bf16 %v1881, %v1880
        %v1897 = vpack.c.bf16 %v1883, %v1882
        %v1898 = vpack.c.bf16 %v1885, %v1884
        %v1900 = vlaneseq
        %v1901 = vshrl.u32 %v1900, 7
        %v1902 = vsub.s32 0, %v1901
        %v1903 = vrot.slane %v1890, %v1902
        %v1909 = vunpack.c.l.b16 %v1886
        %v1910 = vunpack.c.l.b16 %v1887
        %v1911 = vunpack.c.l.b16 %v1888
        %v1912 = vunpack.c.l.b16 %v1889
        %v1913 = vpack.c.b16 %v1910, %v1909
        %v1914 = vpack.c.b16 %v1912, %v1911
        %v1918 = vsel %vm1372, %v1891, 0
        %v1921 = vsel %vm1372, %v1892, 0
        %v1924 = vsel %vm1372, %v1893, 0
        %v1927 = vsel %vm1372, %v1894, 0
        %v1930 = vsel %vm1372, %v1895, 0
        %v1933 = vsel %vm1372, %v1896, 0
        %v1936 = vsel %vm1372, %v1897, 0
        %v1939 = vsel %vm1372, %v1898, 0
        %1941 = vmatprep.subr.bf16.mxu0 0
        %1942 = vmatpush1.bf16.msra.mxu0 %v1913
        %1943 = vmatprep.subr.bf16.mxu0 0
        %1944 = vmatpush1.bf16.msra.mxu0 %v1914
        %1945 = vmatprep.subr.bf16.mxu0 0
        %1946 = vmatpush1.bf16.msra.mxu0 0
        %1947 = vmatprep.subr.bf16.mxu0 0
        %1948 = vmatpush1.bf16.msra.mxu0 0
        %1949 = vmatprep.subr.bf16.mxu0 0
        %1950 = vmatpush1.bf16.msra.mxu0 0
        %1951 = vmatprep.subr.bf16.mxu0 0
        %1952 = vmatpush1.bf16.msra.mxu0 0
        %1953 = vmatprep.subr.bf16.mxu0 0
        %1954 = vmatpush1.bf16.msra.mxu0 0
        %1955 = vmatprep.subr.bf16.mxu0 0
        %1956 = vmatpush1.bf16.msra.mxu0 0
        %1957 = vmatprep.subr.bf16.mxu0 0
        %1958 = vmatpush1.bf16.msra.mxu0 0
        %1959 = vmatprep.subr.bf16.mxu0 0
        %1960 = vmatpush1.bf16.msra.mxu0 0
        %1961 = vmatprep.subr.bf16.mxu0 0
        %1962 = vmatpush1.bf16.msra.mxu0 0
        %1963 = vmatprep.subr.bf16.mxu0 0
        %1964 = vmatpush1.bf16.msra.mxu0 0
        %1965 = vmatprep.subr.bf16.mxu0 0
        %1966 = vmatpush1.bf16.msra.mxu0 0
        %1967 = vmatprep.subr.bf16.mxu0 0
        %1968 = vmatpush1.bf16.msra.mxu0 0
        %1969 = vmatprep.subr.bf16.mxu0 0
        %1970 = vmatpush1.bf16.msra.mxu0 0
        %1971 = vmatprep.subr.bf16.mxu0 0
        %1972 = vmatpush1.bf16.msra.mxu0 0
        %1973 = vmatprep.mubr.bf16.mxu0 0
        %1974 = vmatmul.mubr.bf16.gmra.mrb[0].mxu0 %v1918
        %v1975 = vpop.f32.mrb[0].mxu0
        %v1976 = vadd.f32 %v1903, %v1975
        %v1977 = vpop.f32.mrb[0].mxu0
        %v1978 = vpop.f32.mrb[0].mxu0
        %v1979 = vadd.f32 %v1903, %v1978
        %v1980 = vpop.f32.mrb[0].mxu0
        %1981 = vmatprep.mubr.bf16.mxu0 0
        %1982 = vmatmul.mubr.bf16.gmra.mrb[0].mxu0 %v1921
        %v1983 = vpop.f32.mrb[0].mxu0
        %v1984 = vadd.f32 %v1903, %v1983
        %v1985 = vpop.f32.mrb[0].mxu0
        %v1986 = vpop.f32.mrb[0].mxu0
        %v1987 = vadd.f32 %v1903, %v1986
        %v1988 = vpop.f32.mrb[0].mxu0
        %1989 = vmatprep.mubr.bf16.mxu0 0
        %1990 = vmatmul.mubr.bf16.gmra.mrb[0].mxu0 %v1924
        %v1991 = vpop.f32.mrb[0].mxu0
        %v1992 = vadd.f32 %v1903, %v1991
        %v1993 = vpop.f32.mrb[0].mxu0
        %v1994 = vpop.f32.mrb[0].mxu0
        %v1995 = vadd.f32 %v1903, %v1994
        %v1996 = vpop.f32.mrb[0].mxu0
        %1997 = vmatprep.mubr.bf16.mxu0 0
        %1998 = vmatmul.mubr.bf16.gmra.mrb[0].mxu0 %v1927
        %v1999 = vpop.f32.mrb[0].mxu0
        %v2000 = vadd.f32 %v1903, %v1999
        %v2001 = vpop.f32.mrb[0].mxu0
        %v2002 = vpop.f32.mrb[0].mxu0
        %v2003 = vadd.f32 %v1903, %v2002
        %v2004 = vpop.f32.mrb[0].mxu0
        %2005 = vmatprep.mubr.bf16.mxu0 0
        %2006 = vmatmul.mubr.bf16.gmra.mrb[0].mxu0 %v1930
        %v2007 = vpop.f32.mrb[0].mxu0
        %v2008 = vadd.f32 %v1903, %v2007
        %v2009 = vpop.f32.mrb[0].mxu0
        %v2010 = vpop.f32.mrb[0].mxu0
        %v2011 = vadd.f32 %v1903, %v2010
        %v2012 = vpop.f32.mrb[0].mxu0
        %2013 = vmatprep.mubr.bf16.mxu0 0
        %2014 = vmatmul.mubr.bf16.gmra.mrb[0].mxu0 %v1933
        %v2015 = vpop.f32.mrb[0].mxu0
        %v2016 = vadd.f32 %v1903, %v2015
        %v2017 = vpop.f32.mrb[0].mxu0
        %v2018 = vpop.f32.mrb[0].mxu0
        %v2019 = vadd.f32 %v1903, %v2018
        %v2020 = vpop.f32.mrb[0].mxu0
        %2021 = vmatprep.mubr.bf16.mxu0 0
        %2022 = vmatmul.mubr.bf16.gmra.mrb[0].mxu0 %v1936
        %v2023 = vpop.f32.mrb[0].mxu0
        %v2024 = vadd.f32 %v1903, %v2023
        %v2025 = vpop.f32.mrb[0].mxu0
        %v2026 = vpop.f32.mrb[0].mxu0
        %v2027 = vadd.f32 %v1903, %v2026
        %v2028 = vpop.f32.mrb[0].mxu0
        %2029 = vmatprep.mubr.bf16.mxu0 0
        %2030 = vmatmul.mubr.bf16.gmra.mrb[0].mxu0 %v1939
        %v2031 = vpop.f32.mrb[0].mxu0
        %v2032 = vadd.f32 %v1903, %v2031
        %v2033 = vpop.f32.mrb[0].mxu0
        %v2034 = vpop.f32.mrb[0].mxu0
        %v2035 = vadd.f32 %v1903, %v2034
        %v2036 = vpop.f32.mrb[0].mxu0
        %2037 = vdwg.mxu0
        %v2038 = vmax.f32 %v1976, 0.0
        %v2039 = vmax.f32 %v1979, 0.0
        %v2040 = vmax.f32 %v1984, 0.0
        %v2041 = vmax.f32 %v1987, 0.0
        %v2042 = vmax.f32 %v1992, 0.0
        %v2043 = vmax.f32 %v1995, 0.0
        %v2044 = vmax.f32 %v2000, 0.0
        %v2045 = vmax.f32 %v2003, 0.0
        %v2046 = vmax.f32 %v2008, 0.0
        %v2047 = vmax.f32 %v2011, 0.0
        %v2048 = vmax.f32 %v2016, 0.0
        %v2049 = vmax.f32 %v2019, 0.0
        %v2050 = vmax.f32 %v2024, 0.0
        %v2051 = vmax.f32 %v2027, 0.0
        %v2052 = vmax.f32 %v2032, 0.0
        %v2053 = vmax.f32 %v2035, 0.0
        %v2054 = vld [vmem:[%s8] sm:$0x1]
        %v2056 = vlaneseq
        %v2057 = vshrl.u32 %v2056, 7
        %v2058 = vsub.s32 0, %v2057
        %v2059 = vrot.slane %v2054, %v2058
        %2060 = vrot.lane.b32.xlu0 %v2059, 96
        %v2061 = vpop.permute.xlu0 %2060
        %vm2062 = vcmask 130048
        %v2063 = vsel %vm2062, %v2061, 0
        %v2066 = vsel %vm2062, %v2038, 0
        %v2069 = vsel %vm2062, %v2039, 0
        %v2072 = vsel %vm2062, %v2040, 0
        %v2075 = vsel %vm2062, %v2041, 0
        %v2078 = vsel %vm2062, %v2042, 0
        %v2081 = vsel %vm2062, %v2043, 0
        %v2084 = vsel %vm2062, %v2044, 0
        %v2087 = vsel %vm2062, %v2045, 0
        %v2090 = vsel %vm2062, %v2046, 0
        %v2093 = vsel %vm2062, %v2047, 0
        %v2096 = vsel %vm2062, %v2048, 0
        %v2099 = vsel %vm2062, %v2049, 0
        %v2102 = vsel %vm2062, %v2050, 0
        %v2105 = vsel %vm2062, %v2051, 0
        %v2108 = vsel %vm2062, %v2052, 0
        %v2111 = vsel %vm2062, %v2053, 0
        %2113 = vmatprep.subr.mxu0 0.0
        %2114 = vmatpush1.xpose.msra.mxu0 %v2066
        %2115 = vmatprep.subr.mxu0 0.0
        %2116 = vmatpush1.xpose.msra.mxu0 %v2069
        %2117 = vmatprep.subr.mxu0 0.0
        %2118 = vmatpush1.xpose.msra.mxu0 %v2072
        %2119 = vmatprep.subr.mxu0 0.0
        %2120 = vmatpush1.xpose.msra.mxu0 %v2075
        %2121 = vmatprep.subr.mxu0 0.0
        %2122 = vmatpush1.xpose.msra.mxu0 %v2078
        %2123 = vmatprep.subr.mxu0 0.0
        %2124 = vmatpush1.xpose.msra.mxu0 %v2081
        %2125 = vmatprep.subr.mxu0 0.0
        %2126 = vmatpush1.xpose.msra.mxu0 %v2084
        %2127 = vmatprep.subr.mxu0 0.0
        %2128 = vmatpush1.xpose.msra.mxu0 %v2087
        %2129 = vmatprep.subr.mxu0 0.0
        %2130 = vmatpush1.xpose.msra.mxu0 %v2090
        %2131 = vmatprep.subr.mxu0 0.0
        %2132 = vmatpush1.xpose.msra.mxu0 %v2093
        %2133 = vmatprep.subr.mxu0 0.0
        %2134 = vmatpush1.xpose.msra.mxu0 %v2096
        %2135 = vmatprep.subr.mxu0 0.0
        %2136 = vmatpush1.xpose.msra.mxu0 %v2099
        %2137 = vmatprep.subr.mxu0 0.0
        %2138 = vmatpush1.xpose.msra.mxu0 %v2102
        %2139 = vmatprep.subr.mxu0 0.0
        %2140 = vmatpush1.xpose.msra.mxu0 %v2105
        %2141 = vmatprep.subr.mxu0 0.0
        %2142 = vmatpush1.xpose.msra.mxu0 %v2108
        %2143 = vmatprep.subr.mxu0 0.0
        %2144 = vmatpush1.xpose.msra.mxu0 %v2111
        %2145 = vmatprep.subr.mxu0 0.0
        %2146 = vmatpush1.xpose.msra.mxu0 0.0
        %2147 = vmatprep.subr.mxu0 0.0
        %2148 = vmatpush1.xpose.msra.mxu0 0.0
        %2149 = vmatprep.subr.mxu0 0.0
        %2150 = vmatpush1.xpose.msra.mxu0 0.0
        %2151 = vmatprep.subr.mxu0 0.0
        %2152 = vmatpush1.xpose.msra.mxu0 0.0
        %2153 = vmatprep.subr.mxu0 0.0
        %2154 = vmatpush1.xpose.msra.mxu0 0.0
        %2155 = vmatprep.subr.mxu0 0.0
        %2156 = vmatpush1.xpose.msra.mxu0 0.0
        %2157 = vmatprep.subr.mxu0 0.0
        %2158 = vmatpush1.xpose.msra.mxu0 0.0
        %2159 = vmatprep.subr.mxu0 0.0
        %2160 = vmatpush1.xpose.msra.mxu0 0.0
        %2161 = vmatprep.subr.mxu0 0.0
        %2162 = vmatpush1.xpose.msra.mxu0 0.0
        %2163 = vmatprep.subr.mxu0 0.0
        %2164 = vmatpush1.xpose.msra.mxu0 0.0
        %2165 = vmatprep.subr.mxu0 0.0
        %2166 = vmatpush1.xpose.msra.mxu0 0.0
        %2167 = vmatprep.subr.mxu0 0.0
        %2168 = vmatpush1.xpose.msra.mxu0 0.0
        %2169 = vmatprep.subr.mxu0 0.0
        %2170 = vmatpush1.xpose.msra.mxu0 0.0
        %2171 = vmatprep.subr.mxu0 0.0
        %2172 = vmatpush1.xpose.msra.mxu0 0.0
        %2173 = vmatprep.subr.mxu0 0.0
        %2174 = vmatpush1.xpose.msra.mxu0 0.0
        %2175 = vmatprep.subr.mxu0 0.0
        %2176 = vmatpush1.xpose.msra.mxu0 0.0
        %2177 = vmatprep.mubr.f32.mxu0 0.0
        %2178 = vmatmul.mubr.f32.gmra.mrb[0].mxu0 %v2063
        %v2179 = vpop.f32.mrb[0].mxu0
        %v2180 = vadd.f32 0.0, %v2179
        %v2181 = vpop.f32.mrb[0].mxu0
        %2182 = vdwg.mxu0
        %v2183 = vsel %vm1372, %v2054, 0
        %v2186 = vsel %vm1372, %v1702, 0
        %v2189 = vsel %vm1372, %v1703, 0
        %v2192 = vsel %vm1372, %v1704, 0
        %v2195 = vsel %vm1372, %v1705, 0
        %v2198 = vsel %vm1372, %v1706, 0
        %v2201 = vsel %vm1372, %v1707, 0
        %v2204 = vsel %vm1372, %v1708, 0
        %v2207 = vsel %vm1372, %v1709, 0
        %v2210 = vsel %vm1372, %v1710, 0
        %v2213 = vsel %vm1372, %v1711, 0
        %v2216 = vsel %vm1372, %v1712, 0
        %v2219 = vsel %vm1372, %v1713, 0
        %v2222 = vsel %vm1372, %v1714, 0
        %v2225 = vsel %vm1372, %v1715, 0
        %v2228 = vsel %vm1372, %v1716, 0
        %v2231 = vsel %vm1372, %v1717, 0
        %2233 = vmatprep.subr.mxu0 0.0
        %2234 = vmatpush1.xpose.msra.mxu0 %v2186
        %2235 = vmatprep.subr.mxu0 0.0
        %2236 = vmatpush1.xpose.msra.mxu0 %v2189
        %2237 = vmatprep.subr.mxu0 0.0
        %2238 = vmatpush1.xpose.msra.mxu0 %v2192
        %2239 = vmatprep.subr.mxu0 0.0
        %2240 = vmatpush1.xpose.msra.mxu0 %v2195
        %2241 = vmatprep.subr.mxu0 0.0
        %2242 = vmatpush1.xpose.msra.mxu0 %v2198
        %2243 = vmatprep.subr.mxu0 0.0
        %2244 = vmatpush1.xpose.msra.mxu0 %v2201
        %2245 = vmatprep.subr.mxu0 0.0
        %2246 = vmatpush1.xpose.msra.mxu0 %v2204
        %2247 = vmatprep.subr.mxu0 0.0
        %2248 = vmatpush1.xpose.msra.mxu0 %v2207
        %2249 = vmatprep.subr.mxu0 0.0
        %2250 = vmatpush1.xpose.msra.mxu0 %v2210
        %2251 = vmatprep.subr.mxu0 0.0
        %2252 = vmatpush1.xpose.msra.mxu0 %v2213
        %2253 = vmatprep.subr.mxu0 0.0
        %2254 = vmatpush1.xpose.msra.mxu0 %v2216
        %2255 = vmatprep.subr.mxu0 0.0
        %2256 = vmatpush1.xpose.msra.mxu0 %v2219
        %2257 = vmatprep.subr.mxu0 0.0
        %2258 = vmatpush1.xpose.msra.mxu0 %v2222
        %2259 = vmatprep.subr.mxu0 0.0
        %2260 = vmatpush1.xpose.msra.mxu0 %v2225
        %2261 = vmatprep.subr.mxu0 0.0
        %2262 = vmatpush1.xpose.msra.mxu0 %v2228
        %2263 = vmatprep.subr.mxu0 0.0
        %2264 = vmatpush1.xpose.msra.mxu0 %v2231
        %2265 = vmatprep.subr.mxu0 0.0
        %2266 = vmatpush1.xpose.msra.mxu0 0.0
        %2267 = vmatprep.subr.mxu0 0.0
        %2268 = vmatpush1.xpose.msra.mxu0 0.0
        %2269 = vmatprep.subr.mxu0 0.0
        %2270 = vmatpush1.xpose.msra.mxu0 0.0
        %2271 = vmatprep.subr.mxu0 0.0
        %2272 = vmatpush1.xpose.msra.mxu0 0.0
        %2273 = vmatprep.subr.mxu0 0.0
        %2274 = vmatpush1.xpose.msra.mxu0 0.0
        %2275 = vmatprep.subr.mxu0 0.0
        %2276 = vmatpush1.xpose.msra.mxu0 0.0
        %2277 = vmatprep.subr.mxu0 0.0
        %2278 = vmatpush1.xpose.msra.mxu0 0.0
        %2279 = vmatprep.subr.mxu0 0.0
        %2280 = vmatpush1.xpose.msra.mxu0 0.0
        %2281 = vmatprep.subr.mxu0 0.0
        %2282 = vmatpush1.xpose.msra.mxu0 0.0
        %2283 = vmatprep.subr.mxu0 0.0
        %2284 = vmatpush1.xpose.msra.mxu0 0.0
        %2285 = vmatprep.subr.mxu0 0.0
        %2286 = vmatpush1.xpose.msra.mxu0 0.0
        %2287 = vmatprep.subr.mxu0 0.0
        %2288 = vmatpush1.xpose.msra.mxu0 0.0
        %2289 = vmatprep.subr.mxu0 0.0
        %2290 = vmatpush1.xpose.msra.mxu0 0.0
        %2291 = vmatprep.subr.mxu0 0.0
        %2292 = vmatpush1.xpose.msra.mxu0 0.0
        %2293 = vmatprep.subr.mxu0 0.0
        %2294 = vmatpush1.xpose.msra.mxu0 0.0
        %2295 = vmatprep.subr.mxu0 0.0
        %2296 = vmatpush1.xpose.msra.mxu0 0.0
        %2297 = vmatprep.mubr.f32.mxu0 0.0
        %2298 = vmatmul.mubr.f32.gmra.mrb[0].mxu0 %v2183
        %v2299 = vpop.f32.mrb[0].mxu0
        %v2300 = vadd.f32 %v2180, %v2299
        %v2301 = vpop.f32.mrb[0].mxu0
        %2302 = vdwg.mxu0
        %2303 = vset.pattern.permute.xlu0 48
        %2304 = vperm.xlu0 %2303, %v2054
        %v2305 = vpop.permute.xlu0 %2304
        %v2307 = vlaneseq
        %v2308 = vshrl.u32 %v2307, 7
        %v2309 = vsub.s32 0, %v2308
        %v2310 = vrot.slane %v2305, %v2309
        %v2311 = vadd.f32 %v2300, %v2310
        %2312 = vst [vmem:[%s325] sm:$0x1] %v2311
        %s2313 = sand.u32 %s225, 1
        %s2314 = scalar_lea.sflag [#allocation3], %s2313
        %s2315 = sand.u32 %s225, 1
        %s2316 = scalar_lea.vmem [#allocation2], %s2315
        // Predicated region
        $region57: #{tpu_custom_call.1} parent=55 // pred_check
          %p2317 = pneg %p235
        $region58: #{tpu_custom_call.1} parent=55 // pred_check_branch
          %2319 = sbr.rel (%p2317) target = $region60
        $region59: #{tpu_custom_call.1} parent=55 // pred_region
          %s2321 = ssub.s32 16, 16
          %2322 = vsyncadd %s2314, %s2321
          %s2323 = smul.addr %s23, 16
          %s2324 = scalar_lea.hbm %s9, %s2323
          %s2326 = sshll.u32 %s2316, 4
          %s2327 = int_to_ptr.vmem [resolvable:$true] %s2326
          %2329 = dma.vmem_to_hbm [thread:$0]  %s2327, 16, %s2324, %s2314
        $region60: #{tpu_custom_call.1} parent=55 // pred_fallthru
          _
      $region56: #{tpu_custom_call.1} parent=5 // pred_fallthru
        _
      %p2330 = scmp.le.s32.totalorder 2, %s18
      // Predicated region
      $region61: #{tpu_custom_call.1} parent=5 // pred_check
        %p2331 = pneg %p2330
      $region62: #{tpu_custom_call.1} parent=5 // pred_check_branch
        %2333 = sbr.rel (%p2331) target = $region64
      $region63: #{tpu_custom_call.1} parent=5 // pred_region
        %s2334 = ssub.s32 %s18, 2
        // Predicated region
        $region65: #{tpu_custom_call.1} parent=63 // pred_check
          %p2335 = pneg %p241
        $region66: #{tpu_custom_call.1} parent=63 // pred_check_branch
          %2337 = sbr.rel (%p2335) target = $region68
        $region67: #{tpu_custom_call.1} parent=63 // pred_region
          %s2338 = sand.u32 %s226, 1
          %s2339 = scalar_lea.sflag [#allocation3], %s2338
          %s2340 = sand.u32 %s226, 1
          %s2341 = scalar_lea.vmem [#allocation2], %s2340
          %2342 = dma.done %s2339, 16
        $region68: #{tpu_custom_call.1} parent=63 // pred_fallthru
          _
      $region64: #{tpu_custom_call.1} parent=5 // pred_fallthru
        _
    $region6: #{tpu_custom_call.1} parent=1 // loop_footer
      %s22 = sadd.s32 1, %s18
    $region7: #{tpu_custom_call.1} parent=1 // loop_footer_branch
      %17 = sbr.rel target = $region3
    $region8: #{tpu_custom_call.1} parent=1 // loop_exit
      _
    %2343 = vsyncpa [#allocation3], 1
    %s2344 = scalar_lea.sflag [#allocation3], 1
    %2345 = vsyncpa %s2344, 1

</llo_original>
